<compile_context>
chip_gen: v6e
topology: v6e:2x2x1
jax: 0.10.0
libtpu: 0.0.40
codegen_flags: <defaults>
</compile_context>

<pallas_src>
import jax
import jax.numpy as jnp
import numpy as np
from jax.experimental import pallas as pl
from jax.experimental.pallas import tpu as pltpu

EMB_SIZE = 512
HID = 256


# --------------------------------------------------------------------------
# Fused G_Block kernel
# --------------------------------------------------------------------------
def _g_block_kernel(y_ref, x_ref, w1_ref, b1_ref, w2_ref, b2_ref, t_ref,
                    k1_ref, c1b_ref, k2_ref, c2b_ref, scw_ref, scb_ref,
                    gamma_ref, o_ref, pad1_ref, pad2_ref):
    B, H, WCin = x_ref.shape          # x is lane-dense [B, H, W*Cin]
    WCout = o_ref.shape[-1]           # output lane width = W*Cout (128)

    # ---- 1) all eight affine MLPs fused: one big dot + one block-diag dot,
    #         then a 0/1 tiling dot that replicates per-channel gammas/betas
    #         across W so they broadcast lane-dense.
    hid = jnp.dot(y_ref[...], w1_ref[...], preferred_element_type=jnp.float32)
    hid = jnp.maximum(hid + b1_ref[...], 0.0)                         # [B, 8*256]
    aff = jnp.dot(hid, w2_ref[...],
                  preferred_element_type=jnp.float32) + b2_ref[...]   # [B, 4Cin+4Cout]
    afft = jnp.dot(aff, t_ref[...], preferred_element_type=jnp.float32)
    # afft: [B, 4*W*Cin + 4*W*Cout]  (segments: g0|b0|g1|b1|g2|b2|g3|b3)

    def seg(i, width, base):
        s = base + i * width
        return afft[:, s:s + width][:, None, :]                       # [B, 1, width]

    ga0, be0, ga1, be1 = [seg(i, WCin, 0) for i in range(4)]
    ga2, be2, ga3, be3 = [seg(i, WCout, 4 * WCin) for i in range(4)]

    def lrelu(v):
        return jnp.where(v >= 0, v, 0.2 * v)

    # ---- 2) FiLM0 + lrelu, FiLM1 + lrelu on the lane-dense [B, H, W*Cin] view
    x = x_ref[...]
    h = lrelu(ga1 * lrelu(ga0 * x + be0) + be1)

    # ---- 3) conv c1: vertical zero-pad into VMEM scratch, then a single MXU
    #         dot against the banded weight (horizontal pad baked into k1).
    pad1_ref[...] = jnp.zeros(pad1_ref.shape, jnp.float32)
    pad1_ref[:, 1:H + 1, :] = h
    xp1 = pad1_ref[...]
    rows1 = jnp.concatenate([xp1[:, dh:dh + H, :] for dh in range(3)],
                            axis=-1).reshape(B * H, 3 * WCin)
    h1 = jnp.dot(rows1, k1_ref[...],
                 preferred_element_type=jnp.float32) + c1b_ref[...]   # [B*H, W*Cout]
    h1 = h1.reshape(B, H, WCout)

    # ---- 4) FiLM2 + lrelu, FiLM3 + lrelu (lane-dense, 128 lanes)
    h1 = lrelu(ga3 * lrelu(ga2 * h1 + be2) + be3)

    # ---- 5) conv c2 (same banded trick)
    pad2_ref[...] = jnp.zeros(pad2_ref.shape, jnp.float32)
    pad2_ref[:, 1:H + 1, :] = h1
    xp2 = pad2_ref[...]
    rows2 = jnp.concatenate([xp2[:, dh:dh + H, :] for dh in range(3)],
                            axis=-1).reshape(B * H, 3 * WCout)
    res = jnp.dot(rows2, k2_ref[...],
                  preferred_element_type=jnp.float32) + c2b_ref[...]  # [B*H, W*Cout]

    # ---- 6) fused epilogue: 1x1 shortcut (block-diagonal matmul) + gamma*res,
    #         stored lane-dense (last dim = W*Cout = 128, unmasked vst).
    sc = jnp.dot(x.reshape(B * H, WCin), scw_ref[...],
                 preferred_element_type=jnp.float32) + scb_ref[...]
    o_ref[...] = sc + gamma_ref[0, 0] * res


# --------------------------------------------------------------------------
# One-time parameter repacking (wrapper side, not per call)
# --------------------------------------------------------------------------
def _banded_conv_weight(w, W):
    """[3,3,Cin,Cout] conv kernel -> banded [3*W*Cin, W*Cout] matrix so that a
    lane-concat of the three vertically shifted (zero-padded) input rows times
    this matrix equals the SAME-padded 3x3 conv output row (lane-dense)."""
    kh, kw, cin, cout = w.shape
    wnp = np.asarray(w, np.float32)
    k = np.zeros((kh * W * cin, W * cout), np.float32)
    for dh in range(kh):
        for wout in range(W):
            for dw in range(kw):
                wsrc = wout + dw - 1
                if 0 <= wsrc < W:
                    r0 = (dh * W + wsrc) * cin
                    c0 = wout * cout
                    k[r0:r0 + cin, c0:c0 + cout] = wnp[dh, dw]
    return jnp.asarray(k)


def prepare_params(p, in_ch, out_ch, W):
    mlps = [p["a0g"], p["a0b"], p["a1g"], p["a1b"],
            p["a2g"], p["a2b"], p["a3g"], p["a3b"]]
    chans = [in_ch] * 4 + [out_ch] * 4

    # (a) eight linear1's concatenated -> one [512, 8*256] weight (shared y)
    w1 = jnp.concatenate([m[0] for m in mlps], axis=1)
    b1 = jnp.concatenate([m[1] for m in mlps], axis=0).reshape(1, -1)

    # (b) eight linear2's -> one block-diagonal [8*256, 4*in_ch+4*out_ch]
    tot = sum(chans)
    w2 = np.zeros((8 * HID, tot), np.float32)
    off = 0
    for i, (m, c) in enumerate(zip(mlps, chans)):
        w2[i * HID:(i + 1) * HID, off:off + c] = np.asarray(m[2])
        off += c
    b2 = jnp.concatenate([m[3] for m in mlps], axis=0).reshape(1, -1)

    # (c) 0/1 matrix tiling each per-channel gamma/beta across W (lane-dense)
    tmat = np.zeros((tot, W * tot), np.float32)
    ioff = ooff = 0
    for c in chans:
        for w in range(W):
            for cc in range(c):
                tmat[ioff + cc, ooff + w * c + cc] = 1.0
        ioff += c
        ooff += W * c

    # (d) 3x3 convs as banded matmuls (horizontal SAME pad folded into weights)
    k1 = _banded_conv_weight(p["c1_w"], W)
    k2 = _banded_conv_weight(p["c2_w"], W)
    c1b = jnp.tile(p["c1_b"], W).reshape(1, W * out_ch)
    c2b = jnp.tile(p["c2_b"], W).reshape(1, W * out_ch)

    # (e) 1x1 learnable shortcut as block-diagonal [W*in_ch, W*out_ch]
    scw = np.zeros((W * in_ch, W * out_ch), np.float32)
    s = np.asarray(p["sc_w"])
    for w in range(W):
        scw[w * in_ch:(w + 1) * in_ch, w * out_ch:(w + 1) * out_ch] = s
    scb = jnp.tile(p["sc_b"], W).reshape(1, W * out_ch)

    return {
        "w1": w1, "b1": b1, "w2": jnp.asarray(w2), "b2": b2,
        "tmat": jnp.asarray(tmat),
        "k1": k1, "c1b": c1b, "k2": k2, "c2b": c2b,
        "scw": jnp.asarray(scw), "scb": scb,
        "gamma": p["gamma"].reshape(1, 1),
    }


# --------------------------------------------------------------------------
# G_Block forward: one pallas_call
# --------------------------------------------------------------------------
@jax.jit
def g_block_forward(x, y, pp):
    B, H, W, Cin = x.shape
    WCin = W * Cin
    WCout = pp["c1b"].shape[-1]            # = W * out_ch
    Cout = WCout // W

    vmem = pl.BlockSpec(memory_space=pltpu.MemorySpace.VMEM)
    smem = pl.BlockSpec(memory_space=pltpu.MemorySpace.SMEM)

    out2d = pl.pallas_call(
        _g_block_kernel,
        out_shape=jax.ShapeDtypeStruct((B * H, WCout), jnp.float32),
        in_specs=[vmem] * 13 + [smem],     # gamma -> SMEM scalar path
        out_specs=vmem,
        scratch_shapes=[
            pltpu.VMEM((B, H + 2, WCin), jnp.float32),    # vertical pad, conv1
            pltpu.VMEM((B, H + 2, WCout), jnp.float32),   # vertical pad, conv2
        ],
        compiler_params=pltpu.CompilerParams(vmem_limit_bytes=32 * 1024 * 1024),
    )(
        y, x.reshape(B, H, WCin),
        pp["w1"], pp["b1"], pp["w2"], pp["b2"], pp["tmat"],
        pp["k1"], pp["c1b"], pp["k2"], pp["c2b"],
        pp["scw"], pp["scb"], pp["gamma"],
    )
    # (B*H, W*Cout) -> NHWC; bit-identical row-major reshape (free in XLA).
    return out2d.reshape(B, H, W, Cout)


# --------------------------------------------------------------------------
# Pure-JAX reference (operates on the raw, un-repacked parameters)
# --------------------------------------------------------------------------
def g_block_reference(x, y, p):
    def mlp_ref(y, w1, b1, w2, b2):
        h = jnp.maximum(y @ w1 + b1, 0.0)
        return h @ w2 + b2

    def mod(x, g, b):
        return g[:, None, None, :] * x + b[:, None, None, :]

    def lrelu(x):
        return jnp.where(x >= 0, x, 0.2 * x)

    def conv(x, w, b):
        o = jax.lax.conv_general_dilated(
            x, w, (1, 1), "SAME", dimension_numbers=("NHWC", "HWIO", "NHWC"))
        return o + b[None, None, None, :]

    g0 = mlp_ref(y, *p["a0g"]); b0 = mlp_ref(y, *p["a0b"])
    g1 = mlp_ref(y, *p["a1g"]); b1 = mlp_ref(y, *p["a1b"])
    g2 = mlp_ref(y, *p["a2g"]); b2 = mlp_ref(y, *p["a2b"])
    g3 = mlp_ref(y, *p["a3g"]); b3 = mlp_ref(y, *p["a3b"])

    h = lrelu(mod(x, g0, b0))
    h = lrelu(mod(h, g1, b1))
    h = conv(h, p["c1_w"], p["c1_b"])
    h = lrelu(mod(h, g2, b2))
    h = lrelu(mod(h, g3, b3))
    res = conv(h, p["c2_w"], p["c2_b"])
    sc = conv(x, p["sc_w"][None, None], p["sc_b"])        # 1x1 conv shortcut
    return sc + p["gamma"][0, 0] * res


# --------------------------------------------------------------------------
# Deterministic parameter init
# --------------------------------------------------------------------------
def init_params(key, in_ch, out_ch):
    keys = iter(jax.random.split(key, 64))

    def lin(i, o):
        w = 0.05 * jax.random.normal(next(keys), (i, o), jnp.float32)
        b = 0.05 * jax.random.normal(next(keys), (o,), jnp.float32)
        return w, b

    def affine_mlp(c):
        w1, b1 = lin(EMB_SIZE, HID)
        w2, b2 = lin(HID, c)
        return (w1, b1, w2, b2)

    p = {}
    p["a0g"] = affine_mlp(in_ch);  p["a0b"] = affine_mlp(in_ch)
    p["a1g"] = affine_mlp(in_ch);  p["a1b"] = affine_mlp(in_ch)
    p["a2g"] = affine_mlp(out_ch); p["a2b"] = affine_mlp(out_ch)
    p["a3g"] = affine_mlp(out_ch); p["a3b"] = affine_mlp(out_ch)
    p["c1_w"] = 0.05 * jax.random.normal(next(keys), (3, 3, in_ch, out_ch), jnp.float32)
    p["c1_b"] = 0.05 * jax.random.normal(next(keys), (out_ch,), jnp.float32)
    p["c2_w"] = 0.05 * jax.random.normal(next(keys), (3, 3, out_ch, out_ch), jnp.float32)
    p["c2_b"] = 0.05 * jax.random.normal(next(keys), (out_ch,), jnp.float32)
    p["sc_w"] = 0.05 * jax.random.normal(next(keys), (in_ch, out_ch), jnp.float32)
    p["sc_b"] = 0.05 * jax.random.normal(next(keys), (out_ch,), jnp.float32)
    p["gamma"] = jnp.array([[0.7]], jnp.float32)  # torch.zeros(1) -> nonzero for a real test
    return p


if __name__ == "__main__":
    B, H, W = 2, 16, 16
    in_ch, out_ch = 4, 8  # in_ch != out_ch -> learnable shortcut path exercised

    key = jax.random.PRNGKey(0)
    kx, ky, kp = jax.random.split(key, 3)
    x = jax.random.normal(kx, (B, H, W, in_ch), jnp.float32)  # NHWC (== NCHW [B,in_ch,H,W])
    y = jax.random.normal(ky, (B, EMB_SIZE), jnp.float32)
    params = init_params(kp, in_ch, out_ch)
    packed = prepare_params(params, in_ch, out_ch, W)         # one-time repack

    out = jax.block_until_ready(g_block_forward(x, y, packed))
    ref = g_block_reference(x, y, params)
    np.testing.assert_allclose(np.asarray(out), np.asarray(ref), rtol=5e-3, atol=5e-3)

    print("KERNEL_OK")
</pallas_src>

<mosaic_0001>
module attributes {stable_mosaic.version = 11 : i64} {
  func.func @_g_block_kernel(%arg0: memref<2x512xf32, #tpu.memory_space<vmem>>, %arg1: memref<2x16x64xf32, #tpu.memory_space<vmem>>, %arg2: memref<512x2048xf32, #tpu.memory_space<vmem>>, %arg3: memref<1x2048xf32, #tpu.memory_space<vmem>>, %arg4: memref<2048x48xf32, #tpu.memory_space<vmem>>, %arg5: memref<1x48xf32, #tpu.memory_space<vmem>>, %arg6: memref<48x768xf32, #tpu.memory_space<vmem>>, %arg7: memref<192x128xf32, #tpu.memory_space<vmem>>, %arg8: memref<1x128xf32, #tpu.memory_space<vmem>>, %arg9: memref<384x128xf32, #tpu.memory_space<vmem>>, %arg10: memref<1x128xf32, #tpu.memory_space<vmem>>, %arg11: memref<64x128xf32, #tpu.memory_space<vmem>>, %arg12: memref<1x128xf32, #tpu.memory_space<vmem>>, %arg13: memref<1x1xf32, #tpu.memory_space<smem>>, %arg14: memref<32x128xf32, #tpu.memory_space<vmem>>, %arg15: memref<2x18x64xf32, #tpu.memory_space<vmem>>, %arg16: memref<2x18x128xf32, #tpu.memory_space<vmem>>) attributes {dimension_semantics = [], scalar_prefetch = 0 : i64, scratch_operands = 2 : i64, tpu.core_type = #tpu.core_type<tc>} {
    %c0 = arith.constant 0 : index
    %c0_0 = arith.constant 0 : index
    %0 = vector.load %arg0[%c0, %c0_0] : memref<2x512xf32, #tpu.memory_space<vmem>>, vector<2x512xf32>
    %c0_1 = arith.constant 0 : index
    %c0_2 = arith.constant 0 : index
    %1 = vector.load %arg2[%c0_1, %c0_2] : memref<512x2048xf32, #tpu.memory_space<vmem>>, vector<512x2048xf32>
    %cst = arith.constant dense<0.000000e+00> : vector<2x2048xf32>
    %2 = tpu.matmul %0, %1, %cst {dimension_numbers = #tpu.dot_dimension_numbers<[1], [0], [0], [1], [0, 0, 1, 1], [], []>} : vector<2x512xf32>, vector<512x2048xf32>, vector<2x2048xf32> -> vector<2x2048xf32>
    %c0_3 = arith.constant 0 : index
    %c0_4 = arith.constant 0 : index
    %3 = vector.load %arg3[%c0_3, %c0_4] : memref<1x2048xf32, #tpu.memory_space<vmem>>, vector<1x2048xf32>
    %4 = vector.broadcast %3 : vector<1x2048xf32> to vector<2x2048xf32>
    %5 = arith.addf %2, %4 : vector<2x2048xf32>
    %cst_5 = arith.constant 0.000000e+00 : f32
    %6 = vector.broadcast %cst_5 : f32 to vector<2x2048xf32>
    %7 = arith.maximumf %5, %6 : vector<2x2048xf32>
    %c0_6 = arith.constant 0 : index
    %c0_7 = arith.constant 0 : index
    %8 = vector.load %arg4[%c0_6, %c0_7] : memref<2048x48xf32, #tpu.memory_space<vmem>>, vector<2048x48xf32>
    %cst_8 = arith.constant dense<0.000000e+00> : vector<2x48xf32>
    %9 = tpu.matmul %7, %8, %cst_8 {dimension_numbers = #tpu.dot_dimension_numbers<[1], [0], [0], [1], [0, 0, 1, 1], [], []>} : vector<2x2048xf32>, vector<2048x48xf32>, vector<2x48xf32> -> vector<2x48xf32>
    %c0_9 = arith.constant 0 : index
    %c0_10 = arith.constant 0 : index
    %10 = vector.load %arg5[%c0_9, %c0_10] : memref<1x48xf32, #tpu.memory_space<vmem>>, vector<1x48xf32>
    %11 = vector.broadcast %10 : vector<1x48xf32> to vector<2x48xf32>
    %12 = arith.addf %9, %11 : vector<2x48xf32>
    %c0_11 = arith.constant 0 : index
    %c0_12 = arith.constant 0 : index
    %13 = vector.load %arg6[%c0_11, %c0_12] : memref<48x768xf32, #tpu.memory_space<vmem>>, vector<48x768xf32>
    %cst_13 = arith.constant dense<0.000000e+00> : vector<2x768xf32>
    %14 = tpu.matmul %12, %13, %cst_13 {dimension_numbers = #tpu.dot_dimension_numbers<[1], [0], [0], [1], [0, 0, 1, 1], [], []>} : vector<2x48xf32>, vector<48x768xf32>, vector<2x768xf32> -> vector<2x768xf32>
    %15 = vector.extract_strided_slice %14 {offsets = [0, 0], sizes = [2, 64], strides = [1, 1]} : vector<2x768xf32> to vector<2x64xf32>
    %16 = vector.shape_cast %15 : vector<2x64xf32> to vector<2x1x64xf32>
    %17 = vector.extract_strided_slice %14 {offsets = [0, 64], sizes = [2, 64], strides = [1, 1]} : vector<2x768xf32> to vector<2x64xf32>
    %18 = vector.shape_cast %17 : vector<2x64xf32> to vector<2x1x64xf32>
    %19 = vector.extract_strided_slice %14 {offsets = [0, 128], sizes = [2, 64], strides = [1, 1]} : vector<2x768xf32> to vector<2x64xf32>
    %20 = vector.shape_cast %19 : vector<2x64xf32> to vector<2x1x64xf32>
    %21 = vector.extract_strided_slice %14 {offsets = [0, 192], sizes = [2, 64], strides = [1, 1]} : vector<2x768xf32> to vector<2x64xf32>
    %22 = vector.shape_cast %21 : vector<2x64xf32> to vector<2x1x64xf32>
    %23 = vector.extract_strided_slice %14 {offsets = [0, 256], sizes = [2, 128], strides = [1, 1]} : vector<2x768xf32> to vector<2x128xf32>
    %24 = vector.shape_cast %23 : vector<2x128xf32> to vector<2x1x128xf32>
    %25 = vector.extract_strided_slice %14 {offsets = [0, 384], sizes = [2, 128], strides = [1, 1]} : vector<2x768xf32> to vector<2x128xf32>
    %26 = vector.shape_cast %25 : vector<2x128xf32> to vector<2x1x128xf32>
    %27 = vector.extract_strided_slice %14 {offsets = [0, 512], sizes = [2, 128], strides = [1, 1]} : vector<2x768xf32> to vector<2x128xf32>
    %28 = vector.shape_cast %27 : vector<2x128xf32> to vector<2x1x128xf32>
    %29 = vector.extract_strided_slice %14 {offsets = [0, 640], sizes = [2, 128], strides = [1, 1]} : vector<2x768xf32> to vector<2x128xf32>
    %30 = vector.shape_cast %29 : vector<2x128xf32> to vector<2x1x128xf32>
    %c0_14 = arith.constant 0 : index
    %c0_15 = arith.constant 0 : index
    %c0_16 = arith.constant 0 : index
    %31 = vector.load %arg1[%c0_14, %c0_15, %c0_16] : memref<2x16x64xf32, #tpu.memory_space<vmem>>, vector<2x16x64xf32>
    %32 = vector.broadcast %16 : vector<2x1x64xf32> to vector<2x16x64xf32>
    %33 = arith.mulf %32, %31 : vector<2x16x64xf32>
    %34 = vector.broadcast %18 : vector<2x1x64xf32> to vector<2x16x64xf32>
    %35 = arith.addf %33, %34 : vector<2x16x64xf32>
    %cst_17 = arith.constant 0.000000e+00 : f32
    %36 = vector.broadcast %cst_17 : f32 to vector<2x16x64xf32>
    %37 = arith.cmpf oge, %35, %36 : vector<2x16x64xf32>
    %cst_18 = arith.constant 2.000000e-01 : f32
    %38 = vector.broadcast %cst_18 : f32 to vector<2x16x64xf32>
    %39 = arith.mulf %38, %35 : vector<2x16x64xf32>
    %40 = arith.select %37, %35, %39 : vector<2x16x64xi1>, vector<2x16x64xf32>
    %41 = vector.broadcast %20 : vector<2x1x64xf32> to vector<2x16x64xf32>
    %42 = arith.mulf %41, %40 : vector<2x16x64xf32>
    %43 = vector.broadcast %22 : vector<2x1x64xf32> to vector<2x16x64xf32>
    %44 = arith.addf %42, %43 : vector<2x16x64xf32>
    %cst_19 = arith.constant 0.000000e+00 : f32
    %45 = vector.broadcast %cst_19 : f32 to vector<2x16x64xf32>
    %46 = arith.cmpf oge, %44, %45 : vector<2x16x64xf32>
    %cst_20 = arith.constant 2.000000e-01 : f32
    %47 = vector.broadcast %cst_20 : f32 to vector<2x16x64xf32>
    %48 = arith.mulf %47, %44 : vector<2x16x64xf32>
    %49 = arith.select %46, %44, %48 : vector<2x16x64xi1>, vector<2x16x64xf32>
    %cst_21 = arith.constant 0.000000e+00 : f32
    %50 = vector.broadcast %cst_21 : f32 to vector<2x18x64xf32>
    %c0_22 = arith.constant 0 : index
    %c0_23 = arith.constant 0 : index
    %c0_24 = arith.constant 0 : index
    %51 = vector.load %arg15[%c0_22, %c0_23, %c0_24] : memref<2x18x64xf32, #tpu.memory_space<vmem>>, vector<2x18x64xf32>
    tpu.vector_store %arg15[%c0_22, %c0_23, %c0_24], %50 {strides = array<i32>} : memref<2x18x64xf32, #tpu.memory_space<vmem>>, vector<2x18x64xf32>,
    %c0_25 = arith.constant 0 : index
    %c1 = arith.constant 1 : index
    %c0_26 = arith.constant 0 : index
    %52 = vector.load %arg15[%c0_25, %c1, %c0_26] : memref<2x18x64xf32, #tpu.memory_space<vmem>>, vector<2x16x64xf32>
    tpu.vector_store %arg15[%c0_25, %c1, %c0_26], %49 {strides = array<i32>} : memref<2x18x64xf32, #tpu.memory_space<vmem>>, vector<2x16x64xf32>,
    %c0_27 = arith.constant 0 : index
    %c0_28 = arith.constant 0 : index
    %c0_29 = arith.constant 0 : index
    %53 = vector.load %arg15[%c0_27, %c0_28, %c0_29] : memref<2x18x64xf32, #tpu.memory_space<vmem>>, vector<2x18x64xf32>
    %54 = vector.extract_strided_slice %53 {offsets = [0, 0, 0], sizes = [2, 16, 64], strides = [1, 1, 1]} : vector<2x18x64xf32> to vector<2x16x64xf32>
    %55 = vector.extract_strided_slice %53 {offsets = [0, 1, 0], sizes = [2, 16, 64], strides = [1, 1, 1]} : vector<2x18x64xf32> to vector<2x16x64xf32>
    %56 = vector.extract_strided_slice %53 {offsets = [0, 2, 0], sizes = [2, 16, 64], strides = [1, 1, 1]} : vector<2x18x64xf32> to vector<2x16x64xf32>
    %57 = tpu.concatenate %54, %55, %56 in 2 : vector<2x16x64xf32>, vector<2x16x64xf32>, vector<2x16x64xf32> -> vector<2x16x192xf32>
    %58 = vector.shape_cast %57 : vector<2x16x192xf32> to vector<32x192xf32>
    %c0_30 = arith.constant 0 : index
    %c0_31 = arith.constant 0 : index
    %59 = vector.load %arg7[%c0_30, %c0_31] : memref<192x128xf32, #tpu.memory_space<vmem>>, vector<192x128xf32>
    %cst_32 = arith.constant dense<0.000000e+00> : vector<32x128xf32>
    %60 = tpu.matmul %58, %59, %cst_32 {dimension_numbers = #tpu.dot_dimension_numbers<[1], [0], [0], [1], [0, 0, 1, 1], [], []>} : vector<32x192xf32>, vector<192x128xf32>, vector<32x128xf32> -> vector<32x128xf32>
    %c0_33 = arith.constant 0 : index
    %c0_34 = arith.constant 0 : index
    %61 = vector.load %arg8[%c0_33, %c0_34] : memref<1x128xf32, #tpu.memory_space<vmem>>, vector<1x128xf32>
    %62 = vector.broadcast %61 : vector<1x128xf32> to vector<32x128xf32>
    %63 = arith.addf %60, %62 : vector<32x128xf32>
    %64 = vector.shape_cast %63 : vector<32x128xf32> to vector<2x16x128xf32>
    %65 = vector.broadcast %24 : vector<2x1x128xf32> to vector<2x16x128xf32>
    %66 = arith.mulf %65, %64 : vector<2x16x128xf32>
    %67 = vector.broadcast %26 : vector<2x1x128xf32> to vector<2x16x128xf32>
    %68 = arith.addf %66, %67 : vector<2x16x128xf32>
    %cst_35 = arith.constant 0.000000e+00 : f32
    %69 = vector.broadcast %cst_35 : f32 to vector<2x16x128xf32>
    %70 = arith.cmpf oge, %68, %69 : vector<2x16x128xf32>
    %cst_36 = arith.constant 2.000000e-01 : f32
    %71 = vector.broadcast %cst_36 : f32 to vector<2x16x128xf32>
    %72 = arith.mulf %71, %68 : vector<2x16x128xf32>
    %73 = arith.select %70, %68, %72 : vector<2x16x128xi1>, vector<2x16x128xf32>
    %74 = vector.broadcast %28 : vector<2x1x128xf32> to vector<2x16x128xf32>
    %75 = arith.mulf %74, %73 : vector<2x16x128xf32>
    %76 = vector.broadcast %30 : vector<2x1x128xf32> to vector<2x16x128xf32>
    %77 = arith.addf %75, %76 : vector<2x16x128xf32>
    %cst_37 = arith.constant 0.000000e+00 : f32
    %78 = vector.broadcast %cst_37 : f32 to vector<2x16x128xf32>
    %79 = arith.cmpf oge, %77, %78 : vector<2x16x128xf32>
    %cst_38 = arith.constant 2.000000e-01 : f32
    %80 = vector.broadcast %cst_38 : f32 to vector<2x16x128xf32>
    %81 = arith.mulf %80, %77 : vector<2x16x128xf32>
    %82 = arith.select %79, %77, %81 : vector<2x16x128xi1>, vector<2x16x128xf32>
    %cst_39 = arith.constant 0.000000e+00 : f32
    %83 = vector.broadcast %cst_39 : f32 to vector<2x18x128xf32>
    %c0_40 = arith.constant 0 : index
    %c0_41 = arith.constant 0 : index
    %c0_42 = arith.constant 0 : index
    %84 = vector.load %arg16[%c0_40, %c0_41, %c0_42] : memref<2x18x128xf32, #tpu.memory_space<vmem>>, vector<2x18x128xf32>
    tpu.vector_store %arg16[%c0_40, %c0_41, %c0_42], %83 {strides = array<i32>} : memref<2x18x128xf32, #tpu.memory_space<vmem>>, vector<2x18x128xf32>,
    %c0_43 = arith.constant 0 : index
    %c1_44 = arith.constant 1 : index
    %c0_45 = arith.constant 0 : index
    %85 = vector.load %arg16[%c0_43, %c1_44, %c0_45] : memref<2x18x128xf32, #tpu.memory_space<vmem>>, vector<2x16x128xf32>
    tpu.vector_store %arg16[%c0_43, %c1_44, %c0_45], %82 {strides = array<i32>} : memref<2x18x128xf32, #tpu.memory_space<vmem>>, vector<2x16x128xf32>,
    %c0_46 = arith.constant 0 : index
    %c0_47 = arith.constant 0 : index
    %c0_48 = arith.constant 0 : index
    %86 = vector.load %arg16[%c0_46, %c0_47, %c0_48] : memref<2x18x128xf32, #tpu.memory_space<vmem>>, vector<2x18x128xf32>
    %87 = vector.extract_strided_slice %86 {offsets = [0, 0, 0], sizes = [2, 16, 128], strides = [1, 1, 1]} : vector<2x18x128xf32> to vector<2x16x128xf32>
    %88 = vector.extract_strided_slice %86 {offsets = [0, 1, 0], sizes = [2, 16, 128], strides = [1, 1, 1]} : vector<2x18x128xf32> to vector<2x16x128xf32>
    %89 = vector.extract_strided_slice %86 {offsets = [0, 2, 0], sizes = [2, 16, 128], strides = [1, 1, 1]} : vector<2x18x128xf32> to vector<2x16x128xf32>
    %90 = tpu.concatenate %87, %88, %89 in 2 : vector<2x16x128xf32>, vector<2x16x128xf32>, vector<2x16x128xf32> -> vector<2x16x384xf32>
    %91 = vector.shape_cast %90 : vector<2x16x384xf32> to vector<32x384xf32>
    %c0_49 = arith.constant 0 : index
    %c0_50 = arith.constant 0 : index
    %92 = vector.load %arg9[%c0_49, %c0_50] : memref<384x128xf32, #tpu.memory_space<vmem>>, vector<384x128xf32>
    %cst_51 = arith.constant dense<0.000000e+00> : vector<32x128xf32>
    %93 = tpu.matmul %91, %92, %cst_51 {dimension_numbers = #tpu.dot_dimension_numbers<[1], [0], [0], [1], [0, 0, 1, 1], [], []>} : vector<32x384xf32>, vector<384x128xf32>, vector<32x128xf32> -> vector<32x128xf32>
    %c0_52 = arith.constant 0 : index
    %c0_53 = arith.constant 0 : index
    %94 = vector.load %arg10[%c0_52, %c0_53] : memref<1x128xf32, #tpu.memory_space<vmem>>, vector<1x128xf32>
    %95 = vector.broadcast %94 : vector<1x128xf32> to vector<32x128xf32>
    %96 = arith.addf %93, %95 : vector<32x128xf32>
    %97 = vector.shape_cast %31 : vector<2x16x64xf32> to vector<32x64xf32>
    %c0_54 = arith.constant 0 : index
    %c0_55 = arith.constant 0 : index
    %98 = vector.load %arg11[%c0_54, %c0_55] : memref<64x128xf32, #tpu.memory_space<vmem>>, vector<64x128xf32>
    %cst_56 = arith.constant dense<0.000000e+00> : vector<32x128xf32>
    %99 = tpu.matmul %97, %98, %cst_56 {dimension_numbers = #tpu.dot_dimension_numbers<[1], [0], [0], [1], [0, 0, 1, 1], [], []>} : vector<32x64xf32>, vector<64x128xf32>, vector<32x128xf32> -> vector<32x128xf32>
    %c0_57 = arith.constant 0 : index
    %c0_58 = arith.constant 0 : index
    %100 = vector.load %arg12[%c0_57, %c0_58] : memref<1x128xf32, #tpu.memory_space<vmem>>, vector<1x128xf32>
    %101 = vector.broadcast %100 : vector<1x128xf32> to vector<32x128xf32>
    %102 = arith.addf %99, %101 : vector<32x128xf32>
    %c0_59 = arith.constant 0 : index
    %c0_60 = arith.constant 0 : index
    %103 = memref.load %arg13[%c0_59, %c0_60] : memref<1x1xf32, #tpu.memory_space<smem>>
    %104 = vector.broadcast %103 : f32 to vector<32x128xf32>
    %105 = arith.mulf %104, %96 : vector<32x128xf32>
    %106 = arith.addf %102, %105 : vector<32x128xf32>
    %c0_61 = arith.constant 0 : index
    %c0_62 = arith.constant 0 : index
    %107 = vector.load %arg14[%c0_61, %c0_62] : memref<32x128xf32, #tpu.memory_space<vmem>>, vector<32x128xf32>
    tpu.vector_store %arg14[%c0_61, %c0_62], %106 {strides = array<i32>} : memref<32x128xf32, #tpu.memory_space<vmem>>, vector<32x128xf32>,
    return
  }
}

</mosaic_0001>

<llo_original>
// kernel: g_block_forward.1
$region0: #{g_block_forward.1}
  #allocation0 [shape = 'u32[]', space=smem, size = 0x4, offset = 0x4, fixed_abs, tag = 'smem constant byte address 0x4 - core index']
  #allocation1 [shape = 'u32[144,128]{1,0:T(1,128)}', space=vmem, size = 0x12000, scoped, tag = 'internal scratch']
  #allocation2 [shape = 'f32[2,18,64]{2,1,0:T(8,128)}', space=vmem, size = 0x6000, scoped, tag = 'scratch operand']
  #allocation3 [shape = 'f32[2,18,128]{2,1,0:T(8,128)}', space=vmem, size = 0x6000, scoped, tag = 'scratch operand']
  #allocation4 [shape = 'f32[1,1]{1,0:T(1,128)S(6)}', space=smem, size = 0x200, scoped, tag = 'scoped memory for g_block_forward.1']
  %s0 = inlined_call_operand.hbm [shape: f32[2,512], index: 0, kind: input, shape index: {}]
  %s1 = inlined_call_operand.vmem [shape: f32[2,16,64], index: 1, kind: input, shape index: {}]
  %s2 = inlined_call_operand.hbm [shape: f32[512,2048], index: 2, kind: input, shape index: {}]
  %s3 = inlined_call_operand.hbm [shape: f32[1,2048], index: 3, kind: input, shape index: {}]
  %s4 = inlined_call_operand.vmem [shape: f32[2048,48], index: 4, kind: input, shape index: {}]
  %s5 = inlined_call_operand.hbm [shape: f32[1,48], index: 5, kind: input, shape index: {}]
  %s6 = inlined_call_operand.hbm [shape: f32[48,768], index: 6, kind: input, shape index: {}]
  %s7 = inlined_call_operand.hbm [shape: f32[192,128], index: 7, kind: input, shape index: {}]
  %s8 = inlined_call_operand.hbm [shape: f32[1,128], index: 8, kind: input, shape index: {}]
  %s9 = inlined_call_operand.hbm [shape: f32[384,128], index: 9, kind: input, shape index: {}]
  %s10 = inlined_call_operand.hbm [shape: f32[1,128], index: 10, kind: input, shape index: {}]
  %s11 = inlined_call_operand.hbm [shape: f32[64,128], index: 11, kind: input, shape index: {}]
  %s12 = inlined_call_operand.hbm [shape: f32[1,128], index: 12, kind: input, shape index: {}]
  %s13 = inlined_call_operand.<no memory space> [shape: f32[1,1], index: 13, kind: input, shape index: {}]
  %s14 = inlined_call_operand.vmem [shape: f32[32,128], index: 14, kind: output, shape index: {}]
  %s15 = sld [smem:[#allocation0]]
  $region110: #{g_block_forward.1} parent=0
    _
  %s17 = ssub.s32 1, %s15
  %s18 = scalar_select 0, %s17, %s15
  %19 = sst [smem:[#allocation4]] %s13
  $region1: #{g_block_forward.1} parent=0
    #allocation5 [shape = 'u8[4096]{0}', space=vmem, size = 0x1000, scoped, tag = 'input window, operand 0, single buffered']
    #allocation6 [shape = 's32[1]{0}', space=sflag, size = 0x4, scoped, tag = 'scoped memory for g_block_forward.1']
    #allocation7 [shape = 'u8[4194304]{0}', space=vmem, size = 0x400000, scoped, tag = 'input window, operand 2, single buffered']
    #allocation8 [shape = 's32[1]{0}', space=sflag, size = 0x4, scoped, tag = 'scoped memory for g_block_forward.1']
    #allocation9 [shape = 'u8[8192]{0}', space=vmem, size = 0x2000, scoped, tag = 'input window, operand 3, single buffered']
    #allocation10 [shape = 'u8[512]{0}', space=vmem, size = 0x400, scoped, tag = 'input window, operand 5, single buffered']
    #allocation11 [shape = 's32[1]{0}', space=sflag, size = 0x4, scoped, tag = 'scoped memory for g_block_forward.1']
    #allocation12 [shape = 'u8[147456]{0}', space=vmem, size = 0x24000, scoped, tag = 'input window, operand 6, single buffered']
    #allocation13 [shape = 'u8[98304]{0}', space=vmem, size = 0x18000, scoped, tag = 'input window, operand 7, single buffered']
    #allocation14 [shape = 's32[1]{0}', space=sflag, size = 0x4, scoped, tag = 'scoped memory for g_block_forward.1']
    #allocation15 [shape = 'u8[512]{0}', space=vmem, size = 0x400, scoped, tag = 'input window, operand 8, single buffered']
    #allocation16 [shape = 'u8[196608]{0}', space=vmem, size = 0x30000, scoped, tag = 'input window, operand 9, single buffered']
    #allocation17 [shape = 's32[1]{0}', space=sflag, size = 0x4, scoped, tag = 'scoped memory for g_block_forward.1']
    #allocation18 [shape = 'u8[512]{0}', space=vmem, size = 0x400, scoped, tag = 'input window, operand 10, single buffered']
    #allocation19 [shape = 'u8[32768]{0}', space=vmem, size = 0x8000, scoped, tag = 'input window, operand 11, single buffered']
    #allocation20 [shape = 's32[1]{0}', space=sflag, size = 0x4, scoped, tag = 'scoped memory for g_block_forward.1']
    #allocation21 [shape = 'u8[512]{0}', space=vmem, size = 0x400, scoped, tag = 'input window, operand 12, single buffered']
    %20 = vsyncpa [#allocation6], 0
    %21 = vsyncpa [#allocation8], 0
    %22 = vsyncpa [#allocation11], 0
    %23 = vsyncpa [#allocation14], 0
    %24 = vsyncpa [#allocation17], 0
    %25 = vsyncpa [#allocation20], 0
    // Predicated region
    $region2: #{g_block_forward.1} parent=1 // pred_check
      _
    $region3: #{g_block_forward.1} parent=1 // pred_check_branch
      %27 = sbr.rel (0) target = $region5
    $region4: #{g_block_forward.1} parent=1 // pred_region
      %s29 = ssub.s32 128, 128
      %30 = vsyncadd [#allocation6], %s29
      %s32 = sshll.u32 [#allocation5], 4
      %s33 = int_to_ptr.vmem [resolvable:$true] %s32
      %35 = dma.hbm_to_vmem [thread:$0]  %s0, 128, %s33, [#allocation6]
    $region5: #{g_block_forward.1} parent=1 // pred_fallthru
      _
    // Predicated region
    $region6: #{g_block_forward.1} parent=1 // pred_check
      _
    $region7: #{g_block_forward.1} parent=1 // pred_check_branch
      %37 = sbr.rel (0) target = $region9
    $region8: #{g_block_forward.1} parent=1 // pred_region
      _
    $region9: #{g_block_forward.1} parent=1 // pred_fallthru
      _
    // Predicated region
    $region10: #{g_block_forward.1} parent=1 // pred_check
      _
    $region11: #{g_block_forward.1} parent=1 // pred_check_branch
      %39 = sbr.rel (0) target = $region13
    $region12: #{g_block_forward.1} parent=1 // pred_region
      %s41 = ssub.s32 131072, 131072
      %42 = vsyncadd [#allocation8], %s41
      %s43 = sshll.u32 [#allocation7], 4
      %s44 = int_to_ptr.vmem [resolvable:$true] %s43
      %49 = dma.hbm_to_vmem [thread:$0]  %s2, 131072, %s44, [#allocation8], 2048, 2048, 128
    $region13: #{g_block_forward.1} parent=1 // pred_fallthru
      _
    // Predicated region
    $region14: #{g_block_forward.1} parent=1 // pred_check
      _
    $region15: #{g_block_forward.1} parent=1 // pred_check_branch
      %51 = sbr.rel (0) target = $region17
    $region16: #{g_block_forward.1} parent=1 // pred_region
      %s53 = ssub.s32 256, 256
      %54 = vsyncadd [#allocation8], %s53
      %s56 = sshll.u32 [#allocation9], 4
      %s57 = int_to_ptr.vmem [resolvable:$true] %s56
      %59 = dma.hbm_to_vmem [thread:$0]  %s3, 256, %s57, [#allocation8]
    $region17: #{g_block_forward.1} parent=1 // pred_fallthru
      _
    // Predicated region
    $region18: #{g_block_forward.1} parent=1 // pred_check
      _
    $region19: #{g_block_forward.1} parent=1 // pred_check_branch
      %61 = sbr.rel (0) target = $region21
    $region20: #{g_block_forward.1} parent=1 // pred_region
      _
    $region21: #{g_block_forward.1} parent=1 // pred_fallthru
      _
    // Predicated region
    $region22: #{g_block_forward.1} parent=1 // pred_check
      _
    $region23: #{g_block_forward.1} parent=1 // pred_check_branch
      %63 = sbr.rel (0) target = $region25
    $region24: #{g_block_forward.1} parent=1 // pred_region
      %s65 = ssub.s32 16, 16
      %66 = vsyncadd [#allocation11], %s65
      %s68 = sshll.u32 [#allocation10], 4
      %s69 = int_to_ptr.vmem [resolvable:$true] %s68
      %71 = dma.hbm_to_vmem [thread:$0]  %s5, 16, %s69, [#allocation11]
    $region25: #{g_block_forward.1} parent=1 // pred_fallthru
      _
    // Predicated region
    $region26: #{g_block_forward.1} parent=1 // pred_check
      _
    $region27: #{g_block_forward.1} parent=1 // pred_check_branch
      %73 = sbr.rel (0) target = $region29
    $region28: #{g_block_forward.1} parent=1 // pred_region
      %s75 = ssub.s32 4608, 4608
      %76 = vsyncadd [#allocation11], %s75
      %s77 = sshll.u32 [#allocation12], 4
      %s78 = int_to_ptr.vmem [resolvable:$true] %s77
      %83 = dma.hbm_to_vmem [thread:$0]  %s6, 4608, %s78, [#allocation11], 768, 768, 48
    $region29: #{g_block_forward.1} parent=1 // pred_fallthru
      _
    // Predicated region
    $region30: #{g_block_forward.1} parent=1 // pred_check
      _
    $region31: #{g_block_forward.1} parent=1 // pred_check_branch
      %85 = sbr.rel (0) target = $region33
    $region32: #{g_block_forward.1} parent=1 // pred_region
      %s87 = ssub.s32 3072, 3072
      %88 = vsyncadd [#allocation14], %s87
      %s89 = sshll.u32 [#allocation13], 4
      %s90 = int_to_ptr.vmem [resolvable:$true] %s89
      %95 = dma.hbm_to_vmem [thread:$0]  %s7, 3072, %s90, [#allocation14], 128, 128, 8
    $region33: #{g_block_forward.1} parent=1 // pred_fallthru
      _
    // Predicated region
    $region34: #{g_block_forward.1} parent=1 // pred_check
      _
    $region35: #{g_block_forward.1} parent=1 // pred_check_branch
      %97 = sbr.rel (0) target = $region37
    $region36: #{g_block_forward.1} parent=1 // pred_region
      %s99 = ssub.s32 16, 16
      %100 = vsyncadd [#allocation14], %s99
      %s102 = sshll.u32 [#allocation15], 4
      %s103 = int_to_ptr.vmem [resolvable:$true] %s102
      %105 = dma.hbm_to_vmem [thread:$0]  %s8, 16, %s103, [#allocation14]
    $region37: #{g_block_forward.1} parent=1 // pred_fallthru
      _
    // Predicated region
    $region38: #{g_block_forward.1} parent=1 // pred_check
      _
    $region39: #{g_block_forward.1} parent=1 // pred_check_branch
      %107 = sbr.rel (0) target = $region41
    $region40: #{g_block_forward.1} parent=1 // pred_region
      %s109 = ssub.s32 6144, 6144
      %110 = vsyncadd [#allocation17], %s109
      %s111 = sshll.u32 [#allocation16], 4
      %s112 = int_to_ptr.vmem [resolvable:$true] %s111
      %117 = dma.hbm_to_vmem [thread:$0]  %s9, 6144, %s112, [#allocation17], 128, 128, 8
    $region41: #{g_block_forward.1} parent=1 // pred_fallthru
      _
    // Predicated region
    $region42: #{g_block_forward.1} parent=1 // pred_check
      _
    $region43: #{g_block_forward.1} parent=1 // pred_check_branch
      %119 = sbr.rel (0) target = $region45
    $region44: #{g_block_forward.1} parent=1 // pred_region
      %s121 = ssub.s32 16, 16
      %122 = vsyncadd [#allocation17], %s121
      %s124 = sshll.u32 [#allocation18], 4
      %s125 = int_to_ptr.vmem [resolvable:$true] %s124
      %127 = dma.hbm_to_vmem [thread:$0]  %s10, 16, %s125, [#allocation17]
    $region45: #{g_block_forward.1} parent=1 // pred_fallthru
      _
    // Predicated region
    $region46: #{g_block_forward.1} parent=1 // pred_check
      _
    $region47: #{g_block_forward.1} parent=1 // pred_check_branch
      %129 = sbr.rel (0) target = $region49
    $region48: #{g_block_forward.1} parent=1 // pred_region
      %s131 = ssub.s32 1024, 1024
      %132 = vsyncadd [#allocation20], %s131
      %s133 = sshll.u32 [#allocation19], 4
      %s134 = int_to_ptr.vmem [resolvable:$true] %s133
      %139 = dma.hbm_to_vmem [thread:$0]  %s11, 1024, %s134, [#allocation20], 128, 128, 8
    $region49: #{g_block_forward.1} parent=1 // pred_fallthru
      _
    // Predicated region
    $region50: #{g_block_forward.1} parent=1 // pred_check
      _
    $region51: #{g_block_forward.1} parent=1 // pred_check_branch
      %141 = sbr.rel (0) target = $region53
    $region52: #{g_block_forward.1} parent=1 // pred_region
      %s143 = ssub.s32 16, 16
      %144 = vsyncadd [#allocation20], %s143
      %s146 = sshll.u32 [#allocation21], 4
      %s147 = int_to_ptr.vmem [resolvable:$true] %s146
      %149 = dma.hbm_to_vmem [thread:$0]  %s12, 16, %s147, [#allocation20]
    $region53: #{g_block_forward.1} parent=1 // pred_fallthru
      _
    // Predicated region
    $region54: #{g_block_forward.1} parent=1 // pred_check
      _
    $region55: #{g_block_forward.1} parent=1 // pred_check_branch
      %151 = sbr.rel (0) target = $region57
    $region56: #{g_block_forward.1} parent=1 // pred_region
      _
    $region57: #{g_block_forward.1} parent=1 // pred_fallthru
      _
    // Predicated region
    $region58: #{g_block_forward.1} parent=1 // pred_check
      _
    $region59: #{g_block_forward.1} parent=1 // pred_check_branch
      %153 = sbr.rel (0) target = $region61
    $region60: #{g_block_forward.1} parent=1 // pred_region
      %154 = dma.done [#allocation6], 128
    $region61: #{g_block_forward.1} parent=1 // pred_fallthru
      _
    // Predicated region
    $region62: #{g_block_forward.1} parent=1 // pred_check
      _
    $region63: #{g_block_forward.1} parent=1 // pred_check_branch
      %156 = sbr.rel (0) target = $region65
    $region64: #{g_block_forward.1} parent=1 // pred_region
      %157 = dma.done [#allocation8], 131072
    $region65: #{g_block_forward.1} parent=1 // pred_fallthru
      _
    // Predicated region
    $region66: #{g_block_forward.1} parent=1 // pred_check
      _
    $region67: #{g_block_forward.1} parent=1 // pred_check_branch
      %159 = sbr.rel (0) target = $region69
    $region68: #{g_block_forward.1} parent=1 // pred_region
      %160 = dma.done [#allocation8], 256
    $region69: #{g_block_forward.1} parent=1 // pred_fallthru
      _
    // Predicated region
    $region70: #{g_block_forward.1} parent=1 // pred_check
      _
    $region71: #{g_block_forward.1} parent=1 // pred_check_branch
      %162 = sbr.rel (0) target = $region73
    $region72: #{g_block_forward.1} parent=1 // pred_region
      %163 = dma.done [#allocation11], 16
    $region73: #{g_block_forward.1} parent=1 // pred_fallthru
      _
    // Predicated region
    $region74: #{g_block_forward.1} parent=1 // pred_check
      _
    $region75: #{g_block_forward.1} parent=1 // pred_check_branch
      %165 = sbr.rel (0) target = $region77
    $region76: #{g_block_forward.1} parent=1 // pred_region
      %166 = dma.done [#allocation11], 4608
    $region77: #{g_block_forward.1} parent=1 // pred_fallthru
      _
    // Predicated region
    $region78: #{g_block_forward.1} parent=1 // pred_check
      _
    $region79: #{g_block_forward.1} parent=1 // pred_check_branch
      %168 = sbr.rel (0) target = $region81
    $region80: #{g_block_forward.1} parent=1 // pred_region
      %169 = dma.done [#allocation14], 3072
    $region81: #{g_block_forward.1} parent=1 // pred_fallthru
      _
    // Predicated region
    $region82: #{g_block_forward.1} parent=1 // pred_check
      _
    $region83: #{g_block_forward.1} parent=1 // pred_check_branch
      %171 = sbr.rel (0) target = $region85
    $region84: #{g_block_forward.1} parent=1 // pred_region
      %172 = dma.done [#allocation14], 16
    $region85: #{g_block_forward.1} parent=1 // pred_fallthru
      _
    // Predicated region
    $region86: #{g_block_forward.1} parent=1 // pred_check
      _
    $region87: #{g_block_forward.1} parent=1 // pred_check_branch
      %174 = sbr.rel (0) target = $region89
    $region88: #{g_block_forward.1} parent=1 // pred_region
      %175 = dma.done [#allocation17], 6144
    $region89: #{g_block_forward.1} parent=1 // pred_fallthru
      _
    // Predicated region
    $region90: #{g_block_forward.1} parent=1 // pred_check
      _
    $region91: #{g_block_forward.1} parent=1 // pred_check_branch
      %177 = sbr.rel (0) target = $region93
    $region92: #{g_block_forward.1} parent=1 // pred_region
      %178 = dma.done [#allocation17], 16
    $region93: #{g_block_forward.1} parent=1 // pred_fallthru
      _
    // Predicated region
    $region94: #{g_block_forward.1} parent=1 // pred_check
      _
    $region95: #{g_block_forward.1} parent=1 // pred_check_branch
      %180 = sbr.rel (0) target = $region97
    $region96: #{g_block_forward.1} parent=1 // pred_region
      %181 = dma.done [#allocation20], 1024
    $region97: #{g_block_forward.1} parent=1 // pred_fallthru
      _
    // Predicated region
    $region98: #{g_block_forward.1} parent=1 // pred_check
      _
    $region99: #{g_block_forward.1} parent=1 // pred_check_branch
      %183 = sbr.rel (0) target = $region101
    $region100: #{g_block_forward.1} parent=1 // pred_region
      %184 = dma.done [#allocation20], 16
    $region101: #{g_block_forward.1} parent=1 // pred_fallthru
      _
    %v185 = vld [vmem:[#allocation5] sm:$0xff]
    %v186 = vld [vmem:[#allocation7] sm:$0xff]
    %v187 = vld [vmem:[#allocation7 + $0x8] sm:$0xff]
    %v188 = vld [vmem:[#allocation7 + $0x10] sm:$0xff]
    %v189 = vld [vmem:[#allocation7 + $0x18] sm:$0xff]
    %v190 = vld [vmem:[#allocation7 + $0x20] sm:$0xff]
    %v191 = vld [vmem:[#allocation7 + $0x28] sm:$0xff]
    %v192 = vld [vmem:[#allocation7 + $0x30] sm:$0xff]
    %v193 = vld [vmem:[#allocation7 + $0x38] sm:$0xff]
    %v194 = vld [vmem:[#allocation7 + $0x40] sm:$0xff]
    %v195 = vld [vmem:[#allocation7 + $0x48] sm:$0xff]
    %v196 = vld [vmem:[#allocation7 + $0x50] sm:$0xff]
    %v197 = vld [vmem:[#allocation7 + $0x58] sm:$0xff]
    %v198 = vld [vmem:[#allocation7 + $0x60] sm:$0xff]
    %v199 = vld [vmem:[#allocation7 + $0x68] sm:$0xff]
    %v200 = vld [vmem:[#allocation7 + $0x70] sm:$0xff]
    %v201 = vld [vmem:[#allocation7 + $0x78] sm:$0xff]
    %v202 = vld [vmem:[#allocation7 + $0x80] sm:$0xff]
    %v203 = vld [vmem:[#allocation7 + $0x88] sm:$0xff]
    %v204 = vld [vmem:[#allocation7 + $0x90] sm:$0xff]
    %v205 = vld [vmem:[#allocation7 + $0x98] sm:$0xff]
    %v206 = vld [vmem:[#allocation7 + $0xa0] sm:$0xff]
    %v207 = vld [vmem:[#allocation7 + $0xa8] sm:$0xff]
    %v208 = vld [vmem:[#allocation7 + $0xb0] sm:$0xff]
    %v209 = vld [vmem:[#allocation7 + $0xb8] sm:$0xff]
    %v210 = vld [vmem:[#allocation7 + $0xc0] sm:$0xff]
    %v211 = vld [vmem:[#allocation7 + $0xc8] sm:$0xff]
    %v212 = vld [vmem:[#allocation7 + $0xd0] sm:$0xff]
    %v213 = vld [vmem:[#allocation7 + $0xd8] sm:$0xff]
    %v214 = vld [vmem:[#allocation7 + $0xe0] sm:$0xff]
    %v215 = vld [vmem:[#allocation7 + $0xe8] sm:$0xff]
    %v216 = vld [vmem:[#allocation7 + $0xf0] sm:$0xff]
    %v217 = vld [vmem:[#allocation7 + $0xf8] sm:$0xff]
    %v218 = vld [vmem:[#allocation7 + $0x100] sm:$0xff]
    %v219 = vld [vmem:[#allocation7 + $0x108] sm:$0xff]
    %v220 = vld [vmem:[#allocation7 + $0x110] sm:$0xff]
    %v221 = vld [vmem:[#allocation7 + $0x118] sm:$0xff]
    %v222 = vld [vmem:[#allocation7 + $0x120] sm:$0xff]
    %v223 = vld [vmem:[#allocation7 + $0x128] sm:$0xff]
    %v224 = vld [vmem:[#allocation7 + $0x130] sm:$0xff]
    %v225 = vld [vmem:[#allocation7 + $0x138] sm:$0xff]
    %v226 = vld [vmem:[#allocation7 + $0x140] sm:$0xff]
    %v227 = vld [vmem:[#allocation7 + $0x148] sm:$0xff]
    %v228 = vld [vmem:[#allocation7 + $0x150] sm:$0xff]
    %v229 = vld [vmem:[#allocation7 + $0x158] sm:$0xff]
    %v230 = vld [vmem:[#allocation7 + $0x160] sm:$0xff]
    %v231 = vld [vmem:[#allocation7 + $0x168] sm:$0xff]
    %v232 = vld [vmem:[#allocation7 + $0x170] sm:$0xff]
    %v233 = vld [vmem:[#allocation7 + $0x178] sm:$0xff]
    %v234 = vld [vmem:[#allocation7 + $0x180] sm:$0xff]
    %v235 = vld [vmem:[#allocation7 + $0x188] sm:$0xff]
    %v236 = vld [vmem:[#allocation7 + $0x190] sm:$0xff]
    %v237 = vld [vmem:[#allocation7 + $0x198] sm:$0xff]
    %v238 = vld [vmem:[#allocation7 + $0x1a0] sm:$0xff]
    %v239 = vld [vmem:[#allocation7 + $0x1a8] sm:$0xff]
    %v240 = vld [vmem:[#allocation7 + $0x1b0] sm:$0xff]
    %v241 = vld [vmem:[#allocation7 + $0x1b8] sm:$0xff]
    %v242 = vld [vmem:[#allocation7 + $0x1c0] sm:$0xff]
    %v243 = vld [vmem:[#allocation7 + $0x1c8] sm:$0xff]
    %v244 = vld [vmem:[#allocation7 + $0x1d0] sm:$0xff]
    %v245 = vld [vmem:[#allocation7 + $0x1d8] sm:$0xff]
    %v246 = vld [vmem:[#allocation7 + $0x1e0] sm:$0xff]
    %v247 = vld [vmem:[#allocation7 + $0x1e8] sm:$0xff]
    %v248 = vld [vmem:[#allocation7 + $0x1f0] sm:$0xff]
    %v249 = vld [vmem:[#allocation7 + $0x1f8] sm:$0xff]
    %v250 = vld [vmem:[#allocation7 + $0x200] sm:$0xff]
    %v251 = vld [vmem:[#allocation7 + $0x208] sm:$0xff]
    %v252 = vld [vmem:[#allocation7 + $0x210] sm:$0xff]
    %v253 = vld [vmem:[#allocation7 + $0x218] sm:$0xff]
    %v254 = vld [vmem:[#allocation7 + $0x220] sm:$0xff]
    %v255 = vld [vmem:[#allocation7 + $0x228] sm:$0xff]
    %v256 = vld [vmem:[#allocation7 + $0x230] sm:$0xff]
    %v257 = vld [vmem:[#allocation7 + $0x238] sm:$0xff]
    %v258 = vld [vmem:[#allocation7 + $0x240] sm:$0xff]
    %v259 = vld [vmem:[#allocation7 + $0x248] sm:$0xff]
    %v260 = vld [vmem:[#allocation7 + $0x250] sm:$0xff]
    %v261 = vld [vmem:[#allocation7 + $0x258] sm:$0xff]
    %v262 = vld [vmem:[#allocation7 + $0x260] sm:$0xff]
    %v263 = vld [vmem:[#allocation7 + $0x268] sm:$0xff]
    %v264 = vld [vmem:[#allocation7 + $0x270] sm:$0xff]
    %v265 = vld [vmem:[#allocation7 + $0x278] sm:$0xff]
    %v266 = vld [vmem:[#allocation7 + $0x280] sm:$0xff]
    %v267 = vld [vmem:[#allocation7 + $0x288] sm:$0xff]
    %v268 = vld [vmem:[#allocation7 + $0x290] sm:$0xff]
    %v269 = vld [vmem:[#allocation7 + $0x298] sm:$0xff]
    %v270 = vld [vmem:[#allocation7 + $0x2a0] sm:$0xff]
    %v271 = vld [vmem:[#allocation7 + $0x2a8] sm:$0xff]
    %v272 = vld [vmem:[#allocation7 + $0x2b0] sm:$0xff]
    %v273 = vld [vmem:[#allocation7 + $0x2b8] sm:$0xff]
    %v274 = vld [vmem:[#allocation7 + $0x2c0] sm:$0xff]
    %v275 = vld [vmem:[#allocation7 + $0x2c8] sm:$0xff]
    %v276 = vld [vmem:[#allocation7 + $0x2d0] sm:$0xff]
    %v277 = vld [vmem:[#allocation7 + $0x2d8] sm:$0xff]
    %v278 = vld [vmem:[#allocation7 + $0x2e0] sm:$0xff]
    %v279 = vld [vmem:[#allocation7 + $0x2e8] sm:$0xff]
    %v280 = vld [vmem:[#allocation7 + $0x2f0] sm:$0xff]
    %v281 = vld [vmem:[#allocation7 + $0x2f8] sm:$0xff]
    %v282 = vld [vmem:[#allocation7 + $0x300] sm:$0xff]
    %v283 = vld [vmem:[#allocation7 + $0x308] sm:$0xff]
    %v284 = vld [vmem:[#allocation7 + $0x310] sm:$0xff]
    %v285 = vld [vmem:[#allocation7 + $0x318] sm:$0xff]
    %v286 = vld [vmem:[#allocation7 + $0x320] sm:$0xff]
    %v287 = vld [vmem:[#allocation7 + $0x328] sm:$0xff]
    %v288 = vld [vmem:[#allocation7 + $0x330] sm:$0xff]
    %v289 = vld [vmem:[#allocation7 + $0x338] sm:$0xff]
    %v290 = vld [vmem:[#allocation7 + $0x340] sm:$0xff]
    %v291 = vld [vmem:[#allocation7 + $0x348] sm:$0xff]
    %v292 = vld [vmem:[#allocation7 + $0x350] sm:$0xff]
    %v293 = vld [vmem:[#allocation7 + $0x358] sm:$0xff]
    %v294 = vld [vmem:[#allocation7 + $0x360] sm:$0xff]
    %v295 = vld [vmem:[#allocation7 + $0x368] sm:$0xff]
    %v296 = vld [vmem:[#allocation7 + $0x370] sm:$0xff]
    %v297 = vld [vmem:[#allocation7 + $0x378] sm:$0xff]
    %v298 = vld [vmem:[#allocation7 + $0x380] sm:$0xff]
    %v299 = vld [vmem:[#allocation7 + $0x388] sm:$0xff]
    %v300 = vld [vmem:[#allocation7 + $0x390] sm:$0xff]
    %v301 = vld [vmem:[#allocation7 + $0x398] sm:$0xff]
    %v302 = vld [vmem:[#allocation7 + $0x3a0] sm:$0xff]
    %v303 = vld [vmem:[#allocation7 + $0x3a8] sm:$0xff]
    %v304 = vld [vmem:[#allocation7 + $0x3b0] sm:$0xff]
    %v305 = vld [vmem:[#allocation7 + $0x3b8] sm:$0xff]
    %v306 = vld [vmem:[#allocation7 + $0x3c0] sm:$0xff]
    %v307 = vld [vmem:[#allocation7 + $0x3c8] sm:$0xff]
    %v308 = vld [vmem:[#allocation7 + $0x3d0] sm:$0xff]
    %v309 = vld [vmem:[#allocation7 + $0x3d8] sm:$0xff]
    %v310 = vld [vmem:[#allocation7 + $0x3e0] sm:$0xff]
    %v311 = vld [vmem:[#allocation7 + $0x3e8] sm:$0xff]
    %v312 = vld [vmem:[#allocation7 + $0x3f0] sm:$0xff]
    %v313 = vld [vmem:[#allocation7 + $0x3f8] sm:$0xff]
    %v314 = vld [vmem:[#allocation7 + $0x400] sm:$0xff]
    %v315 = vld [vmem:[#allocation7 + $0x408] sm:$0xff]
    %v316 = vld [vmem:[#allocation7 + $0x410] sm:$0xff]
    %v317 = vld [vmem:[#allocation7 + $0x418] sm:$0xff]
    %v318 = vld [vmem:[#allocation7 + $0x420] sm:$0xff]
    %v319 = vld [vmem:[#allocation7 + $0x428] sm:$0xff]
    %v320 = vld [vmem:[#allocation7 + $0x430] sm:$0xff]
    %v321 = vld [vmem:[#allocation7 + $0x438] sm:$0xff]
    %v322 = vld [vmem:[#allocation7 + $0x440] sm:$0xff]
    %v323 = vld [vmem:[#allocation7 + $0x448] sm:$0xff]
    %v324 = vld [vmem:[#allocation7 + $0x450] sm:$0xff]
    %v325 = vld [vmem:[#allocation7 + $0x458] sm:$0xff]
    %v326 = vld [vmem:[#allocation7 + $0x460] sm:$0xff]
    %v327 = vld [vmem:[#allocation7 + $0x468] sm:$0xff]
    %v328 = vld [vmem:[#allocation7 + $0x470] sm:$0xff]
    %v329 = vld [vmem:[#allocation7 + $0x478] sm:$0xff]
    %v330 = vld [vmem:[#allocation7 + $0x480] sm:$0xff]
    %v331 = vld [vmem:[#allocation7 + $0x488] sm:$0xff]
    %v332 = vld [vmem:[#allocation7 + $0x490] sm:$0xff]
    %v333 = vld [vmem:[#allocation7 + $0x498] sm:$0xff]
    %v334 = vld [vmem:[#allocation7 + $0x4a0] sm:$0xff]
    %v335 = vld [vmem:[#allocation7 + $0x4a8] sm:$0xff]
    %v336 = vld [vmem:[#allocation7 + $0x4b0] sm:$0xff]
    %v337 = vld [vmem:[#allocation7 + $0x4b8] sm:$0xff]
    %v338 = vld [vmem:[#allocation7 + $0x4c0] sm:$0xff]
    %v339 = vld [vmem:[#allocation7 + $0x4c8] sm:$0xff]
    %v340 = vld [vmem:[#allocation7 + $0x4d0] sm:$0xff]
    %v341 = vld [vmem:[#allocation7 + $0x4d8] sm:$0xff]
    %v342 = vld [vmem:[#allocation7 + $0x4e0] sm:$0xff]
    %v343 = vld [vmem:[#allocation7 + $0x4e8] sm:$0xff]
    %v344 = vld [vmem:[#allocation7 + $0x4f0] sm:$0xff]
    %v345 = vld [vmem:[#allocation7 + $0x4f8] sm:$0xff]
    %v346 = vld [vmem:[#allocation7 + $0x500] sm:$0xff]
    %v347 = vld [vmem:[#allocation7 + $0x508] sm:$0xff]
    %v348 = vld [vmem:[#allocation7 + $0x510] sm:$0xff]
    %v349 = vld [vmem:[#allocation7 + $0x518] sm:$0xff]
    %v350 = vld [vmem:[#allocation7 + $0x520] sm:$0xff]
    %v351 = vld [vmem:[#allocation7 + $0x528] sm:$0xff]
    %v352 = vld [vmem:[#allocation7 + $0x530] sm:$0xff]
    %v353 = vld [vmem:[#allocation7 + $0x538] sm:$0xff]
    %v354 = vld [vmem:[#allocation7 + $0x540] sm:$0xff]
    %v355 = vld [vmem:[#allocation7 + $0x548] sm:$0xff]
    %v356 = vld [vmem:[#allocation7 + $0x550] sm:$0xff]
    %v357 = vld [vmem:[#allocation7 + $0x558] sm:$0xff]
    %v358 = vld [vmem:[#allocation7 + $0x560] sm:$0xff]
    %v359 = vld [vmem:[#allocation7 + $0x568] sm:$0xff]
    %v360 = vld [vmem:[#allocation7 + $0x570] sm:$0xff]
    %v361 = vld [vmem:[#allocation7 + $0x578] sm:$0xff]
    %v362 = vld [vmem:[#allocation7 + $0x580] sm:$0xff]
    %v363 = vld [vmem:[#allocation7 + $0x588] sm:$0xff]
    %v364 = vld [vmem:[#allocation7 + $0x590] sm:$0xff]
    %v365 = vld [vmem:[#allocation7 + $0x598] sm:$0xff]
    %v366 = vld [vmem:[#allocation7 + $0x5a0] sm:$0xff]
    %v367 = vld [vmem:[#allocation7 + $0x5a8] sm:$0xff]
    %v368 = vld [vmem:[#allocation7 + $0x5b0] sm:$0xff]
    %v369 = vld [vmem:[#allocation7 + $0x5b8] sm:$0xff]
    %v370 = vld [vmem:[#allocation7 + $0x5c0] sm:$0xff]
    %v371 = vld [vmem:[#allocation7 + $0x5c8] sm:$0xff]
    %v372 = vld [vmem:[#allocation7 + $0x5d0] sm:$0xff]
    %v373 = vld [vmem:[#allocation7 + $0x5d8] sm:$0xff]
    %v374 = vld [vmem:[#allocation7 + $0x5e0] sm:$0xff]
    %v375 = vld [vmem:[#allocation7 + $0x5e8] sm:$0xff]
    %v376 = vld [vmem:[#allocation7 + $0x5f0] sm:$0xff]
    %v377 = vld [vmem:[#allocation7 + $0x5f8] sm:$0xff]
    %v378 = vld [vmem:[#allocation7 + $0x600] sm:$0xff]
    %v379 = vld [vmem:[#allocation7 + $0x608] sm:$0xff]
    %v380 = vld [vmem:[#allocation7 + $0x610] sm:$0xff]
    %v381 = vld [vmem:[#allocation7 + $0x618] sm:$0xff]
    %v382 = vld [vmem:[#allocation7 + $0x620] sm:$0xff]
    %v383 = vld [vmem:[#allocation7 + $0x628] sm:$0xff]
    %v384 = vld [vmem:[#allocation7 + $0x630] sm:$0xff]
    %v385 = vld [vmem:[#allocation7 + $0x638] sm:$0xff]
    %v386 = vld [vmem:[#allocation7 + $0x640] sm:$0xff]
    %v387 = vld [vmem:[#allocation7 + $0x648] sm:$0xff]
    %v388 = vld [vmem:[#allocation7 + $0x650] sm:$0xff]
    %v389 = vld [vmem:[#allocation7 + $0x658] sm:$0xff]
    %v390 = vld [vmem:[#allocation7 + $0x660] sm:$0xff]
    %v391 = vld [vmem:[#allocation7 + $0x668] sm:$0xff]
    %v392 = vld [vmem:[#allocation7 + $0x670] sm:$0xff]
    %v393 = vld [vmem:[#allocation7 + $0x678] sm:$0xff]
    %v394 = vld [vmem:[#allocation7 + $0x680] sm:$0xff]
    %v395 = vld [vmem:[#allocation7 + $0x688] sm:$0xff]
    %v396 = vld [vmem:[#allocation7 + $0x690] sm:$0xff]
    %v397 = vld [vmem:[#allocation7 + $0x698] sm:$0xff]
    %v398 = vld [vmem:[#allocation7 + $0x6a0] sm:$0xff]
    %v399 = vld [vmem:[#allocation7 + $0x6a8] sm:$0xff]
    %v400 = vld [vmem:[#allocation7 + $0x6b0] sm:$0xff]
    %v401 = vld [vmem:[#allocation7 + $0x6b8] sm:$0xff]
    %v402 = vld [vmem:[#allocation7 + $0x6c0] sm:$0xff]
    %v403 = vld [vmem:[#allocation7 + $0x6c8] sm:$0xff]
    %v404 = vld [vmem:[#allocation7 + $0x6d0] sm:$0xff]
    %v405 = vld [vmem:[#allocation7 + $0x6d8] sm:$0xff]
    %v406 = vld [vmem:[#allocation7 + $0x6e0] sm:$0xff]
    %v407 = vld [vmem:[#allocation7 + $0x6e8] sm:$0xff]
    %v408 = vld [vmem:[#allocation7 + $0x6f0] sm:$0xff]
    %v409 = vld [vmem:[#allocation7 + $0x6f8] sm:$0xff]
    %v410 = vld [vmem:[#allocation7 + $0x700] sm:$0xff]
    %v411 = vld [vmem:[#allocation7 + $0x708] sm:$0xff]
    %v412 = vld [vmem:[#allocation7 + $0x710] sm:$0xff]
    %v413 = vld [vmem:[#allocation7 + $0x718] sm:$0xff]
    %v414 = vld [vmem:[#allocation7 + $0x720] sm:$0xff]
    %v415 = vld [vmem:[#allocation7 + $0x728] sm:$0xff]
    %v416 = vld [vmem:[#allocation7 + $0x730] sm:$0xff]
    %v417 = vld [vmem:[#allocation7 + $0x738] sm:$0xff]
    %v418 = vld [vmem:[#allocation7 + $0x740] sm:$0xff]
    %v419 = vld [vmem:[#allocation7 + $0x748] sm:$0xff]
    %v420 = vld [vmem:[#allocation7 + $0x750] sm:$0xff]
    %v421 = vld [vmem:[#allocation7 + $0x758] sm:$0xff]
    %v422 = vld [vmem:[#allocation7 + $0x760] sm:$0xff]
    %v423 = vld [vmem:[#allocation7 + $0x768] sm:$0xff]
    %v424 = vld [vmem:[#allocation7 + $0x770] sm:$0xff]
    %v425 = vld [vmem:[#allocation7 + $0x778] sm:$0xff]
    %v426 = vld [vmem:[#allocation7 + $0x780] sm:$0xff]
    %v427 = vld [vmem:[#allocation7 + $0x788] sm:$0xff]
    %v428 = vld [vmem:[#allocation7 + $0x790] sm:$0xff]
    %v429 = vld [vmem:[#allocation7 + $0x798] sm:$0xff]
    %v430 = vld [vmem:[#allocation7 + $0x7a0] sm:$0xff]
    %v431 = vld [vmem:[#allocation7 + $0x7a8] sm:$0xff]
    %v432 = vld [vmem:[#allocation7 + $0x7b0] sm:$0xff]
    %v433 = vld [vmem:[#allocation7 + $0x7b8] sm:$0xff]
    %v434 = vld [vmem:[#allocation7 + $0x7c0] sm:$0xff]
    %v435 = vld [vmem:[#allocation7 + $0x7c8] sm:$0xff]
    %v436 = vld [vmem:[#allocation7 + $0x7d0] sm:$0xff]
    %v437 = vld [vmem:[#allocation7 + $0x7d8] sm:$0xff]
    %v438 = vld [vmem:[#allocation7 + $0x7e0] sm:$0xff]
    %v439 = vld [vmem:[#allocation7 + $0x7e8] sm:$0xff]
    %v440 = vld [vmem:[#allocation7 + $0x7f0] sm:$0xff]
    %v441 = vld [vmem:[#allocation7 + $0x7f8] sm:$0xff]
    %v442 = vld [vmem:[#allocation7 + $0x800] sm:$0xff]
    %v443 = vld [vmem:[#allocation7 + $0x808] sm:$0xff]
    %v444 = vld [vmem:[#allocation7 + $0x810] sm:$0xff]
    %v445 = vld [vmem:[#allocation7 + $0x818] sm:$0xff]
    %v446 = vld [vmem:[#allocation7 + $0x820] sm:$0xff]
    %v447 = vld [vmem:[#allocation7 + $0x828] sm:$0xff]
    %v448 = vld [vmem:[#allocation7 + $0x830] sm:$0xff]
    %v449 = vld [vmem:[#allocation7 + $0x838] sm:$0xff]
    %v450 = vld [vmem:[#allocation7 + $0x840] sm:$0xff]
    %v451 = vld [vmem:[#allocation7 + $0x848] sm:$0xff]
    %v452 = vld [vmem:[#allocation7 + $0x850] sm:$0xff]
    %v453 = vld [vmem:[#allocation7 + $0x858] sm:$0xff]
    %v454 = vld [vmem:[#allocation7 + $0x860] sm:$0xff]
    %v455 = vld [vmem:[#allocation7 + $0x868] sm:$0xff]
    %v456 = vld [vmem:[#allocation7 + $0x870] sm:$0xff]
    %v457 = vld [vmem:[#allocation7 + $0x878] sm:$0xff]
    %v458 = vld [vmem:[#allocation7 + $0x880] sm:$0xff]
    %v459 = vld [vmem:[#allocation7 + $0x888] sm:$0xff]
    %v460 = vld [vmem:[#allocation7 + $0x890] sm:$0xff]
    %v461 = vld [vmem:[#allocation7 + $0x898] sm:$0xff]
    %v462 = vld [vmem:[#allocation7 + $0x8a0] sm:$0xff]
    %v463 = vld [vmem:[#allocation7 + $0x8a8] sm:$0xff]
    %v464 = vld [vmem:[#allocation7 + $0x8b0] sm:$0xff]
    %v465 = vld [vmem:[#allocation7 + $0x8b8] sm:$0xff]
    %v466 = vld [vmem:[#allocation7 + $0x8c0] sm:$0xff]
    %v467 = vld [vmem:[#allocation7 + $0x8c8] sm:$0xff]
    %v468 = vld [vmem:[#allocation7 + $0x8d0] sm:$0xff]
    %v469 = vld [vmem:[#allocation7 + $0x8d8] sm:$0xff]
    %v470 = vld [vmem:[#allocation7 + $0x8e0] sm:$0xff]
    %v471 = vld [vmem:[#allocation7 + $0x8e8] sm:$0xff]
    %v472 = vld [vmem:[#allocation7 + $0x8f0] sm:$0xff]
    %v473 = vld [vmem:[#allocation7 + $0x8f8] sm:$0xff]
    %v474 = vld [vmem:[#allocation7 + $0x900] sm:$0xff]
    %v475 = vld [vmem:[#allocation7 + $0x908] sm:$0xff]
    %v476 = vld [vmem:[#allocation7 + $0x910] sm:$0xff]
    %v477 = vld [vmem:[#allocation7 + $0x918] sm:$0xff]
    %v478 = vld [vmem:[#allocation7 + $0x920] sm:$0xff]
    %v479 = vld [vmem:[#allocation7 + $0x928] sm:$0xff]
    %v480 = vld [vmem:[#allocation7 + $0x930] sm:$0xff]
    %v481 = vld [vmem:[#allocation7 + $0x938] sm:$0xff]
    %v482 = vld [vmem:[#allocation7 + $0x940] sm:$0xff]
    %v483 = vld [vmem:[#allocation7 + $0x948] sm:$0xff]
    %v484 = vld [vmem:[#allocation7 + $0x950] sm:$0xff]
    %v485 = vld [vmem:[#allocation7 + $0x958] sm:$0xff]
    %v486 = vld [vmem:[#allocation7 + $0x960] sm:$0xff]
    %v487 = vld [vmem:[#allocation7 + $0x968] sm:$0xff]
    %v488 = vld [vmem:[#allocation7 + $0x970] sm:$0xff]
    %v489 = vld [vmem:[#allocation7 + $0x978] sm:$0xff]
    %v490 = vld [vmem:[#allocation7 + $0x980] sm:$0xff]
    %v491 = vld [vmem:[#allocation7 + $0x988] sm:$0xff]
    %v492 = vld [vmem:[#allocation7 + $0x990] sm:$0xff]
    %v493 = vld [vmem:[#allocation7 + $0x998] sm:$0xff]
    %v494 = vld [vmem:[#allocation7 + $0x9a0] sm:$0xff]
    %v495 = vld [vmem:[#allocation7 + $0x9a8] sm:$0xff]
    %v496 = vld [vmem:[#allocation7 + $0x9b0] sm:$0xff]
    %v497 = vld [vmem:[#allocation7 + $0x9b8] sm:$0xff]
    %v498 = vld [vmem:[#allocation7 + $0x9c0] sm:$0xff]
    %v499 = vld [vmem:[#allocation7 + $0x9c8] sm:$0xff]
    %v500 = vld [vmem:[#allocation7 + $0x9d0] sm:$0xff]
    %v501 = vld [vmem:[#allocation7 + $0x9d8] sm:$0xff]
    %v502 = vld [vmem:[#allocation7 + $0x9e0] sm:$0xff]
    %v503 = vld [vmem:[#allocation7 + $0x9e8] sm:$0xff]
    %v504 = vld [vmem:[#allocation7 + $0x9f0] sm:$0xff]
    %v505 = vld [vmem:[#allocation7 + $0x9f8] sm:$0xff]
    %v506 = vld [vmem:[#allocation7 + $0xa00] sm:$0xff]
    %v507 = vld [vmem:[#allocation7 + $0xa08] sm:$0xff]
    %v508 = vld [vmem:[#allocation7 + $0xa10] sm:$0xff]
    %v509 = vld [vmem:[#allocation7 + $0xa18] sm:$0xff]
    %v510 = vld [vmem:[#allocation7 + $0xa20] sm:$0xff]
    %v511 = vld [vmem:[#allocation7 + $0xa28] sm:$0xff]
    %v512 = vld [vmem:[#allocation7 + $0xa30] sm:$0xff]
    %v513 = vld [vmem:[#allocation7 + $0xa38] sm:$0xff]
    %v514 = vld [vmem:[#allocation7 + $0xa40] sm:$0xff]
    %v515 = vld [vmem:[#allocation7 + $0xa48] sm:$0xff]
    %v516 = vld [vmem:[#allocation7 + $0xa50] sm:$0xff]
    %v517 = vld [vmem:[#allocation7 + $0xa58] sm:$0xff]
    %v518 = vld [vmem:[#allocation7 + $0xa60] sm:$0xff]
    %v519 = vld [vmem:[#allocation7 + $0xa68] sm:$0xff]
    %v520 = vld [vmem:[#allocation7 + $0xa70] sm:$0xff]
    %v521 = vld [vmem:[#allocation7 + $0xa78] sm:$0xff]
    %v522 = vld [vmem:[#allocation7 + $0xa80] sm:$0xff]
    %v523 = vld [vmem:[#allocation7 + $0xa88] sm:$0xff]
    %v524 = vld [vmem:[#allocation7 + $0xa90] sm:$0xff]
    %v525 = vld [vmem:[#allocation7 + $0xa98] sm:$0xff]
    %v526 = vld [vmem:[#allocation7 + $0xaa0] sm:$0xff]
    %v527 = vld [vmem:[#allocation7 + $0xaa8] sm:$0xff]
    %v528 = vld [vmem:[#allocation7 + $0xab0] sm:$0xff]
    %v529 = vld [vmem:[#allocation7 + $0xab8] sm:$0xff]
    %v530 = vld [vmem:[#allocation7 + $0xac0] sm:$0xff]
    %v531 = vld [vmem:[#allocation7 + $0xac8] sm:$0xff]
    %v532 = vld [vmem:[#allocation7 + $0xad0] sm:$0xff]
    %v533 = vld [vmem:[#allocation7 + $0xad8] sm:$0xff]
    %v534 = vld [vmem:[#allocation7 + $0xae0] sm:$0xff]
    %v535 = vld [vmem:[#allocation7 + $0xae8] sm:$0xff]
    %v536 = vld [vmem:[#allocation7 + $0xaf0] sm:$0xff]
    %v537 = vld [vmem:[#allocation7 + $0xaf8] sm:$0xff]
    %v538 = vld [vmem:[#allocation7 + $0xb00] sm:$0xff]
    %v539 = vld [vmem:[#allocation7 + $0xb08] sm:$0xff]
    %v540 = vld [vmem:[#allocation7 + $0xb10] sm:$0xff]
    %v541 = vld [vmem:[#allocation7 + $0xb18] sm:$0xff]
    %v542 = vld [vmem:[#allocation7 + $0xb20] sm:$0xff]
    %v543 = vld [vmem:[#allocation7 + $0xb28] sm:$0xff]
    %v544 = vld [vmem:[#allocation7 + $0xb30] sm:$0xff]
    %v545 = vld [vmem:[#allocation7 + $0xb38] sm:$0xff]
    %v546 = vld [vmem:[#allocation7 + $0xb40] sm:$0xff]
    %v547 = vld [vmem:[#allocation7 + $0xb48] sm:$0xff]
    %v548 = vld [vmem:[#allocation7 + $0xb50] sm:$0xff]
    %v549 = vld [vmem:[#allocation7 + $0xb58] sm:$0xff]
    %v550 = vld [vmem:[#allocation7 + $0xb60] sm:$0xff]
    %v551 = vld [vmem:[#allocation7 + $0xb68] sm:$0xff]
    %v552 = vld [vmem:[#allocation7 + $0xb70] sm:$0xff]
    %v553 = vld [vmem:[#allocation7 + $0xb78] sm:$0xff]
    %v554 = vld [vmem:[#allocation7 + $0xb80] sm:$0xff]
    %v555 = vld [vmem:[#allocation7 + $0xb88] sm:$0xff]
    %v556 = vld [vmem:[#allocation7 + $0xb90] sm:$0xff]
    %v557 = vld [vmem:[#allocation7 + $0xb98] sm:$0xff]
    %v558 = vld [vmem:[#allocation7 + $0xba0] sm:$0xff]
    %v559 = vld [vmem:[#allocation7 + $0xba8] sm:$0xff]
    %v560 = vld [vmem:[#allocation7 + $0xbb0] sm:$0xff]
    %v561 = vld [vmem:[#allocation7 + $0xbb8] sm:$0xff]
    %v562 = vld [vmem:[#allocation7 + $0xbc0] sm:$0xff]
    %v563 = vld [vmem:[#allocation7 + $0xbc8] sm:$0xff]
    %v564 = vld [vmem:[#allocation7 + $0xbd0] sm:$0xff]
    %v565 = vld [vmem:[#allocation7 + $0xbd8] sm:$0xff]
    %v566 = vld [vmem:[#allocation7 + $0xbe0] sm:$0xff]
    %v567 = vld [vmem:[#allocation7 + $0xbe8] sm:$0xff]
    %v568 = vld [vmem:[#allocation7 + $0xbf0] sm:$0xff]
    %v569 = vld [vmem:[#allocation7 + $0xbf8] sm:$0xff]
    %v570 = vld [vmem:[#allocation7 + $0xc00] sm:$0xff]
    %v571 = vld [vmem:[#allocation7 + $0xc08] sm:$0xff]
    %v572 = vld [vmem:[#allocation7 + $0xc10] sm:$0xff]
    %v573 = vld [vmem:[#allocation7 + $0xc18] sm:$0xff]
    %v574 = vld [vmem:[#allocation7 + $0xc20] sm:$0xff]
    %v575 = vld [vmem:[#allocation7 + $0xc28] sm:$0xff]
    %v576 = vld [vmem:[#allocation7 + $0xc30] sm:$0xff]
    %v577 = vld [vmem:[#allocation7 + $0xc38] sm:$0xff]
    %v578 = vld [vmem:[#allocation7 + $0xc40] sm:$0xff]
    %v579 = vld [vmem:[#allocation7 + $0xc48] sm:$0xff]
    %v580 = vld [vmem:[#allocation7 + $0xc50] sm:$0xff]
    %v581 = vld [vmem:[#allocation7 + $0xc58] sm:$0xff]
    %v582 = vld [vmem:[#allocation7 + $0xc60] sm:$0xff]
    %v583 = vld [vmem:[#allocation7 + $0xc68] sm:$0xff]
    %v584 = vld [vmem:[#allocation7 + $0xc70] sm:$0xff]
    %v585 = vld [vmem:[#allocation7 + $0xc78] sm:$0xff]
    %v586 = vld [vmem:[#allocation7 + $0xc80] sm:$0xff]
    %v587 = vld [vmem:[#allocation7 + $0xc88] sm:$0xff]
    %v588 = vld [vmem:[#allocation7 + $0xc90] sm:$0xff]
    %v589 = vld [vmem:[#allocation7 + $0xc98] sm:$0xff]
    %v590 = vld [vmem:[#allocation7 + $0xca0] sm:$0xff]
    %v591 = vld [vmem:[#allocation7 + $0xca8] sm:$0xff]
    %v592 = vld [vmem:[#allocation7 + $0xcb0] sm:$0xff]
    %v593 = vld [vmem:[#allocation7 + $0xcb8] sm:$0xff]
    %v594 = vld [vmem:[#allocation7 + $0xcc0] sm:$0xff]
    %v595 = vld [vmem:[#allocation7 + $0xcc8] sm:$0xff]
    %v596 = vld [vmem:[#allocation7 + $0xcd0] sm:$0xff]
    %v597 = vld [vmem:[#allocation7 + $0xcd8] sm:$0xff]
    %v598 = vld [vmem:[#allocation7 + $0xce0] sm:$0xff]
    %v599 = vld [vmem:[#allocation7 + $0xce8] sm:$0xff]
    %v600 = vld [vmem:[#allocation7 + $0xcf0] sm:$0xff]
    %v601 = vld [vmem:[#allocation7 + $0xcf8] sm:$0xff]
    %v602 = vld [vmem:[#allocation7 + $0xd00] sm:$0xff]
    %v603 = vld [vmem:[#allocation7 + $0xd08] sm:$0xff]
    %v604 = vld [vmem:[#allocation7 + $0xd10] sm:$0xff]
    %v605 = vld [vmem:[#allocation7 + $0xd18] sm:$0xff]
    %v606 = vld [vmem:[#allocation7 + $0xd20] sm:$0xff]
    %v607 = vld [vmem:[#allocation7 + $0xd28] sm:$0xff]
    %v608 = vld [vmem:[#allocation7 + $0xd30] sm:$0xff]
    %v609 = vld [vmem:[#allocation7 + $0xd38] sm:$0xff]
    %v610 = vld [vmem:[#allocation7 + $0xd40] sm:$0xff]
    %v611 = vld [vmem:[#allocation7 + $0xd48] sm:$0xff]
    %v612 = vld [vmem:[#allocation7 + $0xd50] sm:$0xff]
    %v613 = vld [vmem:[#allocation7 + $0xd58] sm:$0xff]
    %v614 = vld [vmem:[#allocation7 + $0xd60] sm:$0xff]
    %v615 = vld [vmem:[#allocation7 + $0xd68] sm:$0xff]
    %v616 = vld [vmem:[#allocation7 + $0xd70] sm:$0xff]
    %v617 = vld [vmem:[#allocation7 + $0xd78] sm:$0xff]
    %v618 = vld [vmem:[#allocation7 + $0xd80] sm:$0xff]
    %v619 = vld [vmem:[#allocation7 + $0xd88] sm:$0xff]
    %v620 = vld [vmem:[#allocation7 + $0xd90] sm:$0xff]
    %v621 = vld [vmem:[#allocation7 + $0xd98] sm:$0xff]
    %v622 = vld [vmem:[#allocation7 + $0xda0] sm:$0xff]
    %v623 = vld [vmem:[#allocation7 + $0xda8] sm:$0xff]
    %v624 = vld [vmem:[#allocation7 + $0xdb0] sm:$0xff]
    %v625 = vld [vmem:[#allocation7 + $0xdb8] sm:$0xff]
    %v626 = vld [vmem:[#allocation7 + $0xdc0] sm:$0xff]
    %v627 = vld [vmem:[#allocation7 + $0xdc8] sm:$0xff]
    %v628 = vld [vmem:[#allocation7 + $0xdd0] sm:$0xff]
    %v629 = vld [vmem:[#allocation7 + $0xdd8] sm:$0xff]
    %v630 = vld [vmem:[#allocation7 + $0xde0] sm:$0xff]
    %v631 = vld [vmem:[#allocation7 + $0xde8] sm:$0xff]
    %v632 = vld [vmem:[#allocation7 + $0xdf0] sm:$0xff]
    %v633 = vld [vmem:[#allocation7 + $0xdf8] sm:$0xff]
    %v634 = vld [vmem:[#allocation7 + $0xe00] sm:$0xff]
    %v635 = vld [vmem:[#allocation7 + $0xe08] sm:$0xff]
    %v636 = vld [vmem:[#allocation7 + $0xe10] sm:$0xff]
    %v637 = vld [vmem:[#allocation7 + $0xe18] sm:$0xff]
    %v638 = vld [vmem:[#allocation7 + $0xe20] sm:$0xff]
    %v639 = vld [vmem:[#allocation7 + $0xe28] sm:$0xff]
    %v640 = vld [vmem:[#allocation7 + $0xe30] sm:$0xff]
    %v641 = vld [vmem:[#allocation7 + $0xe38] sm:$0xff]
    %v642 = vld [vmem:[#allocation7 + $0xe40] sm:$0xff]
    %v643 = vld [vmem:[#allocation7 + $0xe48] sm:$0xff]
    %v644 = vld [vmem:[#allocation7 + $0xe50] sm:$0xff]
    %v645 = vld [vmem:[#allocation7 + $0xe58] sm:$0xff]
    %v646 = vld [vmem:[#allocation7 + $0xe60] sm:$0xff]
    %v647 = vld [vmem:[#allocation7 + $0xe68] sm:$0xff]
    %v648 = vld [vmem:[#allocation7 + $0xe70] sm:$0xff]
    %v649 = vld [vmem:[#allocation7 + $0xe78] sm:$0xff]
    %v650 = vld [vmem:[#allocation7 + $0xe80] sm:$0xff]
    %v651 = vld [vmem:[#allocation7 + $0xe88] sm:$0xff]
    %v652 = vld [vmem:[#allocation7 + $0xe90] sm:$0xff]
    %v653 = vld [vmem:[#allocation7 + $0xe98] sm:$0xff]
    %v654 = vld [vmem:[#allocation7 + $0xea0] sm:$0xff]
    %v655 = vld [vmem:[#allocation7 + $0xea8] sm:$0xff]
    %v656 = vld [vmem:[#allocation7 + $0xeb0] sm:$0xff]
    %v657 = vld [vmem:[#allocation7 + $0xeb8] sm:$0xff]
    %v658 = vld [vmem:[#allocation7 + $0xec0] sm:$0xff]
    %v659 = vld [vmem:[#allocation7 + $0xec8] sm:$0xff]
    %v660 = vld [vmem:[#allocation7 + $0xed0] sm:$0xff]
    %v661 = vld [vmem:[#allocation7 + $0xed8] sm:$0xff]
    %v662 = vld [vmem:[#allocation7 + $0xee0] sm:$0xff]
    %v663 = vld [vmem:[#allocation7 + $0xee8] sm:$0xff]
    %v664 = vld [vmem:[#allocation7 + $0xef0] sm:$0xff]
    %v665 = vld [vmem:[#allocation7 + $0xef8] sm:$0xff]
    %v666 = vld [vmem:[#allocation7 + $0xf00] sm:$0xff]
    %v667 = vld [vmem:[#allocation7 + $0xf08] sm:$0xff]
    %v668 = vld [vmem:[#allocation7 + $0xf10] sm:$0xff]
    %v669 = vld [vmem:[#allocation7 + $0xf18] sm:$0xff]
    %v670 = vld [vmem:[#allocation7 + $0xf20] sm:$0xff]
    %v671 = vld [vmem:[#allocation7 + $0xf28] sm:$0xff]
    %v672 = vld [vmem:[#allocation7 + $0xf30] sm:$0xff]
    %v673 = vld [vmem:[#allocation7 + $0xf38] sm:$0xff]
    %v674 = vld [vmem:[#allocation7 + $0xf40] sm:$0xff]
    %v675 = vld [vmem:[#allocation7 + $0xf48] sm:$0xff]
    %v676 = vld [vmem:[#allocation7 + $0xf50] sm:$0xff]
    %v677 = vld [vmem:[#allocation7 + $0xf58] sm:$0xff]
    %v678 = vld [vmem:[#allocation7 + $0xf60] sm:$0xff]
    %v679 = vld [vmem:[#allocation7 + $0xf68] sm:$0xff]
    %v680 = vld [vmem:[#allocation7 + $0xf70] sm:$0xff]
    %v681 = vld [vmem:[#allocation7 + $0xf78] sm:$0xff]
    %v682 = vld [vmem:[#allocation7 + $0xf80] sm:$0xff]
    %v683 = vld [vmem:[#allocation7 + $0xf88] sm:$0xff]
    %v684 = vld [vmem:[#allocation7 + $0xf90] sm:$0xff]
    %v685 = vld [vmem:[#allocation7 + $0xf98] sm:$0xff]
    %v686 = vld [vmem:[#allocation7 + $0xfa0] sm:$0xff]
    %v687 = vld [vmem:[#allocation7 + $0xfa8] sm:$0xff]
    %v688 = vld [vmem:[#allocation7 + $0xfb0] sm:$0xff]
    %v689 = vld [vmem:[#allocation7 + $0xfb8] sm:$0xff]
    %v690 = vld [vmem:[#allocation7 + $0xfc0] sm:$0xff]
    %v691 = vld [vmem:[#allocation7 + $0xfc8] sm:$0xff]
    %v692 = vld [vmem:[#allocation7 + $0xfd0] sm:$0xff]
    %v693 = vld [vmem:[#allocation7 + $0xfd8] sm:$0xff]
    %v694 = vld [vmem:[#allocation7 + $0xfe0] sm:$0xff]
    %v695 = vld [vmem:[#allocation7 + $0xfe8] sm:$0xff]
    %v696 = vld [vmem:[#allocation7 + $0xff0] sm:$0xff]
    %v697 = vld [vmem:[#allocation7 + $0xff8] sm:$0xff]
    %v698 = vld [vmem:[#allocation7 + $0x1000] sm:$0xff]
    %v699 = vld [vmem:[#allocation7 + $0x1008] sm:$0xff]
    %v700 = vld [vmem:[#allocation7 + $0x1010] sm:$0xff]
    %v701 = vld [vmem:[#allocation7 + $0x1018] sm:$0xff]
    %v702 = vld [vmem:[#allocation7 + $0x1020] sm:$0xff]
    %v703 = vld [vmem:[#allocation7 + $0x1028] sm:$0xff]
    %v704 = vld [vmem:[#allocation7 + $0x1030] sm:$0xff]
    %v705 = vld [vmem:[#allocation7 + $0x1038] sm:$0xff]
    %v706 = vld [vmem:[#allocation7 + $0x1040] sm:$0xff]
    %v707 = vld [vmem:[#allocation7 + $0x1048] sm:$0xff]
    %v708 = vld [vmem:[#allocation7 + $0x1050] sm:$0xff]
    %v709 = vld [vmem:[#allocation7 + $0x1058] sm:$0xff]
    %v710 = vld [vmem:[#allocation7 + $0x1060] sm:$0xff]
    %v711 = vld [vmem:[#allocation7 + $0x1068] sm:$0xff]
    %v712 = vld [vmem:[#allocation7 + $0x1070] sm:$0xff]
    %v713 = vld [vmem:[#allocation7 + $0x1078] sm:$0xff]
    %v714 = vld [vmem:[#allocation7 + $0x1080] sm:$0xff]
    %v715 = vld [vmem:[#allocation7 + $0x1088] sm:$0xff]
    %v716 = vld [vmem:[#allocation7 + $0x1090] sm:$0xff]
    %v717 = vld [vmem:[#allocation7 + $0x1098] sm:$0xff]
    %v718 = vld [vmem:[#allocation7 + $0x10a0] sm:$0xff]
    %v719 = vld [vmem:[#allocation7 + $0x10a8] sm:$0xff]
    %v720 = vld [vmem:[#allocation7 + $0x10b0] sm:$0xff]
    %v721 = vld [vmem:[#allocation7 + $0x10b8] sm:$0xff]
    %v722 = vld [vmem:[#allocation7 + $0x10c0] sm:$0xff]
    %v723 = vld [vmem:[#allocation7 + $0x10c8] sm:$0xff]
    %v724 = vld [vmem:[#allocation7 + $0x10d0] sm:$0xff]
    %v725 = vld [vmem:[#allocation7 + $0x10d8] sm:$0xff]
    %v726 = vld [vmem:[#allocation7 + $0x10e0] sm:$0xff]
    %v727 = vld [vmem:[#allocation7 + $0x10e8] sm:$0xff]
    %v728 = vld [vmem:[#allocation7 + $0x10f0] sm:$0xff]
    %v729 = vld [vmem:[#allocation7 + $0x10f8] sm:$0xff]
    %v730 = vld [vmem:[#allocation7 + $0x1100] sm:$0xff]
    %v731 = vld [vmem:[#allocation7 + $0x1108] sm:$0xff]
    %v732 = vld [vmem:[#allocation7 + $0x1110] sm:$0xff]
    %v733 = vld [vmem:[#allocation7 + $0x1118] sm:$0xff]
    %v734 = vld [vmem:[#allocation7 + $0x1120] sm:$0xff]
    %v735 = vld [vmem:[#allocation7 + $0x1128] sm:$0xff]
    %v736 = vld [vmem:[#allocation7 + $0x1130] sm:$0xff]
    %v737 = vld [vmem:[#allocation7 + $0x1138] sm:$0xff]
    %v738 = vld [vmem:[#allocation7 + $0x1140] sm:$0xff]
    %v739 = vld [vmem:[#allocation7 + $0x1148] sm:$0xff]
    %v740 = vld [vmem:[#allocation7 + $0x1150] sm:$0xff]
    %v741 = vld [vmem:[#allocation7 + $0x1158] sm:$0xff]
    %v742 = vld [vmem:[#allocation7 + $0x1160] sm:$0xff]
    %v743 = vld [vmem:[#allocation7 + $0x1168] sm:$0xff]
    %v744 = vld [vmem:[#allocation7 + $0x1170] sm:$0xff]
    %v745 = vld [vmem:[#allocation7 + $0x1178] sm:$0xff]
    %v746 = vld [vmem:[#allocation7 + $0x1180] sm:$0xff]
    %v747 = vld [vmem:[#allocation7 + $0x1188] sm:$0xff]
    %v748 = vld [vmem:[#allocation7 + $0x1190] sm:$0xff]
    %v749 = vld [vmem:[#allocation7 + $0x1198] sm:$0xff]
    %v750 = vld [vmem:[#allocation7 + $0x11a0] sm:$0xff]
    %v751 = vld [vmem:[#allocation7 + $0x11a8] sm:$0xff]
    %v752 = vld [vmem:[#allocation7 + $0x11b0] sm:$0xff]
    %v753 = vld [vmem:[#allocation7 + $0x11b8] sm:$0xff]
    %v754 = vld [vmem:[#allocation7 + $0x11c0] sm:$0xff]
    %v755 = vld [vmem:[#allocation7 + $0x11c8] sm:$0xff]
    %v756 = vld [vmem:[#allocation7 + $0x11d0] sm:$0xff]
    %v757 = vld [vmem:[#allocation7 + $0x11d8] sm:$0xff]
    %v758 = vld [vmem:[#allocation7 + $0x11e0] sm:$0xff]
    %v759 = vld [vmem:[#allocation7 + $0x11e8] sm:$0xff]
    %v760 = vld [vmem:[#allocation7 + $0x11f0] sm:$0xff]
    %v761 = vld [vmem:[#allocation7 + $0x11f8] sm:$0xff]
    %v762 = vld [vmem:[#allocation7 + $0x1200] sm:$0xff]
    %v763 = vld [vmem:[#allocation7 + $0x1208] sm:$0xff]
    %v764 = vld [vmem:[#allocation7 + $0x1210] sm:$0xff]
    %v765 = vld [vmem:[#allocation7 + $0x1218] sm:$0xff]
    %v766 = vld [vmem:[#allocation7 + $0x1220] sm:$0xff]
    %v767 = vld [vmem:[#allocation7 + $0x1228] sm:$0xff]
    %v768 = vld [vmem:[#allocation7 + $0x1230] sm:$0xff]
    %v769 = vld [vmem:[#allocation7 + $0x1238] sm:$0xff]
    %v770 = vld [vmem:[#allocation7 + $0x1240] sm:$0xff]
    %v771 = vld [vmem:[#allocation7 + $0x1248] sm:$0xff]
    %v772 = vld [vmem:[#allocation7 + $0x1250] sm:$0xff]
    %v773 = vld [vmem:[#allocation7 + $0x1258] sm:$0xff]
    %v774 = vld [vmem:[#allocation7 + $0x1260] sm:$0xff]
    %v775 = vld [vmem:[#allocation7 + $0x1268] sm:$0xff]
    %v776 = vld [vmem:[#allocation7 + $0x1270] sm:$0xff]
    %v777 = vld [vmem:[#allocation7 + $0x1278] sm:$0xff]
    %v778 = vld [vmem:[#allocation7 + $0x1280] sm:$0xff]
    %v779 = vld [vmem:[#allocation7 + $0x1288] sm:$0xff]
    %v780 = vld [vmem:[#allocation7 + $0x1290] sm:$0xff]
    %v781 = vld [vmem:[#allocation7 + $0x1298] sm:$0xff]
    %v782 = vld [vmem:[#allocation7 + $0x12a0] sm:$0xff]
    %v783 = vld [vmem:[#allocation7 + $0x12a8] sm:$0xff]
    %v784 = vld [vmem:[#allocation7 + $0x12b0] sm:$0xff]
    %v785 = vld [vmem:[#allocation7 + $0x12b8] sm:$0xff]
    %v786 = vld [vmem:[#allocation7 + $0x12c0] sm:$0xff]
    %v787 = vld [vmem:[#allocation7 + $0x12c8] sm:$0xff]
    %v788 = vld [vmem:[#allocation7 + $0x12d0] sm:$0xff]
    %v789 = vld [vmem:[#allocation7 + $0x12d8] sm:$0xff]
    %v790 = vld [vmem:[#allocation7 + $0x12e0] sm:$0xff]
    %v791 = vld [vmem:[#allocation7 + $0x12e8] sm:$0xff]
    %v792 = vld [vmem:[#allocation7 + $0x12f0] sm:$0xff]
    %v793 = vld [vmem:[#allocation7 + $0x12f8] sm:$0xff]
    %v794 = vld [vmem:[#allocation7 + $0x1300] sm:$0xff]
    %v795 = vld [vmem:[#allocation7 + $0x1308] sm:$0xff]
    %v796 = vld [vmem:[#allocation7 + $0x1310] sm:$0xff]
    %v797 = vld [vmem:[#allocation7 + $0x1318] sm:$0xff]
    %v798 = vld [vmem:[#allocation7 + $0x1320] sm:$0xff]
    %v799 = vld [vmem:[#allocation7 + $0x1328] sm:$0xff]
    %v800 = vld [vmem:[#allocation7 + $0x1330] sm:$0xff]
    %v801 = vld [vmem:[#allocation7 + $0x1338] sm:$0xff]
    %v802 = vld [vmem:[#allocation7 + $0x1340] sm:$0xff]
    %v803 = vld [vmem:[#allocation7 + $0x1348] sm:$0xff]
    %v804 = vld [vmem:[#allocation7 + $0x1350] sm:$0xff]
    %v805 = vld [vmem:[#allocation7 + $0x1358] sm:$0xff]
    %v806 = vld [vmem:[#allocation7 + $0x1360] sm:$0xff]
    %v807 = vld [vmem:[#allocation7 + $0x1368] sm:$0xff]
    %v808 = vld [vmem:[#allocation7 + $0x1370] sm:$0xff]
    %v809 = vld [vmem:[#allocation7 + $0x1378] sm:$0xff]
    %v810 = vld [vmem:[#allocation7 + $0x1380] sm:$0xff]
    %v811 = vld [vmem:[#allocation7 + $0x1388] sm:$0xff]
    %v812 = vld [vmem:[#allocation7 + $0x1390] sm:$0xff]
    %v813 = vld [vmem:[#allocation7 + $0x1398] sm:$0xff]
    %v814 = vld [vmem:[#allocation7 + $0x13a0] sm:$0xff]
    %v815 = vld [vmem:[#allocation7 + $0x13a8] sm:$0xff]
    %v816 = vld [vmem:[#allocation7 + $0x13b0] sm:$0xff]
    %v817 = vld [vmem:[#allocation7 + $0x13b8] sm:$0xff]
    %v818 = vld [vmem:[#allocation7 + $0x13c0] sm:$0xff]
    %v819 = vld [vmem:[#allocation7 + $0x13c8] sm:$0xff]
    %v820 = vld [vmem:[#allocation7 + $0x13d0] sm:$0xff]
    %v821 = vld [vmem:[#allocation7 + $0x13d8] sm:$0xff]
    %v822 = vld [vmem:[#allocation7 + $0x13e0] sm:$0xff]
    %v823 = vld [vmem:[#allocation7 + $0x13e8] sm:$0xff]
    %v824 = vld [vmem:[#allocation7 + $0x13f0] sm:$0xff]
    %v825 = vld [vmem:[#allocation7 + $0x13f8] sm:$0xff]
    %v826 = vld [vmem:[#allocation7 + $0x1400] sm:$0xff]
    %v827 = vld [vmem:[#allocation7 + $0x1408] sm:$0xff]
    %v828 = vld [vmem:[#allocation7 + $0x1410] sm:$0xff]
    %v829 = vld [vmem:[#allocation7 + $0x1418] sm:$0xff]
    %v830 = vld [vmem:[#allocation7 + $0x1420] sm:$0xff]
    %v831 = vld [vmem:[#allocation7 + $0x1428] sm:$0xff]
    %v832 = vld [vmem:[#allocation7 + $0x1430] sm:$0xff]
    %v833 = vld [vmem:[#allocation7 + $0x1438] sm:$0xff]
    %v834 = vld [vmem:[#allocation7 + $0x1440] sm:$0xff]
    %v835 = vld [vmem:[#allocation7 + $0x1448] sm:$0xff]
    %v836 = vld [vmem:[#allocation7 + $0x1450] sm:$0xff]
    %v837 = vld [vmem:[#allocation7 + $0x1458] sm:$0xff]
    %v838 = vld [vmem:[#allocation7 + $0x1460] sm:$0xff]
    %v839 = vld [vmem:[#allocation7 + $0x1468] sm:$0xff]
    %v840 = vld [vmem:[#allocation7 + $0x1470] sm:$0xff]
    %v841 = vld [vmem:[#allocation7 + $0x1478] sm:$0xff]
    %v842 = vld [vmem:[#allocation7 + $0x1480] sm:$0xff]
    %v843 = vld [vmem:[#allocation7 + $0x1488] sm:$0xff]
    %v844 = vld [vmem:[#allocation7 + $0x1490] sm:$0xff]
    %v845 = vld [vmem:[#allocation7 + $0x1498] sm:$0xff]
    %v846 = vld [vmem:[#allocation7 + $0x14a0] sm:$0xff]
    %v847 = vld [vmem:[#allocation7 + $0x14a8] sm:$0xff]
    %v848 = vld [vmem:[#allocation7 + $0x14b0] sm:$0xff]
    %v849 = vld [vmem:[#allocation7 + $0x14b8] sm:$0xff]
    %v850 = vld [vmem:[#allocation7 + $0x14c0] sm:$0xff]
    %v851 = vld [vmem:[#allocation7 + $0x14c8] sm:$0xff]
    %v852 = vld [vmem:[#allocation7 + $0x14d0] sm:$0xff]
    %v853 = vld [vmem:[#allocation7 + $0x14d8] sm:$0xff]
    %v854 = vld [vmem:[#allocation7 + $0x14e0] sm:$0xff]
    %v855 = vld [vmem:[#allocation7 + $0x14e8] sm:$0xff]
    %v856 = vld [vmem:[#allocation7 + $0x14f0] sm:$0xff]
    %v857 = vld [vmem:[#allocation7 + $0x14f8] sm:$0xff]
    %v858 = vld [vmem:[#allocation7 + $0x1500] sm:$0xff]
    %v859 = vld [vmem:[#allocation7 + $0x1508] sm:$0xff]
    %v860 = vld [vmem:[#allocation7 + $0x1510] sm:$0xff]
    %v861 = vld [vmem:[#allocation7 + $0x1518] sm:$0xff]
    %v862 = vld [vmem:[#allocation7 + $0x1520] sm:$0xff]
    %v863 = vld [vmem:[#allocation7 + $0x1528] sm:$0xff]
    %v864 = vld [vmem:[#allocation7 + $0x1530] sm:$0xff]
    %v865 = vld [vmem:[#allocation7 + $0x1538] sm:$0xff]
    %v866 = vld [vmem:[#allocation7 + $0x1540] sm:$0xff]
    %v867 = vld [vmem:[#allocation7 + $0x1548] sm:$0xff]
    %v868 = vld [vmem:[#allocation7 + $0x1550] sm:$0xff]
    %v869 = vld [vmem:[#allocation7 + $0x1558] sm:$0xff]
    %v870 = vld [vmem:[#allocation7 + $0x1560] sm:$0xff]
    %v871 = vld [vmem:[#allocation7 + $0x1568] sm:$0xff]
    %v872 = vld [vmem:[#allocation7 + $0x1570] sm:$0xff]
    %v873 = vld [vmem:[#allocation7 + $0x1578] sm:$0xff]
    %v874 = vld [vmem:[#allocation7 + $0x1580] sm:$0xff]
    %v875 = vld [vmem:[#allocation7 + $0x1588] sm:$0xff]
    %v876 = vld [vmem:[#allocation7 + $0x1590] sm:$0xff]
    %v877 = vld [vmem:[#allocation7 + $0x1598] sm:$0xff]
    %v878 = vld [vmem:[#allocation7 + $0x15a0] sm:$0xff]
    %v879 = vld [vmem:[#allocation7 + $0x15a8] sm:$0xff]
    %v880 = vld [vmem:[#allocation7 + $0x15b0] sm:$0xff]
    %v881 = vld [vmem:[#allocation7 + $0x15b8] sm:$0xff]
    %v882 = vld [vmem:[#allocation7 + $0x15c0] sm:$0xff]
    %v883 = vld [vmem:[#allocation7 + $0x15c8] sm:$0xff]
    %v884 = vld [vmem:[#allocation7 + $0x15d0] sm:$0xff]
    %v885 = vld [vmem:[#allocation7 + $0x15d8] sm:$0xff]
    %v886 = vld [vmem:[#allocation7 + $0x15e0] sm:$0xff]
    %v887 = vld [vmem:[#allocation7 + $0x15e8] sm:$0xff]
    %v888 = vld [vmem:[#allocation7 + $0x15f0] sm:$0xff]
    %v889 = vld [vmem:[#allocation7 + $0x15f8] sm:$0xff]
    %v890 = vld [vmem:[#allocation7 + $0x1600] sm:$0xff]
    %v891 = vld [vmem:[#allocation7 + $0x1608] sm:$0xff]
    %v892 = vld [vmem:[#allocation7 + $0x1610] sm:$0xff]
    %v893 = vld [vmem:[#allocation7 + $0x1618] sm:$0xff]
    %v894 = vld [vmem:[#allocation7 + $0x1620] sm:$0xff]
    %v895 = vld [vmem:[#allocation7 + $0x1628] sm:$0xff]
    %v896 = vld [vmem:[#allocation7 + $0x1630] sm:$0xff]
    %v897 = vld [vmem:[#allocation7 + $0x1638] sm:$0xff]
    %v898 = vld [vmem:[#allocation7 + $0x1640] sm:$0xff]
    %v899 = vld [vmem:[#allocation7 + $0x1648] sm:$0xff]
    %v900 = vld [vmem:[#allocation7 + $0x1650] sm:$0xff]
    %v901 = vld [vmem:[#allocation7 + $0x1658] sm:$0xff]
    %v902 = vld [vmem:[#allocation7 + $0x1660] sm:$0xff]
    %v903 = vld [vmem:[#allocation7 + $0x1668] sm:$0xff]
    %v904 = vld [vmem:[#allocation7 + $0x1670] sm:$0xff]
    %v905 = vld [vmem:[#allocation7 + $0x1678] sm:$0xff]
    %v906 = vld [vmem:[#allocation7 + $0x1680] sm:$0xff]
    %v907 = vld [vmem:[#allocation7 + $0x1688] sm:$0xff]
    %v908 = vld [vmem:[#allocation7 + $0x1690] sm:$0xff]
    %v909 = vld [vmem:[#allocation7 + $0x1698] sm:$0xff]
    %v910 = vld [vmem:[#allocation7 + $0x16a0] sm:$0xff]
    %v911 = vld [vmem:[#allocation7 + $0x16a8] sm:$0xff]
    %v912 = vld [vmem:[#allocation7 + $0x16b0] sm:$0xff]
    %v913 = vld [vmem:[#allocation7 + $0x16b8] sm:$0xff]
    %v914 = vld [vmem:[#allocation7 + $0x16c0] sm:$0xff]
    %v915 = vld [vmem:[#allocation7 + $0x16c8] sm:$0xff]
    %v916 = vld [vmem:[#allocation7 + $0x16d0] sm:$0xff]
    %v917 = vld [vmem:[#allocation7 + $0x16d8] sm:$0xff]
    %v918 = vld [vmem:[#allocation7 + $0x16e0] sm:$0xff]
    %v919 = vld [vmem:[#allocation7 + $0x16e8] sm:$0xff]
    %v920 = vld [vmem:[#allocation7 + $0x16f0] sm:$0xff]
    %v921 = vld [vmem:[#allocation7 + $0x16f8] sm:$0xff]
    %v922 = vld [vmem:[#allocation7 + $0x1700] sm:$0xff]
    %v923 = vld [vmem:[#allocation7 + $0x1708] sm:$0xff]
    %v924 = vld [vmem:[#allocation7 + $0x1710] sm:$0xff]
    %v925 = vld [vmem:[#allocation7 + $0x1718] sm:$0xff]
    %v926 = vld [vmem:[#allocation7 + $0x1720] sm:$0xff]
    %v927 = vld [vmem:[#allocation7 + $0x1728] sm:$0xff]
    %v928 = vld [vmem:[#allocation7 + $0x1730] sm:$0xff]
    %v929 = vld [vmem:[#allocation7 + $0x1738] sm:$0xff]
    %v930 = vld [vmem:[#allocation7 + $0x1740] sm:$0xff]
    %v931 = vld [vmem:[#allocation7 + $0x1748] sm:$0xff]
    %v932 = vld [vmem:[#allocation7 + $0x1750] sm:$0xff]
    %v933 = vld [vmem:[#allocation7 + $0x1758] sm:$0xff]
    %v934 = vld [vmem:[#allocation7 + $0x1760] sm:$0xff]
    %v935 = vld [vmem:[#allocation7 + $0x1768] sm:$0xff]
    %v936 = vld [vmem:[#allocation7 + $0x1770] sm:$0xff]
    %v937 = vld [vmem:[#allocation7 + $0x1778] sm:$0xff]
    %v938 = vld [vmem:[#allocation7 + $0x1780] sm:$0xff]
    %v939 = vld [vmem:[#allocation7 + $0x1788] sm:$0xff]
    %v940 = vld [vmem:[#allocation7 + $0x1790] sm:$0xff]
    %v941 = vld [vmem:[#allocation7 + $0x1798] sm:$0xff]
    %v942 = vld [vmem:[#allocation7 + $0x17a0] sm:$0xff]
    %v943 = vld [vmem:[#allocation7 + $0x17a8] sm:$0xff]
    %v944 = vld [vmem:[#allocation7 + $0x17b0] sm:$0xff]
    %v945 = vld [vmem:[#allocation7 + $0x17b8] sm:$0xff]
    %v946 = vld [vmem:[#allocation7 + $0x17c0] sm:$0xff]
    %v947 = vld [vmem:[#allocation7 + $0x17c8] sm:$0xff]
    %v948 = vld [vmem:[#allocation7 + $0x17d0] sm:$0xff]
    %v949 = vld [vmem:[#allocation7 + $0x17d8] sm:$0xff]
    %v950 = vld [vmem:[#allocation7 + $0x17e0] sm:$0xff]
    %v951 = vld [vmem:[#allocation7 + $0x17e8] sm:$0xff]
    %v952 = vld [vmem:[#allocation7 + $0x17f0] sm:$0xff]
    %v953 = vld [vmem:[#allocation7 + $0x17f8] sm:$0xff]
    %v954 = vld [vmem:[#allocation7 + $0x1800] sm:$0xff]
    %v955 = vld [vmem:[#allocation7 + $0x1808] sm:$0xff]
    %v956 = vld [vmem:[#allocation7 + $0x1810] sm:$0xff]
    %v957 = vld [vmem:[#allocation7 + $0x1818] sm:$0xff]
    %v958 = vld [vmem:[#allocation7 + $0x1820] sm:$0xff]
    %v959 = vld [vmem:[#allocation7 + $0x1828] sm:$0xff]
    %v960 = vld [vmem:[#allocation7 + $0x1830] sm:$0xff]
    %v961 = vld [vmem:[#allocation7 + $0x1838] sm:$0xff]
    %v962 = vld [vmem:[#allocation7 + $0x1840] sm:$0xff]
    %v963 = vld [vmem:[#allocation7 + $0x1848] sm:$0xff]
    %v964 = vld [vmem:[#allocation7 + $0x1850] sm:$0xff]
    %v965 = vld [vmem:[#allocation7 + $0x1858] sm:$0xff]
    %v966 = vld [vmem:[#allocation7 + $0x1860] sm:$0xff]
    %v967 = vld [vmem:[#allocation7 + $0x1868] sm:$0xff]
    %v968 = vld [vmem:[#allocation7 + $0x1870] sm:$0xff]
    %v969 = vld [vmem:[#allocation7 + $0x1878] sm:$0xff]
    %v970 = vld [vmem:[#allocation7 + $0x1880] sm:$0xff]
    %v971 = vld [vmem:[#allocation7 + $0x1888] sm:$0xff]
    %v972 = vld [vmem:[#allocation7 + $0x1890] sm:$0xff]
    %v973 = vld [vmem:[#allocation7 + $0x1898] sm:$0xff]
    %v974 = vld [vmem:[#allocation7 + $0x18a0] sm:$0xff]
    %v975 = vld [vmem:[#allocation7 + $0x18a8] sm:$0xff]
    %v976 = vld [vmem:[#allocation7 + $0x18b0] sm:$0xff]
    %v977 = vld [vmem:[#allocation7 + $0x18b8] sm:$0xff]
    %v978 = vld [vmem:[#allocation7 + $0x18c0] sm:$0xff]
    %v979 = vld [vmem:[#allocation7 + $0x18c8] sm:$0xff]
    %v980 = vld [vmem:[#allocation7 + $0x18d0] sm:$0xff]
    %v981 = vld [vmem:[#allocation7 + $0x18d8] sm:$0xff]
    %v982 = vld [vmem:[#allocation7 + $0x18e0] sm:$0xff]
    %v983 = vld [vmem:[#allocation7 + $0x18e8] sm:$0xff]
    %v984 = vld [vmem:[#allocation7 + $0x18f0] sm:$0xff]
    %v985 = vld [vmem:[#allocation7 + $0x18f8] sm:$0xff]
    %v986 = vld [vmem:[#allocation7 + $0x1900] sm:$0xff]
    %v987 = vld [vmem:[#allocation7 + $0x1908] sm:$0xff]
    %v988 = vld [vmem:[#allocation7 + $0x1910] sm:$0xff]
    %v989 = vld [vmem:[#allocation7 + $0x1918] sm:$0xff]
    %v990 = vld [vmem:[#allocation7 + $0x1920] sm:$0xff]
    %v991 = vld [vmem:[#allocation7 + $0x1928] sm:$0xff]
    %v992 = vld [vmem:[#allocation7 + $0x1930] sm:$0xff]
    %v993 = vld [vmem:[#allocation7 + $0x1938] sm:$0xff]
    %v994 = vld [vmem:[#allocation7 + $0x1940] sm:$0xff]
    %v995 = vld [vmem:[#allocation7 + $0x1948] sm:$0xff]
    %v996 = vld [vmem:[#allocation7 + $0x1950] sm:$0xff]
    %v997 = vld [vmem:[#allocation7 + $0x1958] sm:$0xff]
    %v998 = vld [vmem:[#allocation7 + $0x1960] sm:$0xff]
    %v999 = vld [vmem:[#allocation7 + $0x1968] sm:$0xff]
    %v1000 = vld [vmem:[#allocation7 + $0x1970] sm:$0xff]
    %v1001 = vld [vmem:[#allocation7 + $0x1978] sm:$0xff]
    %v1002 = vld [vmem:[#allocation7 + $0x1980] sm:$0xff]
    %v1003 = vld [vmem:[#allocation7 + $0x1988] sm:$0xff]
    %v1004 = vld [vmem:[#allocation7 + $0x1990] sm:$0xff]
    %v1005 = vld [vmem:[#allocation7 + $0x1998] sm:$0xff]
    %v1006 = vld [vmem:[#allocation7 + $0x19a0] sm:$0xff]
    %v1007 = vld [vmem:[#allocation7 + $0x19a8] sm:$0xff]
    %v1008 = vld [vmem:[#allocation7 + $0x19b0] sm:$0xff]
    %v1009 = vld [vmem:[#allocation7 + $0x19b8] sm:$0xff]
    %v1010 = vld [vmem:[#allocation7 + $0x19c0] sm:$0xff]
    %v1011 = vld [vmem:[#allocation7 + $0x19c8] sm:$0xff]
    %v1012 = vld [vmem:[#allocation7 + $0x19d0] sm:$0xff]
    %v1013 = vld [vmem:[#allocation7 + $0x19d8] sm:$0xff]
    %v1014 = vld [vmem:[#allocation7 + $0x19e0] sm:$0xff]
    %v1015 = vld [vmem:[#allocation7 + $0x19e8] sm:$0xff]
    %v1016 = vld [vmem:[#allocation7 + $0x19f0] sm:$0xff]
    %v1017 = vld [vmem:[#allocation7 + $0x19f8] sm:$0xff]
    %v1018 = vld [vmem:[#allocation7 + $0x1a00] sm:$0xff]
    %v1019 = vld [vmem:[#allocation7 + $0x1a08] sm:$0xff]
    %v1020 = vld [vmem:[#allocation7 + $0x1a10] sm:$0xff]
    %v1021 = vld [vmem:[#allocation7 + $0x1a18] sm:$0xff]
    %v1022 = vld [vmem:[#allocation7 + $0x1a20] sm:$0xff]
    %v1023 = vld [vmem:[#allocation7 + $0x1a28] sm:$0xff]
    %v1024 = vld [vmem:[#allocation7 + $0x1a30] sm:$0xff]
    %v1025 = vld [vmem:[#allocation7 + $0x1a38] sm:$0xff]
    %v1026 = vld [vmem:[#allocation7 + $0x1a40] sm:$0xff]
    %v1027 = vld [vmem:[#allocation7 + $0x1a48] sm:$0xff]
    %v1028 = vld [vmem:[#allocation7 + $0x1a50] sm:$0xff]
    %v1029 = vld [vmem:[#allocation7 + $0x1a58] sm:$0xff]
    %v1030 = vld [vmem:[#allocation7 + $0x1a60] sm:$0xff]
    %v1031 = vld [vmem:[#allocation7 + $0x1a68] sm:$0xff]
    %v1032 = vld [vmem:[#allocation7 + $0x1a70] sm:$0xff]
    %v1033 = vld [vmem:[#allocation7 + $0x1a78] sm:$0xff]
    %v1034 = vld [vmem:[#allocation7 + $0x1a80] sm:$0xff]
    %v1035 = vld [vmem:[#allocation7 + $0x1a88] sm:$0xff]
    %v1036 = vld [vmem:[#allocation7 + $0x1a90] sm:$0xff]
    %v1037 = vld [vmem:[#allocation7 + $0x1a98] sm:$0xff]
    %v1038 = vld [vmem:[#allocation7 + $0x1aa0] sm:$0xff]
    %v1039 = vld [vmem:[#allocation7 + $0x1aa8] sm:$0xff]
    %v1040 = vld [vmem:[#allocation7 + $0x1ab0] sm:$0xff]
    %v1041 = vld [vmem:[#allocation7 + $0x1ab8] sm:$0xff]
    %v1042 = vld [vmem:[#allocation7 + $0x1ac0] sm:$0xff]
    %v1043 = vld [vmem:[#allocation7 + $0x1ac8] sm:$0xff]
    %v1044 = vld [vmem:[#allocation7 + $0x1ad0] sm:$0xff]
    %v1045 = vld [vmem:[#allocation7 + $0x1ad8] sm:$0xff]
    %v1046 = vld [vmem:[#allocation7 + $0x1ae0] sm:$0xff]
    %v1047 = vld [vmem:[#allocation7 + $0x1ae8] sm:$0xff]
    %v1048 = vld [vmem:[#allocation7 + $0x1af0] sm:$0xff]
    %v1049 = vld [vmem:[#allocation7 + $0x1af8] sm:$0xff]
    %v1050 = vld [vmem:[#allocation7 + $0x1b00] sm:$0xff]
    %v1051 = vld [vmem:[#allocation7 + $0x1b08] sm:$0xff]
    %v1052 = vld [vmem:[#allocation7 + $0x1b10] sm:$0xff]
    %v1053 = vld [vmem:[#allocation7 + $0x1b18] sm:$0xff]
    %v1054 = vld [vmem:[#allocation7 + $0x1b20] sm:$0xff]
    %v1055 = vld [vmem:[#allocation7 + $0x1b28] sm:$0xff]
    %v1056 = vld [vmem:[#allocation7 + $0x1b30] sm:$0xff]
    %v1057 = vld [vmem:[#allocation7 + $0x1b38] sm:$0xff]
    %v1058 = vld [vmem:[#allocation7 + $0x1b40] sm:$0xff]
    %v1059 = vld [vmem:[#allocation7 + $0x1b48] sm:$0xff]
    %v1060 = vld [vmem:[#allocation7 + $0x1b50] sm:$0xff]
    %v1061 = vld [vmem:[#allocation7 + $0x1b58] sm:$0xff]
    %v1062 = vld [vmem:[#allocation7 + $0x1b60] sm:$0xff]
    %v1063 = vld [vmem:[#allocation7 + $0x1b68] sm:$0xff]
    %v1064 = vld [vmem:[#allocation7 + $0x1b70] sm:$0xff]
    %v1065 = vld [vmem:[#allocation7 + $0x1b78] sm:$0xff]
    %v1066 = vld [vmem:[#allocation7 + $0x1b80] sm:$0xff]
    %v1067 = vld [vmem:[#allocation7 + $0x1b88] sm:$0xff]
    %v1068 = vld [vmem:[#allocation7 + $0x1b90] sm:$0xff]
    %v1069 = vld [vmem:[#allocation7 + $0x1b98] sm:$0xff]
    %v1070 = vld [vmem:[#allocation7 + $0x1ba0] sm:$0xff]
    %v1071 = vld [vmem:[#allocation7 + $0x1ba8] sm:$0xff]
    %v1072 = vld [vmem:[#allocation7 + $0x1bb0] sm:$0xff]
    %v1073 = vld [vmem:[#allocation7 + $0x1bb8] sm:$0xff]
    %v1074 = vld [vmem:[#allocation7 + $0x1bc0] sm:$0xff]
    %v1075 = vld [vmem:[#allocation7 + $0x1bc8] sm:$0xff]
    %v1076 = vld [vmem:[#allocation7 + $0x1bd0] sm:$0xff]
    %v1077 = vld [vmem:[#allocation7 + $0x1bd8] sm:$0xff]
    %v1078 = vld [vmem:[#allocation7 + $0x1be0] sm:$0xff]
    %v1079 = vld [vmem:[#allocation7 + $0x1be8] sm:$0xff]
    %v1080 = vld [vmem:[#allocation7 + $0x1bf0] sm:$0xff]
    %v1081 = vld [vmem:[#allocation7 + $0x1bf8] sm:$0xff]
    %v1082 = vld [vmem:[#allocation7 + $0x1c00] sm:$0xff]
    %v1083 = vld [vmem:[#allocation7 + $0x1c08] sm:$0xff]
    %v1084 = vld [vmem:[#allocation7 + $0x1c10] sm:$0xff]
    %v1085 = vld [vmem:[#allocation7 + $0x1c18] sm:$0xff]
    %v1086 = vld [vmem:[#allocation7 + $0x1c20] sm:$0xff]
    %v1087 = vld [vmem:[#allocation7 + $0x1c28] sm:$0xff]
    %v1088 = vld [vmem:[#allocation7 + $0x1c30] sm:$0xff]
    %v1089 = vld [vmem:[#allocation7 + $0x1c38] sm:$0xff]
    %v1090 = vld [vmem:[#allocation7 + $0x1c40] sm:$0xff]
    %v1091 = vld [vmem:[#allocation7 + $0x1c48] sm:$0xff]
    %v1092 = vld [vmem:[#allocation7 + $0x1c50] sm:$0xff]
    %v1093 = vld [vmem:[#allocation7 + $0x1c58] sm:$0xff]
    %v1094 = vld [vmem:[#allocation7 + $0x1c60] sm:$0xff]
    %v1095 = vld [vmem:[#allocation7 + $0x1c68] sm:$0xff]
    %v1096 = vld [vmem:[#allocation7 + $0x1c70] sm:$0xff]
    %v1097 = vld [vmem:[#allocation7 + $0x1c78] sm:$0xff]
    %v1098 = vld [vmem:[#allocation7 + $0x1c80] sm:$0xff]
    %v1099 = vld [vmem:[#allocation7 + $0x1c88] sm:$0xff]
    %v1100 = vld [vmem:[#allocation7 + $0x1c90] sm:$0xff]
    %v1101 = vld [vmem:[#allocation7 + $0x1c98] sm:$0xff]
    %v1102 = vld [vmem:[#allocation7 + $0x1ca0] sm:$0xff]
    %v1103 = vld [vmem:[#allocation7 + $0x1ca8] sm:$0xff]
    %v1104 = vld [vmem:[#allocation7 + $0x1cb0] sm:$0xff]
    %v1105 = vld [vmem:[#allocation7 + $0x1cb8] sm:$0xff]
    %v1106 = vld [vmem:[#allocation7 + $0x1cc0] sm:$0xff]
    %v1107 = vld [vmem:[#allocation7 + $0x1cc8] sm:$0xff]
    %v1108 = vld [vmem:[#allocation7 + $0x1cd0] sm:$0xff]
    %v1109 = vld [vmem:[#allocation7 + $0x1cd8] sm:$0xff]
    %v1110 = vld [vmem:[#allocation7 + $0x1ce0] sm:$0xff]
    %v1111 = vld [vmem:[#allocation7 + $0x1ce8] sm:$0xff]
    %v1112 = vld [vmem:[#allocation7 + $0x1cf0] sm:$0xff]
    %v1113 = vld [vmem:[#allocation7 + $0x1cf8] sm:$0xff]
    %v1114 = vld [vmem:[#allocation7 + $0x1d00] sm:$0xff]
    %v1115 = vld [vmem:[#allocation7 + $0x1d08] sm:$0xff]
    %v1116 = vld [vmem:[#allocation7 + $0x1d10] sm:$0xff]
    %v1117 = vld [vmem:[#allocation7 + $0x1d18] sm:$0xff]
    %v1118 = vld [vmem:[#allocation7 + $0x1d20] sm:$0xff]
    %v1119 = vld [vmem:[#allocation7 + $0x1d28] sm:$0xff]
    %v1120 = vld [vmem:[#allocation7 + $0x1d30] sm:$0xff]
    %v1121 = vld [vmem:[#allocation7 + $0x1d38] sm:$0xff]
    %v1122 = vld [vmem:[#allocation7 + $0x1d40] sm:$0xff]
    %v1123 = vld [vmem:[#allocation7 + $0x1d48] sm:$0xff]
    %v1124 = vld [vmem:[#allocation7 + $0x1d50] sm:$0xff]
    %v1125 = vld [vmem:[#allocation7 + $0x1d58] sm:$0xff]
    %v1126 = vld [vmem:[#allocation7 + $0x1d60] sm:$0xff]
    %v1127 = vld [vmem:[#allocation7 + $0x1d68] sm:$0xff]
    %v1128 = vld [vmem:[#allocation7 + $0x1d70] sm:$0xff]
    %v1129 = vld [vmem:[#allocation7 + $0x1d78] sm:$0xff]
    %v1130 = vld [vmem:[#allocation7 + $0x1d80] sm:$0xff]
    %v1131 = vld [vmem:[#allocation7 + $0x1d88] sm:$0xff]
    %v1132 = vld [vmem:[#allocation7 + $0x1d90] sm:$0xff]
    %v1133 = vld [vmem:[#allocation7 + $0x1d98] sm:$0xff]
    %v1134 = vld [vmem:[#allocation7 + $0x1da0] sm:$0xff]
    %v1135 = vld [vmem:[#allocation7 + $0x1da8] sm:$0xff]
    %v1136 = vld [vmem:[#allocation7 + $0x1db0] sm:$0xff]
    %v1137 = vld [vmem:[#allocation7 + $0x1db8] sm:$0xff]
    %v1138 = vld [vmem:[#allocation7 + $0x1dc0] sm:$0xff]
    %v1139 = vld [vmem:[#allocation7 + $0x1dc8] sm:$0xff]
    %v1140 = vld [vmem:[#allocation7 + $0x1dd0] sm:$0xff]
    %v1141 = vld [vmem:[#allocation7 + $0x1dd8] sm:$0xff]
    %v1142 = vld [vmem:[#allocation7 + $0x1de0] sm:$0xff]
    %v1143 = vld [vmem:[#allocation7 + $0x1de8] sm:$0xff]
    %v1144 = vld [vmem:[#allocation7 + $0x1df0] sm:$0xff]
    %v1145 = vld [vmem:[#allocation7 + $0x1df8] sm:$0xff]
    %v1146 = vld [vmem:[#allocation7 + $0x1e00] sm:$0xff]
    %v1147 = vld [vmem:[#allocation7 + $0x1e08] sm:$0xff]
    %v1148 = vld [vmem:[#allocation7 + $0x1e10] sm:$0xff]
    %v1149 = vld [vmem:[#allocation7 + $0x1e18] sm:$0xff]
    %v1150 = vld [vmem:[#allocation7 + $0x1e20] sm:$0xff]
    %v1151 = vld [vmem:[#allocation7 + $0x1e28] sm:$0xff]
    %v1152 = vld [vmem:[#allocation7 + $0x1e30] sm:$0xff]
    %v1153 = vld [vmem:[#allocation7 + $0x1e38] sm:$0xff]
    %v1154 = vld [vmem:[#allocation7 + $0x1e40] sm:$0xff]
    %v1155 = vld [vmem:[#allocation7 + $0x1e48] sm:$0xff]
    %v1156 = vld [vmem:[#allocation7 + $0x1e50] sm:$0xff]
    %v1157 = vld [vmem:[#allocation7 + $0x1e58] sm:$0xff]
    %v1158 = vld [vmem:[#allocation7 + $0x1e60] sm:$0xff]
    %v1159 = vld [vmem:[#allocation7 + $0x1e68] sm:$0xff]
    %v1160 = vld [vmem:[#allocation7 + $0x1e70] sm:$0xff]
    %v1161 = vld [vmem:[#allocation7 + $0x1e78] sm:$0xff]
    %v1162 = vld [vmem:[#allocation7 + $0x1e80] sm:$0xff]
    %v1163 = vld [vmem:[#allocation7 + $0x1e88] sm:$0xff]
    %v1164 = vld [vmem:[#allocation7 + $0x1e90] sm:$0xff]
    %v1165 = vld [vmem:[#allocation7 + $0x1e98] sm:$0xff]
    %v1166 = vld [vmem:[#allocation7 + $0x1ea0] sm:$0xff]
    %v1167 = vld [vmem:[#allocation7 + $0x1ea8] sm:$0xff]
    %v1168 = vld [vmem:[#allocation7 + $0x1eb0] sm:$0xff]
    %v1169 = vld [vmem:[#allocation7 + $0x1eb8] sm:$0xff]
    %v1170 = vld [vmem:[#allocation7 + $0x1ec0] sm:$0xff]
    %v1171 = vld [vmem:[#allocation7 + $0x1ec8] sm:$0xff]
    %v1172 = vld [vmem:[#allocation7 + $0x1ed0] sm:$0xff]
    %v1173 = vld [vmem:[#allocation7 + $0x1ed8] sm:$0xff]
    %v1174 = vld [vmem:[#allocation7 + $0x1ee0] sm:$0xff]
    %v1175 = vld [vmem:[#allocation7 + $0x1ee8] sm:$0xff]
    %v1176 = vld [vmem:[#allocation7 + $0x1ef0] sm:$0xff]
    %v1177 = vld [vmem:[#allocation7 + $0x1ef8] sm:$0xff]
    %v1178 = vld [vmem:[#allocation7 + $0x1f00] sm:$0xff]
    %v1179 = vld [vmem:[#allocation7 + $0x1f08] sm:$0xff]
    %v1180 = vld [vmem:[#allocation7 + $0x1f10] sm:$0xff]
    %v1181 = vld [vmem:[#allocation7 + $0x1f18] sm:$0xff]
    %v1182 = vld [vmem:[#allocation7 + $0x1f20] sm:$0xff]
    %v1183 = vld [vmem:[#allocation7 + $0x1f28] sm:$0xff]
    %v1184 = vld [vmem:[#allocation7 + $0x1f30] sm:$0xff]
    %v1185 = vld [vmem:[#allocation7 + $0x1f38] sm:$0xff]
    %v1186 = vld [vmem:[#allocation7 + $0x1f40] sm:$0xff]
    %v1187 = vld [vmem:[#allocation7 + $0x1f48] sm:$0xff]
    %v1188 = vld [vmem:[#allocation7 + $0x1f50] sm:$0xff]
    %v1189 = vld [vmem:[#allocation7 + $0x1f58] sm:$0xff]
    %v1190 = vld [vmem:[#allocation7 + $0x1f60] sm:$0xff]
    %v1191 = vld [vmem:[#allocation7 + $0x1f68] sm:$0xff]
    %v1192 = vld [vmem:[#allocation7 + $0x1f70] sm:$0xff]
    %v1193 = vld [vmem:[#allocation7 + $0x1f78] sm:$0xff]
    %v1194 = vld [vmem:[#allocation7 + $0x1f80] sm:$0xff]
    %v1195 = vld [vmem:[#allocation7 + $0x1f88] sm:$0xff]
    %v1196 = vld [vmem:[#allocation7 + $0x1f90] sm:$0xff]
    %v1197 = vld [vmem:[#allocation7 + $0x1f98] sm:$0xff]
    %v1198 = vld [vmem:[#allocation7 + $0x1fa0] sm:$0xff]
    %v1199 = vld [vmem:[#allocation7 + $0x1fa8] sm:$0xff]
    %v1200 = vld [vmem:[#allocation7 + $0x1fb0] sm:$0xff]
    %v1201 = vld [vmem:[#allocation7 + $0x1fb8] sm:$0xff]
    %v1202 = vld [vmem:[#allocation7 + $0x1fc0] sm:$0xff]
    %v1203 = vld [vmem:[#allocation7 + $0x1fc8] sm:$0xff]
    %v1204 = vld [vmem:[#allocation7 + $0x1fd0] sm:$0xff]
    %v1205 = vld [vmem:[#allocation7 + $0x1fd8] sm:$0xff]
    %v1206 = vld [vmem:[#allocation7 + $0x1fe0] sm:$0xff]
    %v1207 = vld [vmem:[#allocation7 + $0x1fe8] sm:$0xff]
    %v1208 = vld [vmem:[#allocation7 + $0x1ff0] sm:$0xff]
    %v1209 = vld [vmem:[#allocation7 + $0x1ff8] sm:$0xff]
    %v1210 = vld [vmem:[#allocation9] sm:$0xff]
    %v1211 = vld [vmem:[#allocation9 + $0x8] sm:$0xff]
    %v1214 = vlaneseq
    %v1215 = vshrl.u32 %v1214, 7
    %v1216 = vsub.s32 0, %v1215
    %v1217 = vrot.slane %v1210, %v1216
    %v1218 = vlaneseq
    %v1219 = vshrl.u32 %v1218, 7
    %v1220 = vsub.s32 1, %v1219
    %v1221 = vrot.slane %v1210, %v1220
    %v1222 = vlaneseq
    %v1223 = vshrl.u32 %v1222, 7
    %v1224 = vsub.s32 2, %v1223
    %v1225 = vrot.slane %v1210, %v1224
    %v1226 = vlaneseq
    %v1227 = vshrl.u32 %v1226, 7
    %v1228 = vsub.s32 3, %v1227
    %v1229 = vrot.slane %v1210, %v1228
    %v1230 = vlaneseq
    %v1231 = vshrl.u32 %v1230, 7
    %v1232 = vsub.s32 4, %v1231
    %v1233 = vrot.slane %v1210, %v1232
    %v1234 = vlaneseq
    %v1235 = vshrl.u32 %v1234, 7
    %v1236 = vsub.s32 5, %v1235
    %v1237 = vrot.slane %v1210, %v1236
    %v1238 = vlaneseq
    %v1239 = vshrl.u32 %v1238, 7
    %v1240 = vsub.s32 6, %v1239
    %v1241 = vrot.slane %v1210, %v1240
    %v1242 = vlaneseq
    %v1243 = vshrl.u32 %v1242, 7
    %v1244 = vsub.s32 7, %v1243
    %v1245 = vrot.slane %v1210, %v1244
    %v1246 = vlaneseq
    %v1247 = vshrl.u32 %v1246, 7
    %v1248 = vsub.s32 0, %v1247
    %v1249 = vrot.slane %v1211, %v1248
    %v1250 = vlaneseq
    %v1251 = vshrl.u32 %v1250, 7
    %v1252 = vsub.s32 1, %v1251
    %v1253 = vrot.slane %v1211, %v1252
    %v1254 = vlaneseq
    %v1255 = vshrl.u32 %v1254, 7
    %v1256 = vsub.s32 2, %v1255
    %v1257 = vrot.slane %v1211, %v1256
    %v1258 = vlaneseq
    %v1259 = vshrl.u32 %v1258, 7
    %v1260 = vsub.s32 3, %v1259
    %v1261 = vrot.slane %v1211, %v1260
    %v1262 = vlaneseq
    %v1263 = vshrl.u32 %v1262, 7
    %v1264 = vsub.s32 4, %v1263
    %v1265 = vrot.slane %v1211, %v1264
    %v1266 = vlaneseq
    %v1267 = vshrl.u32 %v1266, 7
    %v1268 = vsub.s32 5, %v1267
    %v1269 = vrot.slane %v1211, %v1268
    %v1270 = vlaneseq
    %v1271 = vshrl.u32 %v1270, 7
    %v1272 = vsub.s32 6, %v1271
    %v1273 = vrot.slane %v1211, %v1272
    %v1274 = vlaneseq
    %v1275 = vshrl.u32 %v1274, 7
    %v1276 = vsub.s32 7, %v1275
    %v1277 = vrot.slane %v1211, %v1276
    %v1295 = vcombine.high %v185, %v185
    %v1297 = vunpack.c.l.s4 1983009808
    %v1298 = vunpack.c.0.s8 %v1297
    %v1299 = vlaneseq
    %v1300 = vshrl.u32 %v1299, 7
    %v1301 = vsub.s32 %v1298, %v1300
    %v1302 = vrot.slane %v185, %v1301
    %v1304 = vunpack.c.l.s4 1983009808
    %v1305 = vunpack.c.0.s8 %v1304
    %v1306 = vlaneseq
    %v1307 = vshrl.u32 %v1306, 7
    %v1308 = vsub.s32 %v1305, %v1307
    %v1309 = vrot.slane %v1295, %v1308
    %v1310 = vcombine.high %v1302, %v1302
    %v1311 = vcombine.high %v1309, %v1309
    %1316 = vmatprep.subr.mxu0 %v427
    %1317 = vmatpush1.msra.mxu0 %v426
    %1318 = vmatprep.subr.mxu0 %v411
    %1319 = vmatpush1.msra.mxu0 %v410
    %1320 = vmatprep.subr.mxu0 %v395
    %1321 = vmatpush1.msra.mxu0 %v394
    %1322 = vmatprep.subr.mxu0 %v379
    %1323 = vmatpush1.msra.mxu0 %v378
    %1324 = vmatprep.subr.mxu0 %v363
    %1325 = vmatpush1.msra.mxu0 %v362
    %1326 = vmatprep.subr.mxu0 %v347
    %1327 = vmatpush1.msra.mxu0 %v346
    %1328 = vmatprep.subr.mxu0 %v331
    %1329 = vmatpush1.msra.mxu0 %v330
    %1330 = vmatprep.subr.mxu0 %v315
    %1331 = vmatpush1.msra.mxu0 %v314
    %1332 = vmatprep.subr.mxu0 %v299
    %1333 = vmatpush1.msra.mxu0 %v298
    %1334 = vmatprep.subr.mxu0 %v283
    %1335 = vmatpush1.msra.mxu0 %v282
    %1336 = vmatprep.subr.mxu0 %v267
    %1337 = vmatpush1.msra.mxu0 %v266
    %1338 = vmatprep.subr.mxu0 %v251
    %1339 = vmatpush1.msra.mxu0 %v250
    %1340 = vmatprep.subr.mxu0 %v235
    %1341 = vmatpush1.msra.mxu0 %v234
    %1342 = vmatprep.subr.mxu0 %v219
    %1343 = vmatpush1.msra.mxu0 %v218
    %1344 = vmatprep.subr.mxu0 %v203
    %1345 = vmatpush1.msra.mxu0 %v202
    %1346 = vmatprep.subr.mxu0 %v187
    %1347 = vmatpush1.msra.mxu0 %v186
    %1348 = vmatprep.subr.mxu0 %v683
    %1349 = vmatpush2.msra.mxu0 %v682
    %1350 = vmatprep.subr.mxu0 %v667
    %1351 = vmatpush2.msra.mxu0 %v666
    %1352 = vmatprep.subr.mxu0 %v651
    %1353 = vmatpush2.msra.mxu0 %v650
    %1354 = vmatprep.subr.mxu0 %v635
    %1355 = vmatpush2.msra.mxu0 %v634
    %1356 = vmatprep.subr.mxu0 %v619
    %1357 = vmatpush2.msra.mxu0 %v618
    %1358 = vmatprep.subr.mxu0 %v603
    %1359 = vmatpush2.msra.mxu0 %v602
    %1360 = vmatprep.subr.mxu0 %v587
    %1361 = vmatpush2.msra.mxu0 %v586
    %1362 = vmatprep.subr.mxu0 %v571
    %1363 = vmatpush2.msra.mxu0 %v570
    %1364 = vmatprep.subr.mxu0 %v555
    %1365 = vmatpush2.msra.mxu0 %v554
    %1366 = vmatprep.subr.mxu0 %v539
    %1367 = vmatpush2.msra.mxu0 %v538
    %1368 = vmatprep.subr.mxu0 %v523
    %1369 = vmatpush2.msra.mxu0 %v522
    %1370 = vmatprep.subr.mxu0 %v507
    %1371 = vmatpush2.msra.mxu0 %v506
    %1372 = vmatprep.subr.mxu0 %v491
    %1373 = vmatpush2.msra.mxu0 %v490
    %1374 = vmatprep.subr.mxu0 %v475
    %1375 = vmatpush2.msra.mxu0 %v474
    %1376 = vmatprep.subr.mxu0 %v459
    %1377 = vmatpush2.msra.mxu0 %v458
    %1378 = vmatprep.subr.mxu0 %v443
    %1379 = vmatpush2.msra.mxu0 %v442
    %1380 = vmatprep.mubr.f32.mxu0 %v1310
    %1381 = vmatmul.mubr.f32.gmra.mxu0 %v1302
    %v1382 = vpop.f32.mrf.mxu0
    %v1383 = vadd.f32 %v1217, %v1382
    %v1384 = vpop.f32.mrf.mxu0
    %v1385 = vadd.f32 %v1221, %v1384
    %1386 = vdwg.mxu0
    %1387 = vmatprep.subr.mxu0 %v939
    %1388 = vmatpush1.msra.mxu0 %v938
    %1389 = vmatprep.subr.mxu0 %v923
    %1390 = vmatpush1.msra.mxu0 %v922
    %1391 = vmatprep.subr.mxu0 %v907
    %1392 = vmatpush1.msra.mxu0 %v906
    %1393 = vmatprep.subr.mxu0 %v891
    %1394 = vmatpush1.msra.mxu0 %v890
    %1395 = vmatprep.subr.mxu0 %v875
    %1396 = vmatpush1.msra.mxu0 %v874
    %1397 = vmatprep.subr.mxu0 %v859
    %1398 = vmatpush1.msra.mxu0 %v858
    %1399 = vmatprep.subr.mxu0 %v843
    %1400 = vmatpush1.msra.mxu0 %v842
    %1401 = vmatprep.subr.mxu0 %v827
    %1402 = vmatpush1.msra.mxu0 %v826
    %1403 = vmatprep.subr.mxu0 %v811
    %1404 = vmatpush1.msra.mxu0 %v810
    %1405 = vmatprep.subr.mxu0 %v795
    %1406 = vmatpush1.msra.mxu0 %v794
    %1407 = vmatprep.subr.mxu0 %v779
    %1408 = vmatpush1.msra.mxu0 %v778
    %1409 = vmatprep.subr.mxu0 %v763
    %1410 = vmatpush1.msra.mxu0 %v762
    %1411 = vmatprep.subr.mxu0 %v747
    %1412 = vmatpush1.msra.mxu0 %v746
    %1413 = vmatprep.subr.mxu0 %v731
    %1414 = vmatpush1.msra.mxu0 %v730
    %1415 = vmatprep.subr.mxu0 %v715
    %1416 = vmatpush1.msra.mxu0 %v714
    %1417 = vmatprep.subr.mxu0 %v699
    %1418 = vmatpush1.msra.mxu0 %v698
    %1419 = vmatprep.subr.mxu0 %v1195
    %1420 = vmatpush2.msra.mxu0 %v1194
    %1421 = vmatprep.subr.mxu0 %v1179
    %1422 = vmatpush2.msra.mxu0 %v1178
    %1423 = vmatprep.subr.mxu0 %v1163
    %1424 = vmatpush2.msra.mxu0 %v1162
    %1425 = vmatprep.subr.mxu0 %v1147
    %1426 = vmatpush2.msra.mxu0 %v1146
    %1427 = vmatprep.subr.mxu0 %v1131
    %1428 = vmatpush2.msra.mxu0 %v1130
    %1429 = vmatprep.subr.mxu0 %v1115
    %1430 = vmatpush2.msra.mxu0 %v1114
    %1431 = vmatprep.subr.mxu0 %v1099
    %1432 = vmatpush2.msra.mxu0 %v1098
    %1433 = vmatprep.subr.mxu0 %v1083
    %1434 = vmatpush2.msra.mxu0 %v1082
    %1435 = vmatprep.subr.mxu0 %v1067
    %1436 = vmatpush2.msra.mxu0 %v1066
    %1437 = vmatprep.subr.mxu0 %v1051
    %1438 = vmatpush2.msra.mxu0 %v1050
    %1439 = vmatprep.subr.mxu0 %v1035
    %1440 = vmatpush2.msra.mxu0 %v1034
    %1441 = vmatprep.subr.mxu0 %v1019
    %1442 = vmatpush2.msra.mxu0 %v1018
    %1443 = vmatprep.subr.mxu0 %v1003
    %1444 = vmatpush2.msra.mxu0 %v1002
    %1445 = vmatprep.subr.mxu0 %v987
    %1446 = vmatpush2.msra.mxu0 %v986
    %1447 = vmatprep.subr.mxu0 %v971
    %1448 = vmatpush2.msra.mxu0 %v970
    %1449 = vmatprep.subr.mxu0 %v955
    %1450 = vmatpush2.msra.mxu0 %v954
    %1451 = vmatprep.mubr.f32.mxu0 %v1311
    %1452 = vmatmul.mubr.f32.gmra.mxu0 %v1309
    %v1453 = vpop.f32.mrf.mxu0
    %v1454 = vadd.f32 %v1383, %v1453
    %v1455 = vpop.f32.mrf.mxu0
    %v1456 = vadd.f32 %v1385, %v1455
    %1457 = vdwg.mxu0
    %1458 = vmatprep.subr.mxu0 %v429
    %1459 = vmatpush1.msra.mxu0 %v428
    %1460 = vmatprep.subr.mxu0 %v413
    %1461 = vmatpush1.msra.mxu0 %v412
    %1462 = vmatprep.subr.mxu0 %v397
    %1463 = vmatpush1.msra.mxu0 %v396
    %1464 = vmatprep.subr.mxu0 %v381
    %1465 = vmatpush1.msra.mxu0 %v380
    %1466 = vmatprep.subr.mxu0 %v365
    %1467 = vmatpush1.msra.mxu0 %v364
    %1468 = vmatprep.subr.mxu0 %v349
    %1469 = vmatpush1.msra.mxu0 %v348
    %1470 = vmatprep.subr.mxu0 %v333
    %1471 = vmatpush1.msra.mxu0 %v332
    %1472 = vmatprep.subr.mxu0 %v317
    %1473 = vmatpush1.msra.mxu0 %v316
    %1474 = vmatprep.subr.mxu0 %v301
    %1475 = vmatpush1.msra.mxu0 %v300
    %1476 = vmatprep.subr.mxu0 %v285
    %1477 = vmatpush1.msra.mxu0 %v284
    %1478 = vmatprep.subr.mxu0 %v269
    %1479 = vmatpush1.msra.mxu0 %v268
    %1480 = vmatprep.subr.mxu0 %v253
    %1481 = vmatpush1.msra.mxu0 %v252
    %1482 = vmatprep.subr.mxu0 %v237
    %1483 = vmatpush1.msra.mxu0 %v236
    %1484 = vmatprep.subr.mxu0 %v221
    %1485 = vmatpush1.msra.mxu0 %v220
    %1486 = vmatprep.subr.mxu0 %v205
    %1487 = vmatpush1.msra.mxu0 %v204
    %1488 = vmatprep.subr.mxu0 %v189
    %1489 = vmatpush1.msra.mxu0 %v188
    %1490 = vmatprep.subr.mxu0 %v685
    %1491 = vmatpush2.msra.mxu0 %v684
    %1492 = vmatprep.subr.mxu0 %v669
    %1493 = vmatpush2.msra.mxu0 %v668
    %1494 = vmatprep.subr.mxu0 %v653
    %1495 = vmatpush2.msra.mxu0 %v652
    %1496 = vmatprep.subr.mxu0 %v637
    %1497 = vmatpush2.msra.mxu0 %v636
    %1498 = vmatprep.subr.mxu0 %v621
    %1499 = vmatpush2.msra.mxu0 %v620
    %1500 = vmatprep.subr.mxu0 %v605
    %1501 = vmatpush2.msra.mxu0 %v604
    %1502 = vmatprep.subr.mxu0 %v589
    %1503 = vmatpush2.msra.mxu0 %v588
    %1504 = vmatprep.subr.mxu0 %v573
    %1505 = vmatpush2.msra.mxu0 %v572
    %1506 = vmatprep.subr.mxu0 %v557
    %1507 = vmatpush2.msra.mxu0 %v556
    %1508 = vmatprep.subr.mxu0 %v541
    %1509 = vmatpush2.msra.mxu0 %v540
    %1510 = vmatprep.subr.mxu0 %v525
    %1511 = vmatpush2.msra.mxu0 %v524
    %1512 = vmatprep.subr.mxu0 %v509
    %1513 = vmatpush2.msra.mxu0 %v508
    %1514 = vmatprep.subr.mxu0 %v493
    %1515 = vmatpush2.msra.mxu0 %v492
    %1516 = vmatprep.subr.mxu0 %v477
    %1517 = vmatpush2.msra.mxu0 %v476
    %1518 = vmatprep.subr.mxu0 %v461
    %1519 = vmatpush2.msra.mxu0 %v460
    %1520 = vmatprep.subr.mxu0 %v445
    %1521 = vmatpush2.msra.mxu0 %v444
    %1522 = vmatprep.mubr.f32.mxu0 %v1310
    %1523 = vmatmul.mubr.f32.gmra.mxu0 %v1302
    %v1524 = vpop.f32.mrf.mxu0
    %v1525 = vadd.f32 %v1225, %v1524
    %v1526 = vpop.f32.mrf.mxu0
    %v1527 = vadd.f32 %v1229, %v1526
    %1528 = vdwg.mxu0
    %1529 = vmatprep.subr.mxu0 %v941
    %1530 = vmatpush1.msra.mxu0 %v940
    %1531 = vmatprep.subr.mxu0 %v925
    %1532 = vmatpush1.msra.mxu0 %v924
    %1533 = vmatprep.subr.mxu0 %v909
    %1534 = vmatpush1.msra.mxu0 %v908
    %1535 = vmatprep.subr.mxu0 %v893
    %1536 = vmatpush1.msra.mxu0 %v892
    %1537 = vmatprep.subr.mxu0 %v877
    %1538 = vmatpush1.msra.mxu0 %v876
    %1539 = vmatprep.subr.mxu0 %v861
    %1540 = vmatpush1.msra.mxu0 %v860
    %1541 = vmatprep.subr.mxu0 %v845
    %1542 = vmatpush1.msra.mxu0 %v844
    %1543 = vmatprep.subr.mxu0 %v829
    %1544 = vmatpush1.msra.mxu0 %v828
    %1545 = vmatprep.subr.mxu0 %v813
    %1546 = vmatpush1.msra.mxu0 %v812
    %1547 = vmatprep.subr.mxu0 %v797
    %1548 = vmatpush1.msra.mxu0 %v796
    %1549 = vmatprep.subr.mxu0 %v781
    %1550 = vmatpush1.msra.mxu0 %v780
    %1551 = vmatprep.subr.mxu0 %v765
    %1552 = vmatpush1.msra.mxu0 %v764
    %1553 = vmatprep.subr.mxu0 %v749
    %1554 = vmatpush1.msra.mxu0 %v748
    %1555 = vmatprep.subr.mxu0 %v733
    %1556 = vmatpush1.msra.mxu0 %v732
    %1557 = vmatprep.subr.mxu0 %v717
    %1558 = vmatpush1.msra.mxu0 %v716
    %1559 = vmatprep.subr.mxu0 %v701
    %1560 = vmatpush1.msra.mxu0 %v700
    %1561 = vmatprep.subr.mxu0 %v1197
    %1562 = vmatpush2.msra.mxu0 %v1196
    %1563 = vmatprep.subr.mxu0 %v1181
    %1564 = vmatpush2.msra.mxu0 %v1180
    %1565 = vmatprep.subr.mxu0 %v1165
    %1566 = vmatpush2.msra.mxu0 %v1164
    %1567 = vmatprep.subr.mxu0 %v1149
    %1568 = vmatpush2.msra.mxu0 %v1148
    %1569 = vmatprep.subr.mxu0 %v1133
    %1570 = vmatpush2.msra.mxu0 %v1132
    %1571 = vmatprep.subr.mxu0 %v1117
    %1572 = vmatpush2.msra.mxu0 %v1116
    %1573 = vmatprep.subr.mxu0 %v1101
    %1574 = vmatpush2.msra.mxu0 %v1100
    %1575 = vmatprep.subr.mxu0 %v1085
    %1576 = vmatpush2.msra.mxu0 %v1084
    %1577 = vmatprep.subr.mxu0 %v1069
    %1578 = vmatpush2.msra.mxu0 %v1068
    %1579 = vmatprep.subr.mxu0 %v1053
    %1580 = vmatpush2.msra.mxu0 %v1052
    %1581 = vmatprep.subr.mxu0 %v1037
    %1582 = vmatpush2.msra.mxu0 %v1036
    %1583 = vmatprep.subr.mxu0 %v1021
    %1584 = vmatpush2.msra.mxu0 %v1020
    %1585 = vmatprep.subr.mxu0 %v1005
    %1586 = vmatpush2.msra.mxu0 %v1004
    %1587 = vmatprep.subr.mxu0 %v989
    %1588 = vmatpush2.msra.mxu0 %v988
    %1589 = vmatprep.subr.mxu0 %v973
    %1590 = vmatpush2.msra.mxu0 %v972
    %1591 = vmatprep.subr.mxu0 %v957
    %1592 = vmatpush2.msra.mxu0 %v956
    %1593 = vmatprep.mubr.f32.mxu0 %v1311
    %1594 = vmatmul.mubr.f32.gmra.mxu0 %v1309
    %v1595 = vpop.f32.mrf.mxu0
    %v1596 = vadd.f32 %v1525, %v1595
    %v1597 = vpop.f32.mrf.mxu0
    %v1598 = vadd.f32 %v1527, %v1597
    %1599 = vdwg.mxu0
    %1600 = vmatprep.subr.mxu0 %v431
    %1601 = vmatpush1.msra.mxu0 %v430
    %1602 = vmatprep.subr.mxu0 %v415
    %1603 = vmatpush1.msra.mxu0 %v414
    %1604 = vmatprep.subr.mxu0 %v399
    %1605 = vmatpush1.msra.mxu0 %v398
    %1606 = vmatprep.subr.mxu0 %v383
    %1607 = vmatpush1.msra.mxu0 %v382
    %1608 = vmatprep.subr.mxu0 %v367
    %1609 = vmatpush1.msra.mxu0 %v366
    %1610 = vmatprep.subr.mxu0 %v351
    %1611 = vmatpush1.msra.mxu0 %v350
    %1612 = vmatprep.subr.mxu0 %v335
    %1613 = vmatpush1.msra.mxu0 %v334
    %1614 = vmatprep.subr.mxu0 %v319
    %1615 = vmatpush1.msra.mxu0 %v318
    %1616 = vmatprep.subr.mxu0 %v303
    %1617 = vmatpush1.msra.mxu0 %v302
    %1618 = vmatprep.subr.mxu0 %v287
    %1619 = vmatpush1.msra.mxu0 %v286
    %1620 = vmatprep.subr.mxu0 %v271
    %1621 = vmatpush1.msra.mxu0 %v270
    %1622 = vmatprep.subr.mxu0 %v255
    %1623 = vmatpush1.msra.mxu0 %v254
    %1624 = vmatprep.subr.mxu0 %v239
    %1625 = vmatpush1.msra.mxu0 %v238
    %1626 = vmatprep.subr.mxu0 %v223
    %1627 = vmatpush1.msra.mxu0 %v222
    %1628 = vmatprep.subr.mxu0 %v207
    %1629 = vmatpush1.msra.mxu0 %v206
    %1630 = vmatprep.subr.mxu0 %v191
    %1631 = vmatpush1.msra.mxu0 %v190
    %1632 = vmatprep.subr.mxu0 %v687
    %1633 = vmatpush2.msra.mxu0 %v686
    %1634 = vmatprep.subr.mxu0 %v671
    %1635 = vmatpush2.msra.mxu0 %v670
    %1636 = vmatprep.subr.mxu0 %v655
    %1637 = vmatpush2.msra.mxu0 %v654
    %1638 = vmatprep.subr.mxu0 %v639
    %1639 = vmatpush2.msra.mxu0 %v638
    %1640 = vmatprep.subr.mxu0 %v623
    %1641 = vmatpush2.msra.mxu0 %v622
    %1642 = vmatprep.subr.mxu0 %v607
    %1643 = vmatpush2.msra.mxu0 %v606
    %1644 = vmatprep.subr.mxu0 %v591
    %1645 = vmatpush2.msra.mxu0 %v590
    %1646 = vmatprep.subr.mxu0 %v575
    %1647 = vmatpush2.msra.mxu0 %v574
    %1648 = vmatprep.subr.mxu0 %v559
    %1649 = vmatpush2.msra.mxu0 %v558
    %1650 = vmatprep.subr.mxu0 %v543
    %1651 = vmatpush2.msra.mxu0 %v542
    %1652 = vmatprep.subr.mxu0 %v527
    %1653 = vmatpush2.msra.mxu0 %v526
    %1654 = vmatprep.subr.mxu0 %v511
    %1655 = vmatpush2.msra.mxu0 %v510
    %1656 = vmatprep.subr.mxu0 %v495
    %1657 = vmatpush2.msra.mxu0 %v494
    %1658 = vmatprep.subr.mxu0 %v479
    %1659 = vmatpush2.msra.mxu0 %v478
    %1660 = vmatprep.subr.mxu0 %v463
    %1661 = vmatpush2.msra.mxu0 %v462
    %1662 = vmatprep.subr.mxu0 %v447
    %1663 = vmatpush2.msra.mxu0 %v446
    %1664 = vmatprep.mubr.f32.mxu0 %v1310
    %1665 = vmatmul.mubr.f32.gmra.mxu0 %v1302
    %v1666 = vpop.f32.mrf.mxu0
    %v1667 = vadd.f32 %v1233, %v1666
    %v1668 = vpop.f32.mrf.mxu0
    %v1669 = vadd.f32 %v1237, %v1668
    %1670 = vdwg.mxu0
    %1671 = vmatprep.subr.mxu0 %v943
    %1672 = vmatpush1.msra.mxu0 %v942
    %1673 = vmatprep.subr.mxu0 %v927
    %1674 = vmatpush1.msra.mxu0 %v926
    %1675 = vmatprep.subr.mxu0 %v911
    %1676 = vmatpush1.msra.mxu0 %v910
    %1677 = vmatprep.subr.mxu0 %v895
    %1678 = vmatpush1.msra.mxu0 %v894
    %1679 = vmatprep.subr.mxu0 %v879
    %1680 = vmatpush1.msra.mxu0 %v878
    %1681 = vmatprep.subr.mxu0 %v863
    %1682 = vmatpush1.msra.mxu0 %v862
    %1683 = vmatprep.subr.mxu0 %v847
    %1684 = vmatpush1.msra.mxu0 %v846
    %1685 = vmatprep.subr.mxu0 %v831
    %1686 = vmatpush1.msra.mxu0 %v830
    %1687 = vmatprep.subr.mxu0 %v815
    %1688 = vmatpush1.msra.mxu0 %v814
    %1689 = vmatprep.subr.mxu0 %v799
    %1690 = vmatpush1.msra.mxu0 %v798
    %1691 = vmatprep.subr.mxu0 %v783
    %1692 = vmatpush1.msra.mxu0 %v782
    %1693 = vmatprep.subr.mxu0 %v767
    %1694 = vmatpush1.msra.mxu0 %v766
    %1695 = vmatprep.subr.mxu0 %v751
    %1696 = vmatpush1.msra.mxu0 %v750
    %1697 = vmatprep.subr.mxu0 %v735
    %1698 = vmatpush1.msra.mxu0 %v734
    %1699 = vmatprep.subr.mxu0 %v719
    %1700 = vmatpush1.msra.mxu0 %v718
    %1701 = vmatprep.subr.mxu0 %v703
    %1702 = vmatpush1.msra.mxu0 %v702
    %1703 = vmatprep.subr.mxu0 %v1199
    %1704 = vmatpush2.msra.mxu0 %v1198
    %1705 = vmatprep.subr.mxu0 %v1183
    %1706 = vmatpush2.msra.mxu0 %v1182
    %1707 = vmatprep.subr.mxu0 %v1167
    %1708 = vmatpush2.msra.mxu0 %v1166
    %1709 = vmatprep.subr.mxu0 %v1151
    %1710 = vmatpush2.msra.mxu0 %v1150
    %1711 = vmatprep.subr.mxu0 %v1135
    %1712 = vmatpush2.msra.mxu0 %v1134
    %1713 = vmatprep.subr.mxu0 %v1119
    %1714 = vmatpush2.msra.mxu0 %v1118
    %1715 = vmatprep.subr.mxu0 %v1103
    %1716 = vmatpush2.msra.mxu0 %v1102
    %1717 = vmatprep.subr.mxu0 %v1087
    %1718 = vmatpush2.msra.mxu0 %v1086
    %1719 = vmatprep.subr.mxu0 %v1071
    %1720 = vmatpush2.msra.mxu0 %v1070
    %1721 = vmatprep.subr.mxu0 %v1055
    %1722 = vmatpush2.msra.mxu0 %v1054
    %1723 = vmatprep.subr.mxu0 %v1039
    %1724 = vmatpush2.msra.mxu0 %v1038
    %1725 = vmatprep.subr.mxu0 %v1023
    %1726 = vmatpush2.msra.mxu0 %v1022
    %1727 = vmatprep.subr.mxu0 %v1007
    %1728 = vmatpush2.msra.mxu0 %v1006
    %1729 = vmatprep.subr.mxu0 %v991
    %1730 = vmatpush2.msra.mxu0 %v990
    %1731 = vmatprep.subr.mxu0 %v975
    %1732 = vmatpush2.msra.mxu0 %v974
    %1733 = vmatprep.subr.mxu0 %v959
    %1734 = vmatpush2.msra.mxu0 %v958
    %1735 = vmatprep.mubr.f32.mxu0 %v1311
    %1736 = vmatmul.mubr.f32.gmra.mxu0 %v1309
    %v1737 = vpop.f32.mrf.mxu0
    %v1738 = vadd.f32 %v1667, %v1737
    %v1739 = vpop.f32.mrf.mxu0
    %v1740 = vadd.f32 %v1669, %v1739
    %1741 = vdwg.mxu0
    %1742 = vmatprep.subr.mxu0 %v433
    %1743 = vmatpush1.msra.mxu0 %v432
    %1744 = vmatprep.subr.mxu0 %v417
    %1745 = vmatpush1.msra.mxu0 %v416
    %1746 = vmatprep.subr.mxu0 %v401
    %1747 = vmatpush1.msra.mxu0 %v400
    %1748 = vmatprep.subr.mxu0 %v385
    %1749 = vmatpush1.msra.mxu0 %v384
    %1750 = vmatprep.subr.mxu0 %v369
    %1751 = vmatpush1.msra.mxu0 %v368
    %1752 = vmatprep.subr.mxu0 %v353
    %1753 = vmatpush1.msra.mxu0 %v352
    %1754 = vmatprep.subr.mxu0 %v337
    %1755 = vmatpush1.msra.mxu0 %v336
    %1756 = vmatprep.subr.mxu0 %v321
    %1757 = vmatpush1.msra.mxu0 %v320
    %1758 = vmatprep.subr.mxu0 %v305
    %1759 = vmatpush1.msra.mxu0 %v304
    %1760 = vmatprep.subr.mxu0 %v289
    %1761 = vmatpush1.msra.mxu0 %v288
    %1762 = vmatprep.subr.mxu0 %v273
    %1763 = vmatpush1.msra.mxu0 %v272
    %1764 = vmatprep.subr.mxu0 %v257
    %1765 = vmatpush1.msra.mxu0 %v256
    %1766 = vmatprep.subr.mxu0 %v241
    %1767 = vmatpush1.msra.mxu0 %v240
    %1768 = vmatprep.subr.mxu0 %v225
    %1769 = vmatpush1.msra.mxu0 %v224
    %1770 = vmatprep.subr.mxu0 %v209
    %1771 = vmatpush1.msra.mxu0 %v208
    %1772 = vmatprep.subr.mxu0 %v193
    %1773 = vmatpush1.msra.mxu0 %v192
    %1774 = vmatprep.subr.mxu0 %v689
    %1775 = vmatpush2.msra.mxu0 %v688
    %1776 = vmatprep.subr.mxu0 %v673
    %1777 = vmatpush2.msra.mxu0 %v672
    %1778 = vmatprep.subr.mxu0 %v657
    %1779 = vmatpush2.msra.mxu0 %v656
    %1780 = vmatprep.subr.mxu0 %v641
    %1781 = vmatpush2.msra.mxu0 %v640
    %1782 = vmatprep.subr.mxu0 %v625
    %1783 = vmatpush2.msra.mxu0 %v624
    %1784 = vmatprep.subr.mxu0 %v609
    %1785 = vmatpush2.msra.mxu0 %v608
    %1786 = vmatprep.subr.mxu0 %v593
    %1787 = vmatpush2.msra.mxu0 %v592
    %1788 = vmatprep.subr.mxu0 %v577
    %1789 = vmatpush2.msra.mxu0 %v576
    %1790 = vmatprep.subr.mxu0 %v561
    %1791 = vmatpush2.msra.mxu0 %v560
    %1792 = vmatprep.subr.mxu0 %v545
    %1793 = vmatpush2.msra.mxu0 %v544
    %1794 = vmatprep.subr.mxu0 %v529
    %1795 = vmatpush2.msra.mxu0 %v528
    %1796 = vmatprep.subr.mxu0 %v513
    %1797 = vmatpush2.msra.mxu0 %v512
    %1798 = vmatprep.subr.mxu0 %v497
    %1799 = vmatpush2.msra.mxu0 %v496
    %1800 = vmatprep.subr.mxu0 %v481
    %1801 = vmatpush2.msra.mxu0 %v480
    %1802 = vmatprep.subr.mxu0 %v465
    %1803 = vmatpush2.msra.mxu0 %v464
    %1804 = vmatprep.subr.mxu0 %v449
    %1805 = vmatpush2.msra.mxu0 %v448
    %1806 = vmatprep.mubr.f32.mxu0 %v1310
    %1807 = vmatmul.mubr.f32.gmra.mxu0 %v1302
    %v1808 = vpop.f32.mrf.mxu0
    %v1809 = vadd.f32 %v1241, %v1808
    %v1810 = vpop.f32.mrf.mxu0
    %v1811 = vadd.f32 %v1245, %v1810
    %1812 = vdwg.mxu0
    %1813 = vmatprep.subr.mxu0 %v945
    %1814 = vmatpush1.msra.mxu0 %v944
    %1815 = vmatprep.subr.mxu0 %v929
    %1816 = vmatpush1.msra.mxu0 %v928
    %1817 = vmatprep.subr.mxu0 %v913
    %1818 = vmatpush1.msra.mxu0 %v912
    %1819 = vmatprep.subr.mxu0 %v897
    %1820 = vmatpush1.msra.mxu0 %v896
    %1821 = vmatprep.subr.mxu0 %v881
    %1822 = vmatpush1.msra.mxu0 %v880
    %1823 = vmatprep.subr.mxu0 %v865
    %1824 = vmatpush1.msra.mxu0 %v864
    %1825 = vmatprep.subr.mxu0 %v849
    %1826 = vmatpush1.msra.mxu0 %v848
    %1827 = vmatprep.subr.mxu0 %v833
    %1828 = vmatpush1.msra.mxu0 %v832
    %1829 = vmatprep.subr.mxu0 %v817
    %1830 = vmatpush1.msra.mxu0 %v816
    %1831 = vmatprep.subr.mxu0 %v801
    %1832 = vmatpush1.msra.mxu0 %v800
    %1833 = vmatprep.subr.mxu0 %v785
    %1834 = vmatpush1.msra.mxu0 %v784
    %1835 = vmatprep.subr.mxu0 %v769
    %1836 = vmatpush1.msra.mxu0 %v768
    %1837 = vmatprep.subr.mxu0 %v753
    %1838 = vmatpush1.msra.mxu0 %v752
    %1839 = vmatprep.subr.mxu0 %v737
    %1840 = vmatpush1.msra.mxu0 %v736
    %1841 = vmatprep.subr.mxu0 %v721
    %1842 = vmatpush1.msra.mxu0 %v720
    %1843 = vmatprep.subr.mxu0 %v705
    %1844 = vmatpush1.msra.mxu0 %v704
    %1845 = vmatprep.subr.mxu0 %v1201
    %1846 = vmatpush2.msra.mxu0 %v1200
    %1847 = vmatprep.subr.mxu0 %v1185
    %1848 = vmatpush2.msra.mxu0 %v1184
    %1849 = vmatprep.subr.mxu0 %v1169
    %1850 = vmatpush2.msra.mxu0 %v1168
    %1851 = vmatprep.subr.mxu0 %v1153
    %1852 = vmatpush2.msra.mxu0 %v1152
    %1853 = vmatprep.subr.mxu0 %v1137
    %1854 = vmatpush2.msra.mxu0 %v1136
    %1855 = vmatprep.subr.mxu0 %v1121
    %1856 = vmatpush2.msra.mxu0 %v1120
    %1857 = vmatprep.subr.mxu0 %v1105
    %1858 = vmatpush2.msra.mxu0 %v1104
    %1859 = vmatprep.subr.mxu0 %v1089
    %1860 = vmatpush2.msra.mxu0 %v1088
    %1861 = vmatprep.subr.mxu0 %v1073
    %1862 = vmatpush2.msra.mxu0 %v1072
    %1863 = vmatprep.subr.mxu0 %v1057
    %1864 = vmatpush2.msra.mxu0 %v1056
    %1865 = vmatprep.subr.mxu0 %v1041
    %1866 = vmatpush2.msra.mxu0 %v1040
    %1867 = vmatprep.subr.mxu0 %v1025
    %1868 = vmatpush2.msra.mxu0 %v1024
    %1869 = vmatprep.subr.mxu0 %v1009
    %1870 = vmatpush2.msra.mxu0 %v1008
    %1871 = vmatprep.subr.mxu0 %v993
    %1872 = vmatpush2.msra.mxu0 %v992
    %1873 = vmatprep.subr.mxu0 %v977
    %1874 = vmatpush2.msra.mxu0 %v976
    %1875 = vmatprep.subr.mxu0 %v961
    %1876 = vmatpush2.msra.mxu0 %v960
    %1877 = vmatprep.mubr.f32.mxu0 %v1311
    %1878 = vmatmul.mubr.f32.gmra.mxu0 %v1309
    %v1879 = vpop.f32.mrf.mxu0
    %v1880 = vadd.f32 %v1809, %v1879
    %v1881 = vpop.f32.mrf.mxu0
    %v1882 = vadd.f32 %v1811, %v1881
    %1883 = vdwg.mxu0
    %1884 = vmatprep.subr.mxu0 %v435
    %1885 = vmatpush1.msra.mxu0 %v434
    %1886 = vmatprep.subr.mxu0 %v419
    %1887 = vmatpush1.msra.mxu0 %v418
    %1888 = vmatprep.subr.mxu0 %v403
    %1889 = vmatpush1.msra.mxu0 %v402
    %1890 = vmatprep.subr.mxu0 %v387
    %1891 = vmatpush1.msra.mxu0 %v386
    %1892 = vmatprep.subr.mxu0 %v371
    %1893 = vmatpush1.msra.mxu0 %v370
    %1894 = vmatprep.subr.mxu0 %v355
    %1895 = vmatpush1.msra.mxu0 %v354
    %1896 = vmatprep.subr.mxu0 %v339
    %1897 = vmatpush1.msra.mxu0 %v338
    %1898 = vmatprep.subr.mxu0 %v323
    %1899 = vmatpush1.msra.mxu0 %v322
    %1900 = vmatprep.subr.mxu0 %v307
    %1901 = vmatpush1.msra.mxu0 %v306
    %1902 = vmatprep.subr.mxu0 %v291
    %1903 = vmatpush1.msra.mxu0 %v290
    %1904 = vmatprep.subr.mxu0 %v275
    %1905 = vmatpush1.msra.mxu0 %v274
    %1906 = vmatprep.subr.mxu0 %v259
    %1907 = vmatpush1.msra.mxu0 %v258
    %1908 = vmatprep.subr.mxu0 %v243
    %1909 = vmatpush1.msra.mxu0 %v242
    %1910 = vmatprep.subr.mxu0 %v227
    %1911 = vmatpush1.msra.mxu0 %v226
    %1912 = vmatprep.subr.mxu0 %v211
    %1913 = vmatpush1.msra.mxu0 %v210
    %1914 = vmatprep.subr.mxu0 %v195
    %1915 = vmatpush1.msra.mxu0 %v194
    %1916 = vmatprep.subr.mxu0 %v691
    %1917 = vmatpush2.msra.mxu0 %v690
    %1918 = vmatprep.subr.mxu0 %v675
    %1919 = vmatpush2.msra.mxu0 %v674
    %1920 = vmatprep.subr.mxu0 %v659
    %1921 = vmatpush2.msra.mxu0 %v658
    %1922 = vmatprep.subr.mxu0 %v643
    %1923 = vmatpush2.msra.mxu0 %v642
    %1924 = vmatprep.subr.mxu0 %v627
    %1925 = vmatpush2.msra.mxu0 %v626
    %1926 = vmatprep.subr.mxu0 %v611
    %1927 = vmatpush2.msra.mxu0 %v610
    %1928 = vmatprep.subr.mxu0 %v595
    %1929 = vmatpush2.msra.mxu0 %v594
    %1930 = vmatprep.subr.mxu0 %v579
    %1931 = vmatpush2.msra.mxu0 %v578
    %1932 = vmatprep.subr.mxu0 %v563
    %1933 = vmatpush2.msra.mxu0 %v562
    %1934 = vmatprep.subr.mxu0 %v547
    %1935 = vmatpush2.msra.mxu0 %v546
    %1936 = vmatprep.subr.mxu0 %v531
    %1937 = vmatpush2.msra.mxu0 %v530
    %1938 = vmatprep.subr.mxu0 %v515
    %1939 = vmatpush2.msra.mxu0 %v514
    %1940 = vmatprep.subr.mxu0 %v499
    %1941 = vmatpush2.msra.mxu0 %v498
    %1942 = vmatprep.subr.mxu0 %v483
    %1943 = vmatpush2.msra.mxu0 %v482
    %1944 = vmatprep.subr.mxu0 %v467
    %1945 = vmatpush2.msra.mxu0 %v466
    %1946 = vmatprep.subr.mxu0 %v451
    %1947 = vmatpush2.msra.mxu0 %v450
    %1948 = vmatprep.mubr.f32.mxu0 %v1310
    %1949 = vmatmul.mubr.f32.gmra.mxu0 %v1302
    %v1950 = vpop.f32.mrf.mxu0
    %v1951 = vadd.f32 %v1249, %v1950
    %v1952 = vpop.f32.mrf.mxu0
    %v1953 = vadd.f32 %v1253, %v1952
    %1954 = vdwg.mxu0
    %1955 = vmatprep.subr.mxu0 %v947
    %1956 = vmatpush1.msra.mxu0 %v946
    %1957 = vmatprep.subr.mxu0 %v931
    %1958 = vmatpush1.msra.mxu0 %v930
    %1959 = vmatprep.subr.mxu0 %v915
    %1960 = vmatpush1.msra.mxu0 %v914
    %1961 = vmatprep.subr.mxu0 %v899
    %1962 = vmatpush1.msra.mxu0 %v898
    %1963 = vmatprep.subr.mxu0 %v883
    %1964 = vmatpush1.msra.mxu0 %v882
    %1965 = vmatprep.subr.mxu0 %v867
    %1966 = vmatpush1.msra.mxu0 %v866
    %1967 = vmatprep.subr.mxu0 %v851
    %1968 = vmatpush1.msra.mxu0 %v850
    %1969 = vmatprep.subr.mxu0 %v835
    %1970 = vmatpush1.msra.mxu0 %v834
    %1971 = vmatprep.subr.mxu0 %v819
    %1972 = vmatpush1.msra.mxu0 %v818
    %1973 = vmatprep.subr.mxu0 %v803
    %1974 = vmatpush1.msra.mxu0 %v802
    %1975 = vmatprep.subr.mxu0 %v787
    %1976 = vmatpush1.msra.mxu0 %v786
    %1977 = vmatprep.subr.mxu0 %v771
    %1978 = vmatpush1.msra.mxu0 %v770
    %1979 = vmatprep.subr.mxu0 %v755
    %1980 = vmatpush1.msra.mxu0 %v754
    %1981 = vmatprep.subr.mxu0 %v739
    %1982 = vmatpush1.msra.mxu0 %v738
    %1983 = vmatprep.subr.mxu0 %v723
    %1984 = vmatpush1.msra.mxu0 %v722
    %1985 = vmatprep.subr.mxu0 %v707
    %1986 = vmatpush1.msra.mxu0 %v706
    %1987 = vmatprep.subr.mxu0 %v1203
    %1988 = vmatpush2.msra.mxu0 %v1202
    %1989 = vmatprep.subr.mxu0 %v1187
    %1990 = vmatpush2.msra.mxu0 %v1186
    %1991 = vmatprep.subr.mxu0 %v1171
    %1992 = vmatpush2.msra.mxu0 %v1170
    %1993 = vmatprep.subr.mxu0 %v1155
    %1994 = vmatpush2.msra.mxu0 %v1154
    %1995 = vmatprep.subr.mxu0 %v1139
    %1996 = vmatpush2.msra.mxu0 %v1138
    %1997 = vmatprep.subr.mxu0 %v1123
    %1998 = vmatpush2.msra.mxu0 %v1122
    %1999 = vmatprep.subr.mxu0 %v1107
    %2000 = vmatpush2.msra.mxu0 %v1106
    %2001 = vmatprep.subr.mxu0 %v1091
    %2002 = vmatpush2.msra.mxu0 %v1090
    %2003 = vmatprep.subr.mxu0 %v1075
    %2004 = vmatpush2.msra.mxu0 %v1074
    %2005 = vmatprep.subr.mxu0 %v1059
    %2006 = vmatpush2.msra.mxu0 %v1058
    %2007 = vmatprep.subr.mxu0 %v1043
    %2008 = vmatpush2.msra.mxu0 %v1042
    %2009 = vmatprep.subr.mxu0 %v1027
    %2010 = vmatpush2.msra.mxu0 %v1026
    %2011 = vmatprep.subr.mxu0 %v1011
    %2012 = vmatpush2.msra.mxu0 %v1010
    %2013 = vmatprep.subr.mxu0 %v995
    %2014 = vmatpush2.msra.mxu0 %v994
    %2015 = vmatprep.subr.mxu0 %v979
    %2016 = vmatpush2.msra.mxu0 %v978
    %2017 = vmatprep.subr.mxu0 %v963
    %2018 = vmatpush2.msra.mxu0 %v962
    %2019 = vmatprep.mubr.f32.mxu0 %v1311
    %2020 = vmatmul.mubr.f32.gmra.mxu0 %v1309
    %v2021 = vpop.f32.mrf.mxu0
    %v2022 = vadd.f32 %v1951, %v2021
    %v2023 = vpop.f32.mrf.mxu0
    %v2024 = vadd.f32 %v1953, %v2023
    %2025 = vdwg.mxu0
    %2026 = vmatprep.subr.mxu0 %v437
    %2027 = vmatpush1.msra.mxu0 %v436
    %2028 = vmatprep.subr.mxu0 %v421
    %2029 = vmatpush1.msra.mxu0 %v420
    %2030 = vmatprep.subr.mxu0 %v405
    %2031 = vmatpush1.msra.mxu0 %v404
    %2032 = vmatprep.subr.mxu0 %v389
    %2033 = vmatpush1.msra.mxu0 %v388
    %2034 = vmatprep.subr.mxu0 %v373
    %2035 = vmatpush1.msra.mxu0 %v372
    %2036 = vmatprep.subr.mxu0 %v357
    %2037 = vmatpush1.msra.mxu0 %v356
    %2038 = vmatprep.subr.mxu0 %v341
    %2039 = vmatpush1.msra.mxu0 %v340
    %2040 = vmatprep.subr.mxu0 %v325
    %2041 = vmatpush1.msra.mxu0 %v324
    %2042 = vmatprep.subr.mxu0 %v309
    %2043 = vmatpush1.msra.mxu0 %v308
    %2044 = vmatprep.subr.mxu0 %v293
    %2045 = vmatpush1.msra.mxu0 %v292
    %2046 = vmatprep.subr.mxu0 %v277
    %2047 = vmatpush1.msra.mxu0 %v276
    %2048 = vmatprep.subr.mxu0 %v261
    %2049 = vmatpush1.msra.mxu0 %v260
    %2050 = vmatprep.subr.mxu0 %v245
    %2051 = vmatpush1.msra.mxu0 %v244
    %2052 = vmatprep.subr.mxu0 %v229
    %2053 = vmatpush1.msra.mxu0 %v228
    %2054 = vmatprep.subr.mxu0 %v213
    %2055 = vmatpush1.msra.mxu0 %v212
    %2056 = vmatprep.subr.mxu0 %v197
    %2057 = vmatpush1.msra.mxu0 %v196
    %2058 = vmatprep.subr.mxu0 %v693
    %2059 = vmatpush2.msra.mxu0 %v692
    %2060 = vmatprep.subr.mxu0 %v677
    %2061 = vmatpush2.msra.mxu0 %v676
    %2062 = vmatprep.subr.mxu0 %v661
    %2063 = vmatpush2.msra.mxu0 %v660
    %2064 = vmatprep.subr.mxu0 %v645
    %2065 = vmatpush2.msra.mxu0 %v644
    %2066 = vmatprep.subr.mxu0 %v629
    %2067 = vmatpush2.msra.mxu0 %v628
    %2068 = vmatprep.subr.mxu0 %v613
    %2069 = vmatpush2.msra.mxu0 %v612
    %2070 = vmatprep.subr.mxu0 %v597
    %2071 = vmatpush2.msra.mxu0 %v596
    %2072 = vmatprep.subr.mxu0 %v581
    %2073 = vmatpush2.msra.mxu0 %v580
    %2074 = vmatprep.subr.mxu0 %v565
    %2075 = vmatpush2.msra.mxu0 %v564
    %2076 = vmatprep.subr.mxu0 %v549
    %2077 = vmatpush2.msra.mxu0 %v548
    %2078 = vmatprep.subr.mxu0 %v533
    %2079 = vmatpush2.msra.mxu0 %v532
    %2080 = vmatprep.subr.mxu0 %v517
    %2081 = vmatpush2.msra.mxu0 %v516
    %2082 = vmatprep.subr.mxu0 %v501
    %2083 = vmatpush2.msra.mxu0 %v500
    %2084 = vmatprep.subr.mxu0 %v485
    %2085 = vmatpush2.msra.mxu0 %v484
    %2086 = vmatprep.subr.mxu0 %v469
    %2087 = vmatpush2.msra.mxu0 %v468
    %2088 = vmatprep.subr.mxu0 %v453
    %2089 = vmatpush2.msra.mxu0 %v452
    %2090 = vmatprep.mubr.f32.mxu0 %v1310
    %2091 = vmatmul.mubr.f32.gmra.mxu0 %v1302
    %v2092 = vpop.f32.mrf.mxu0
    %v2093 = vadd.f32 %v1257, %v2092
    %v2094 = vpop.f32.mrf.mxu0
    %v2095 = vadd.f32 %v1261, %v2094
    %2096 = vdwg.mxu0
    %2097 = vmatprep.subr.mxu0 %v949
    %2098 = vmatpush1.msra.mxu0 %v948
    %2099 = vmatprep.subr.mxu0 %v933
    %2100 = vmatpush1.msra.mxu0 %v932
    %2101 = vmatprep.subr.mxu0 %v917
    %2102 = vmatpush1.msra.mxu0 %v916
    %2103 = vmatprep.subr.mxu0 %v901
    %2104 = vmatpush1.msra.mxu0 %v900
    %2105 = vmatprep.subr.mxu0 %v885
    %2106 = vmatpush1.msra.mxu0 %v884
    %2107 = vmatprep.subr.mxu0 %v869
    %2108 = vmatpush1.msra.mxu0 %v868
    %2109 = vmatprep.subr.mxu0 %v853
    %2110 = vmatpush1.msra.mxu0 %v852
    %2111 = vmatprep.subr.mxu0 %v837
    %2112 = vmatpush1.msra.mxu0 %v836
    %2113 = vmatprep.subr.mxu0 %v821
    %2114 = vmatpush1.msra.mxu0 %v820
    %2115 = vmatprep.subr.mxu0 %v805
    %2116 = vmatpush1.msra.mxu0 %v804
    %2117 = vmatprep.subr.mxu0 %v789
    %2118 = vmatpush1.msra.mxu0 %v788
    %2119 = vmatprep.subr.mxu0 %v773
    %2120 = vmatpush1.msra.mxu0 %v772
    %2121 = vmatprep.subr.mxu0 %v757
    %2122 = vmatpush1.msra.mxu0 %v756
    %2123 = vmatprep.subr.mxu0 %v741
    %2124 = vmatpush1.msra.mxu0 %v740
    %2125 = vmatprep.subr.mxu0 %v725
    %2126 = vmatpush1.msra.mxu0 %v724
    %2127 = vmatprep.subr.mxu0 %v709
    %2128 = vmatpush1.msra.mxu0 %v708
    %2129 = vmatprep.subr.mxu0 %v1205
    %2130 = vmatpush2.msra.mxu0 %v1204
    %2131 = vmatprep.subr.mxu0 %v1189
    %2132 = vmatpush2.msra.mxu0 %v1188
    %2133 = vmatprep.subr.mxu0 %v1173
    %2134 = vmatpush2.msra.mxu0 %v1172
    %2135 = vmatprep.subr.mxu0 %v1157
    %2136 = vmatpush2.msra.mxu0 %v1156
    %2137 = vmatprep.subr.mxu0 %v1141
    %2138 = vmatpush2.msra.mxu0 %v1140
    %2139 = vmatprep.subr.mxu0 %v1125
    %2140 = vmatpush2.msra.mxu0 %v1124
    %2141 = vmatprep.subr.mxu0 %v1109
    %2142 = vmatpush2.msra.mxu0 %v1108
    %2143 = vmatprep.subr.mxu0 %v1093
    %2144 = vmatpush2.msra.mxu0 %v1092
    %2145 = vmatprep.subr.mxu0 %v1077
    %2146 = vmatpush2.msra.mxu0 %v1076
    %2147 = vmatprep.subr.mxu0 %v1061
    %2148 = vmatpush2.msra.mxu0 %v1060
    %2149 = vmatprep.subr.mxu0 %v1045
    %2150 = vmatpush2.msra.mxu0 %v1044
    %2151 = vmatprep.subr.mxu0 %v1029
    %2152 = vmatpush2.msra.mxu0 %v1028
    %2153 = vmatprep.subr.mxu0 %v1013
    %2154 = vmatpush2.msra.mxu0 %v1012
    %2155 = vmatprep.subr.mxu0 %v997
    %2156 = vmatpush2.msra.mxu0 %v996
    %2157 = vmatprep.subr.mxu0 %v981
    %2158 = vmatpush2.msra.mxu0 %v980
    %2159 = vmatprep.subr.mxu0 %v965
    %2160 = vmatpush2.msra.mxu0 %v964
    %2161 = vmatprep.mubr.f32.mxu0 %v1311
    %2162 = vmatmul.mubr.f32.gmra.mxu0 %v1309
    %v2163 = vpop.f32.mrf.mxu0
    %v2164 = vadd.f32 %v2093, %v2163
    %v2165 = vpop.f32.mrf.mxu0
    %v2166 = vadd.f32 %v2095, %v2165
    %2167 = vdwg.mxu0
    %2168 = vmatprep.subr.mxu0 %v439
    %2169 = vmatpush1.msra.mxu0 %v438
    %2170 = vmatprep.subr.mxu0 %v423
    %2171 = vmatpush1.msra.mxu0 %v422
    %2172 = vmatprep.subr.mxu0 %v407
    %2173 = vmatpush1.msra.mxu0 %v406
    %2174 = vmatprep.subr.mxu0 %v391
    %2175 = vmatpush1.msra.mxu0 %v390
    %2176 = vmatprep.subr.mxu0 %v375
    %2177 = vmatpush1.msra.mxu0 %v374
    %2178 = vmatprep.subr.mxu0 %v359
    %2179 = vmatpush1.msra.mxu0 %v358
    %2180 = vmatprep.subr.mxu0 %v343
    %2181 = vmatpush1.msra.mxu0 %v342
    %2182 = vmatprep.subr.mxu0 %v327
    %2183 = vmatpush1.msra.mxu0 %v326
    %2184 = vmatprep.subr.mxu0 %v311
    %2185 = vmatpush1.msra.mxu0 %v310
    %2186 = vmatprep.subr.mxu0 %v295
    %2187 = vmatpush1.msra.mxu0 %v294
    %2188 = vmatprep.subr.mxu0 %v279
    %2189 = vmatpush1.msra.mxu0 %v278
    %2190 = vmatprep.subr.mxu0 %v263
    %2191 = vmatpush1.msra.mxu0 %v262
    %2192 = vmatprep.subr.mxu0 %v247
    %2193 = vmatpush1.msra.mxu0 %v246
    %2194 = vmatprep.subr.mxu0 %v231
    %2195 = vmatpush1.msra.mxu0 %v230
    %2196 = vmatprep.subr.mxu0 %v215
    %2197 = vmatpush1.msra.mxu0 %v214
    %2198 = vmatprep.subr.mxu0 %v199
    %2199 = vmatpush1.msra.mxu0 %v198
    %2200 = vmatprep.subr.mxu0 %v695
    %2201 = vmatpush2.msra.mxu0 %v694
    %2202 = vmatprep.subr.mxu0 %v679
    %2203 = vmatpush2.msra.mxu0 %v678
    %2204 = vmatprep.subr.mxu0 %v663
    %2205 = vmatpush2.msra.mxu0 %v662
    %2206 = vmatprep.subr.mxu0 %v647
    %2207 = vmatpush2.msra.mxu0 %v646
    %2208 = vmatprep.subr.mxu0 %v631
    %2209 = vmatpush2.msra.mxu0 %v630
    %2210 = vmatprep.subr.mxu0 %v615
    %2211 = vmatpush2.msra.mxu0 %v614
    %2212 = vmatprep.subr.mxu0 %v599
    %2213 = vmatpush2.msra.mxu0 %v598
    %2214 = vmatprep.subr.mxu0 %v583
    %2215 = vmatpush2.msra.mxu0 %v582
    %2216 = vmatprep.subr.mxu0 %v567
    %2217 = vmatpush2.msra.mxu0 %v566
    %2218 = vmatprep.subr.mxu0 %v551
    %2219 = vmatpush2.msra.mxu0 %v550
    %2220 = vmatprep.subr.mxu0 %v535
    %2221 = vmatpush2.msra.mxu0 %v534
    %2222 = vmatprep.subr.mxu0 %v519
    %2223 = vmatpush2.msra.mxu0 %v518
    %2224 = vmatprep.subr.mxu0 %v503
    %2225 = vmatpush2.msra.mxu0 %v502
    %2226 = vmatprep.subr.mxu0 %v487
    %2227 = vmatpush2.msra.mxu0 %v486
    %2228 = vmatprep.subr.mxu0 %v471
    %2229 = vmatpush2.msra.mxu0 %v470
    %2230 = vmatprep.subr.mxu0 %v455
    %2231 = vmatpush2.msra.mxu0 %v454
    %2232 = vmatprep.mubr.f32.mxu0 %v1310
    %2233 = vmatmul.mubr.f32.gmra.mxu0 %v1302
    %v2234 = vpop.f32.mrf.mxu0
    %v2235 = vadd.f32 %v1265, %v2234
    %v2236 = vpop.f32.mrf.mxu0
    %v2237 = vadd.f32 %v1269, %v2236
    %2238 = vdwg.mxu0
    %2239 = vmatprep.subr.mxu0 %v951
    %2240 = vmatpush1.msra.mxu0 %v950
    %2241 = vmatprep.subr.mxu0 %v935
    %2242 = vmatpush1.msra.mxu0 %v934
    %2243 = vmatprep.subr.mxu0 %v919
    %2244 = vmatpush1.msra.mxu0 %v918
    %2245 = vmatprep.subr.mxu0 %v903
    %2246 = vmatpush1.msra.mxu0 %v902
    %2247 = vmatprep.subr.mxu0 %v887
    %2248 = vmatpush1.msra.mxu0 %v886
    %2249 = vmatprep.subr.mxu0 %v871
    %2250 = vmatpush1.msra.mxu0 %v870
    %2251 = vmatprep.subr.mxu0 %v855
    %2252 = vmatpush1.msra.mxu0 %v854
    %2253 = vmatprep.subr.mxu0 %v839
    %2254 = vmatpush1.msra.mxu0 %v838
    %2255 = vmatprep.subr.mxu0 %v823
    %2256 = vmatpush1.msra.mxu0 %v822
    %2257 = vmatprep.subr.mxu0 %v807
    %2258 = vmatpush1.msra.mxu0 %v806
    %2259 = vmatprep.subr.mxu0 %v791
    %2260 = vmatpush1.msra.mxu0 %v790
    %2261 = vmatprep.subr.mxu0 %v775
    %2262 = vmatpush1.msra.mxu0 %v774
    %2263 = vmatprep.subr.mxu0 %v759
    %2264 = vmatpush1.msra.mxu0 %v758
    %2265 = vmatprep.subr.mxu0 %v743
    %2266 = vmatpush1.msra.mxu0 %v742
    %2267 = vmatprep.subr.mxu0 %v727
    %2268 = vmatpush1.msra.mxu0 %v726
    %2269 = vmatprep.subr.mxu0 %v711
    %2270 = vmatpush1.msra.mxu0 %v710
    %2271 = vmatprep.subr.mxu0 %v1207
    %2272 = vmatpush2.msra.mxu0 %v1206
    %2273 = vmatprep.subr.mxu0 %v1191
    %2274 = vmatpush2.msra.mxu0 %v1190
    %2275 = vmatprep.subr.mxu0 %v1175
    %2276 = vmatpush2.msra.mxu0 %v1174
    %2277 = vmatprep.subr.mxu0 %v1159
    %2278 = vmatpush2.msra.mxu0 %v1158
    %2279 = vmatprep.subr.mxu0 %v1143
    %2280 = vmatpush2.msra.mxu0 %v1142
    %2281 = vmatprep.subr.mxu0 %v1127
    %2282 = vmatpush2.msra.mxu0 %v1126
    %2283 = vmatprep.subr.mxu0 %v1111
    %2284 = vmatpush2.msra.mxu0 %v1110
    %2285 = vmatprep.subr.mxu0 %v1095
    %2286 = vmatpush2.msra.mxu0 %v1094
    %2287 = vmatprep.subr.mxu0 %v1079
    %2288 = vmatpush2.msra.mxu0 %v1078
    %2289 = vmatprep.subr.mxu0 %v1063
    %2290 = vmatpush2.msra.mxu0 %v1062
    %2291 = vmatprep.subr.mxu0 %v1047
    %2292 = vmatpush2.msra.mxu0 %v1046
    %2293 = vmatprep.subr.mxu0 %v1031
    %2294 = vmatpush2.msra.mxu0 %v1030
    %2295 = vmatprep.subr.mxu0 %v1015
    %2296 = vmatpush2.msra.mxu0 %v1014
    %2297 = vmatprep.subr.mxu0 %v999
    %2298 = vmatpush2.msra.mxu0 %v998
    %2299 = vmatprep.subr.mxu0 %v983
    %2300 = vmatpush2.msra.mxu0 %v982
    %2301 = vmatprep.subr.mxu0 %v967
    %2302 = vmatpush2.msra.mxu0 %v966
    %2303 = vmatprep.mubr.f32.mxu0 %v1311
    %2304 = vmatmul.mubr.f32.gmra.mxu0 %v1309
    %v2305 = vpop.f32.mrf.mxu0
    %v2306 = vadd.f32 %v2235, %v2305
    %v2307 = vpop.f32.mrf.mxu0
    %v2308 = vadd.f32 %v2237, %v2307
    %2309 = vdwg.mxu0
    %2310 = vmatprep.subr.mxu0 %v441
    %2311 = vmatpush1.msra.mxu0 %v440
    %2312 = vmatprep.subr.mxu0 %v425
    %2313 = vmatpush1.msra.mxu0 %v424
    %2314 = vmatprep.subr.mxu0 %v409
    %2315 = vmatpush1.msra.mxu0 %v408
    %2316 = vmatprep.subr.mxu0 %v393
    %2317 = vmatpush1.msra.mxu0 %v392
    %2318 = vmatprep.subr.mxu0 %v377
    %2319 = vmatpush1.msra.mxu0 %v376
    %2320 = vmatprep.subr.mxu0 %v361
    %2321 = vmatpush1.msra.mxu0 %v360
    %2322 = vmatprep.subr.mxu0 %v345
    %2323 = vmatpush1.msra.mxu0 %v344
    %2324 = vmatprep.subr.mxu0 %v329
    %2325 = vmatpush1.msra.mxu0 %v328
    %2326 = vmatprep.subr.mxu0 %v313
    %2327 = vmatpush1.msra.mxu0 %v312
    %2328 = vmatprep.subr.mxu0 %v297
    %2329 = vmatpush1.msra.mxu0 %v296
    %2330 = vmatprep.subr.mxu0 %v281
    %2331 = vmatpush1.msra.mxu0 %v280
    %2332 = vmatprep.subr.mxu0 %v265
    %2333 = vmatpush1.msra.mxu0 %v264
    %2334 = vmatprep.subr.mxu0 %v249
    %2335 = vmatpush1.msra.mxu0 %v248
    %2336 = vmatprep.subr.mxu0 %v233
    %2337 = vmatpush1.msra.mxu0 %v232
    %2338 = vmatprep.subr.mxu0 %v217
    %2339 = vmatpush1.msra.mxu0 %v216
    %2340 = vmatprep.subr.mxu0 %v201
    %2341 = vmatpush1.msra.mxu0 %v200
    %2342 = vmatprep.subr.mxu0 %v697
    %2343 = vmatpush2.msra.mxu0 %v696
    %2344 = vmatprep.subr.mxu0 %v681
    %2345 = vmatpush2.msra.mxu0 %v680
    %2346 = vmatprep.subr.mxu0 %v665
    %2347 = vmatpush2.msra.mxu0 %v664
    %2348 = vmatprep.subr.mxu0 %v649
    %2349 = vmatpush2.msra.mxu0 %v648
    %2350 = vmatprep.subr.mxu0 %v633
    %2351 = vmatpush2.msra.mxu0 %v632
    %2352 = vmatprep.subr.mxu0 %v617
    %2353 = vmatpush2.msra.mxu0 %v616
    %2354 = vmatprep.subr.mxu0 %v601
    %2355 = vmatpush2.msra.mxu0 %v600
    %2356 = vmatprep.subr.mxu0 %v585
    %2357 = vmatpush2.msra.mxu0 %v584
    %2358 = vmatprep.subr.mxu0 %v569
    %2359 = vmatpush2.msra.mxu0 %v568
    %2360 = vmatprep.subr.mxu0 %v553
    %2361 = vmatpush2.msra.mxu0 %v552
    %2362 = vmatprep.subr.mxu0 %v537
    %2363 = vmatpush2.msra.mxu0 %v536
    %2364 = vmatprep.subr.mxu0 %v521
    %2365 = vmatpush2.msra.mxu0 %v520
    %2366 = vmatprep.subr.mxu0 %v505
    %2367 = vmatpush2.msra.mxu0 %v504
    %2368 = vmatprep.subr.mxu0 %v489
    %2369 = vmatpush2.msra.mxu0 %v488
    %2370 = vmatprep.subr.mxu0 %v473
    %2371 = vmatpush2.msra.mxu0 %v472
    %2372 = vmatprep.subr.mxu0 %v457
    %2373 = vmatpush2.msra.mxu0 %v456
    %2374 = vmatprep.mubr.f32.mxu0 %v1310
    %2375 = vmatmul.mubr.f32.gmra.mxu0 %v1302
    %v2376 = vpop.f32.mrf.mxu0
    %v2377 = vadd.f32 %v1273, %v2376
    %v2378 = vpop.f32.mrf.mxu0
    %v2379 = vadd.f32 %v1277, %v2378
    %2380 = vdwg.mxu0
    %2381 = vmatprep.subr.mxu0 %v953
    %2382 = vmatpush1.msra.mxu0 %v952
    %2383 = vmatprep.subr.mxu0 %v937
    %2384 = vmatpush1.msra.mxu0 %v936
    %2385 = vmatprep.subr.mxu0 %v921
    %2386 = vmatpush1.msra.mxu0 %v920
    %2387 = vmatprep.subr.mxu0 %v905
    %2388 = vmatpush1.msra.mxu0 %v904
    %2389 = vmatprep.subr.mxu0 %v889
    %2390 = vmatpush1.msra.mxu0 %v888
    %2391 = vmatprep.subr.mxu0 %v873
    %2392 = vmatpush1.msra.mxu0 %v872
    %2393 = vmatprep.subr.mxu0 %v857
    %2394 = vmatpush1.msra.mxu0 %v856
    %2395 = vmatprep.subr.mxu0 %v841
    %2396 = vmatpush1.msra.mxu0 %v840
    %2397 = vmatprep.subr.mxu0 %v825
    %2398 = vmatpush1.msra.mxu0 %v824
    %2399 = vmatprep.subr.mxu0 %v809
    %2400 = vmatpush1.msra.mxu0 %v808
    %2401 = vmatprep.subr.mxu0 %v793
    %2402 = vmatpush1.msra.mxu0 %v792
    %2403 = vmatprep.subr.mxu0 %v777
    %2404 = vmatpush1.msra.mxu0 %v776
    %2405 = vmatprep.subr.mxu0 %v761
    %2406 = vmatpush1.msra.mxu0 %v760
    %2407 = vmatprep.subr.mxu0 %v745
    %2408 = vmatpush1.msra.mxu0 %v744
    %2409 = vmatprep.subr.mxu0 %v729
    %2410 = vmatpush1.msra.mxu0 %v728
    %2411 = vmatprep.subr.mxu0 %v713
    %2412 = vmatpush1.msra.mxu0 %v712
    %2413 = vmatprep.subr.mxu0 %v1209
    %2414 = vmatpush2.msra.mxu0 %v1208
    %2415 = vmatprep.subr.mxu0 %v1193
    %2416 = vmatpush2.msra.mxu0 %v1192
    %2417 = vmatprep.subr.mxu0 %v1177
    %2418 = vmatpush2.msra.mxu0 %v1176
    %2419 = vmatprep.subr.mxu0 %v1161
    %2420 = vmatpush2.msra.mxu0 %v1160
    %2421 = vmatprep.subr.mxu0 %v1145
    %2422 = vmatpush2.msra.mxu0 %v1144
    %2423 = vmatprep.subr.mxu0 %v1129
    %2424 = vmatpush2.msra.mxu0 %v1128
    %2425 = vmatprep.subr.mxu0 %v1113
    %2426 = vmatpush2.msra.mxu0 %v1112
    %2427 = vmatprep.subr.mxu0 %v1097
    %2428 = vmatpush2.msra.mxu0 %v1096
    %2429 = vmatprep.subr.mxu0 %v1081
    %2430 = vmatpush2.msra.mxu0 %v1080
    %2431 = vmatprep.subr.mxu0 %v1065
    %2432 = vmatpush2.msra.mxu0 %v1064
    %2433 = vmatprep.subr.mxu0 %v1049
    %2434 = vmatpush2.msra.mxu0 %v1048
    %2435 = vmatprep.subr.mxu0 %v1033
    %2436 = vmatpush2.msra.mxu0 %v1032
    %2437 = vmatprep.subr.mxu0 %v1017
    %2438 = vmatpush2.msra.mxu0 %v1016
    %2439 = vmatprep.subr.mxu0 %v1001
    %2440 = vmatpush2.msra.mxu0 %v1000
    %2441 = vmatprep.subr.mxu0 %v985
    %2442 = vmatpush2.msra.mxu0 %v984
    %2443 = vmatprep.subr.mxu0 %v969
    %2444 = vmatpush2.msra.mxu0 %v968
    %2445 = vmatprep.mubr.f32.mxu0 %v1311
    %2446 = vmatmul.mubr.f32.gmra.mxu0 %v1309
    %v2447 = vpop.f32.mrf.mxu0
    %v2448 = vadd.f32 %v2377, %v2447
    %v2449 = vpop.f32.mrf.mxu0
    %v2450 = vadd.f32 %v2379, %v2449
    %2451 = vdwg.mxu0
    %v2452 = vmax.f32 %v1454, 0.0
    %v2453 = vmax.f32 %v1456, 0.0
    %v2454 = vmax.f32 %v1596, 0.0
    %v2455 = vmax.f32 %v1598, 0.0
    %v2456 = vmax.f32 %v1738, 0.0
    %v2457 = vmax.f32 %v1740, 0.0
    %v2458 = vmax.f32 %v1880, 0.0
    %v2459 = vmax.f32 %v1882, 0.0
    %v2460 = vmax.f32 %v2022, 0.0
    %v2461 = vmax.f32 %v2024, 0.0
    %v2462 = vmax.f32 %v2164, 0.0
    %v2463 = vmax.f32 %v2166, 0.0
    %v2464 = vmax.f32 %v2306, 0.0
    %v2465 = vmax.f32 %v2308, 0.0
    %v2466 = vmax.f32 %v2448, 0.0
    %v2467 = vmax.f32 %v2450, 0.0
    %v2468 = vld [vmem:[%s4] sm:$0xff]
    %v2469 = vld [vmem:[%s4 + $0x8] sm:$0xff]
    %v2470 = vld [vmem:[%s4 + $0x10] sm:$0xff]
    %v2471 = vld [vmem:[%s4 + $0x18] sm:$0xff]
    %v2472 = vld [vmem:[%s4 + $0x20] sm:$0xff]
    %v2473 = vld [vmem:[%s4 + $0x28] sm:$0xff]
    %v2474 = vld [vmem:[%s4 + $0x30] sm:$0xff]
    %v2475 = vld [vmem:[%s4 + $0x38] sm:$0xff]
    %v2476 = vld [vmem:[%s4 + $0x40] sm:$0xff]
    %v2477 = vld [vmem:[%s4 + $0x48] sm:$0xff]
    %v2478 = vld [vmem:[%s4 + $0x50] sm:$0xff]
    %v2479 = vld [vmem:[%s4 + $0x58] sm:$0xff]
    %v2480 = vld [vmem:[%s4 + $0x60] sm:$0xff]
    %v2481 = vld [vmem:[%s4 + $0x68] sm:$0xff]
    %v2482 = vld [vmem:[%s4 + $0x70] sm:$0xff]
    %v2483 = vld [vmem:[%s4 + $0x78] sm:$0xff]
    %v2484 = vld [vmem:[%s4 + $0x80] sm:$0xff]
    %v2485 = vld [vmem:[%s4 + $0x88] sm:$0xff]
    %v2486 = vld [vmem:[%s4 + $0x90] sm:$0xff]
    %v2487 = vld [vmem:[%s4 + $0x98] sm:$0xff]
    %v2488 = vld [vmem:[%s4 + $0xa0] sm:$0xff]
    %v2489 = vld [vmem:[%s4 + $0xa8] sm:$0xff]
    %v2490 = vld [vmem:[%s4 + $0xb0] sm:$0xff]
    %v2491 = vld [vmem:[%s4 + $0xb8] sm:$0xff]
    %v2492 = vld [vmem:[%s4 + $0xc0] sm:$0xff]
    %v2493 = vld [vmem:[%s4 + $0xc8] sm:$0xff]
    %v2494 = vld [vmem:[%s4 + $0xd0] sm:$0xff]
    %v2495 = vld [vmem:[%s4 + $0xd8] sm:$0xff]
    %v2496 = vld [vmem:[%s4 + $0xe0] sm:$0xff]
    %v2497 = vld [vmem:[%s4 + $0xe8] sm:$0xff]
    %v2498 = vld [vmem:[%s4 + $0xf0] sm:$0xff]
    %v2499 = vld [vmem:[%s4 + $0xf8] sm:$0xff]
    %v2500 = vld [vmem:[%s4 + $0x100] sm:$0xff]
    %v2501 = vld [vmem:[%s4 + $0x108] sm:$0xff]
    %v2502 = vld [vmem:[%s4 + $0x110] sm:$0xff]
    %v2503 = vld [vmem:[%s4 + $0x118] sm:$0xff]
    %v2504 = vld [vmem:[%s4 + $0x120] sm:$0xff]
    %v2505 = vld [vmem:[%s4 + $0x128] sm:$0xff]
    %v2506 = vld [vmem:[%s4 + $0x130] sm:$0xff]
    %v2507 = vld [vmem:[%s4 + $0x138] sm:$0xff]
    %v2508 = vld [vmem:[%s4 + $0x140] sm:$0xff]
    %v2509 = vld [vmem:[%s4 + $0x148] sm:$0xff]
    %v2510 = vld [vmem:[%s4 + $0x150] sm:$0xff]
    %v2511 = vld [vmem:[%s4 + $0x158] sm:$0xff]
    %v2512 = vld [vmem:[%s4 + $0x160] sm:$0xff]
    %v2513 = vld [vmem:[%s4 + $0x168] sm:$0xff]
    %v2514 = vld [vmem:[%s4 + $0x170] sm:$0xff]
    %v2515 = vld [vmem:[%s4 + $0x178] sm:$0xff]
    %v2516 = vld [vmem:[%s4 + $0x180] sm:$0xff]
    %v2517 = vld [vmem:[%s4 + $0x188] sm:$0xff]
    %v2518 = vld [vmem:[%s4 + $0x190] sm:$0xff]
    %v2519 = vld [vmem:[%s4 + $0x198] sm:$0xff]
    %v2520 = vld [vmem:[%s4 + $0x1a0] sm:$0xff]
    %v2521 = vld [vmem:[%s4 + $0x1a8] sm:$0xff]
    %v2522 = vld [vmem:[%s4 + $0x1b0] sm:$0xff]
    %v2523 = vld [vmem:[%s4 + $0x1b8] sm:$0xff]
    %v2524 = vld [vmem:[%s4 + $0x1c0] sm:$0xff]
    %v2525 = vld [vmem:[%s4 + $0x1c8] sm:$0xff]
    %v2526 = vld [vmem:[%s4 + $0x1d0] sm:$0xff]
    %v2527 = vld [vmem:[%s4 + $0x1d8] sm:$0xff]
    %v2528 = vld [vmem:[%s4 + $0x1e0] sm:$0xff]
    %v2529 = vld [vmem:[%s4 + $0x1e8] sm:$0xff]
    %v2530 = vld [vmem:[%s4 + $0x1f0] sm:$0xff]
    %v2531 = vld [vmem:[%s4 + $0x1f8] sm:$0xff]
    %v2532 = vld [vmem:[%s4 + $0x200] sm:$0xff]
    %v2533 = vld [vmem:[%s4 + $0x208] sm:$0xff]
    %v2534 = vld [vmem:[%s4 + $0x210] sm:$0xff]
    %v2535 = vld [vmem:[%s4 + $0x218] sm:$0xff]
    %v2536 = vld [vmem:[%s4 + $0x220] sm:$0xff]
    %v2537 = vld [vmem:[%s4 + $0x228] sm:$0xff]
    %v2538 = vld [vmem:[%s4 + $0x230] sm:$0xff]
    %v2539 = vld [vmem:[%s4 + $0x238] sm:$0xff]
    %v2540 = vld [vmem:[%s4 + $0x240] sm:$0xff]
    %v2541 = vld [vmem:[%s4 + $0x248] sm:$0xff]
    %v2542 = vld [vmem:[%s4 + $0x250] sm:$0xff]
    %v2543 = vld [vmem:[%s4 + $0x258] sm:$0xff]
    %v2544 = vld [vmem:[%s4 + $0x260] sm:$0xff]
    %v2545 = vld [vmem:[%s4 + $0x268] sm:$0xff]
    %v2546 = vld [vmem:[%s4 + $0x270] sm:$0xff]
    %v2547 = vld [vmem:[%s4 + $0x278] sm:$0xff]
    %v2548 = vld [vmem:[%s4 + $0x280] sm:$0xff]
    %v2549 = vld [vmem:[%s4 + $0x288] sm:$0xff]
    %v2550 = vld [vmem:[%s4 + $0x290] sm:$0xff]
    %v2551 = vld [vmem:[%s4 + $0x298] sm:$0xff]
    %v2552 = vld [vmem:[%s4 + $0x2a0] sm:$0xff]
    %v2553 = vld [vmem:[%s4 + $0x2a8] sm:$0xff]
    %v2554 = vld [vmem:[%s4 + $0x2b0] sm:$0xff]
    %v2555 = vld [vmem:[%s4 + $0x2b8] sm:$0xff]
    %v2556 = vld [vmem:[%s4 + $0x2c0] sm:$0xff]
    %v2557 = vld [vmem:[%s4 + $0x2c8] sm:$0xff]
    %v2558 = vld [vmem:[%s4 + $0x2d0] sm:$0xff]
    %v2559 = vld [vmem:[%s4 + $0x2d8] sm:$0xff]
    %v2560 = vld [vmem:[%s4 + $0x2e0] sm:$0xff]
    %v2561 = vld [vmem:[%s4 + $0x2e8] sm:$0xff]
    %v2562 = vld [vmem:[%s4 + $0x2f0] sm:$0xff]
    %v2563 = vld [vmem:[%s4 + $0x2f8] sm:$0xff]
    %v2564 = vld [vmem:[%s4 + $0x300] sm:$0xff]
    %v2565 = vld [vmem:[%s4 + $0x308] sm:$0xff]
    %v2566 = vld [vmem:[%s4 + $0x310] sm:$0xff]
    %v2567 = vld [vmem:[%s4 + $0x318] sm:$0xff]
    %v2568 = vld [vmem:[%s4 + $0x320] sm:$0xff]
    %v2569 = vld [vmem:[%s4 + $0x328] sm:$0xff]
    %v2570 = vld [vmem:[%s4 + $0x330] sm:$0xff]
    %v2571 = vld [vmem:[%s4 + $0x338] sm:$0xff]
    %v2572 = vld [vmem:[%s4 + $0x340] sm:$0xff]
    %v2573 = vld [vmem:[%s4 + $0x348] sm:$0xff]
    %v2574 = vld [vmem:[%s4 + $0x350] sm:$0xff]
    %v2575 = vld [vmem:[%s4 + $0x358] sm:$0xff]
    %v2576 = vld [vmem:[%s4 + $0x360] sm:$0xff]
    %v2577 = vld [vmem:[%s4 + $0x368] sm:$0xff]
    %v2578 = vld [vmem:[%s4 + $0x370] sm:$0xff]
    %v2579 = vld [vmem:[%s4 + $0x378] sm:$0xff]
    %v2580 = vld [vmem:[%s4 + $0x380] sm:$0xff]
    %v2581 = vld [vmem:[%s4 + $0x388] sm:$0xff]
    %v2582 = vld [vmem:[%s4 + $0x390] sm:$0xff]
    %v2583 = vld [vmem:[%s4 + $0x398] sm:$0xff]
    %v2584 = vld [vmem:[%s4 + $0x3a0] sm:$0xff]
    %v2585 = vld [vmem:[%s4 + $0x3a8] sm:$0xff]
    %v2586 = vld [vmem:[%s4 + $0x3b0] sm:$0xff]
    %v2587 = vld [vmem:[%s4 + $0x3b8] sm:$0xff]
    %v2588 = vld [vmem:[%s4 + $0x3c0] sm:$0xff]
    %v2589 = vld [vmem:[%s4 + $0x3c8] sm:$0xff]
    %v2590 = vld [vmem:[%s4 + $0x3d0] sm:$0xff]
    %v2591 = vld [vmem:[%s4 + $0x3d8] sm:$0xff]
    %v2592 = vld [vmem:[%s4 + $0x3e0] sm:$0xff]
    %v2593 = vld [vmem:[%s4 + $0x3e8] sm:$0xff]
    %v2594 = vld [vmem:[%s4 + $0x3f0] sm:$0xff]
    %v2595 = vld [vmem:[%s4 + $0x3f8] sm:$0xff]
    %v2596 = vld [vmem:[%s4 + $0x400] sm:$0xff]
    %v2597 = vld [vmem:[%s4 + $0x408] sm:$0xff]
    %v2598 = vld [vmem:[%s4 + $0x410] sm:$0xff]
    %v2599 = vld [vmem:[%s4 + $0x418] sm:$0xff]
    %v2600 = vld [vmem:[%s4 + $0x420] sm:$0xff]
    %v2601 = vld [vmem:[%s4 + $0x428] sm:$0xff]
    %v2602 = vld [vmem:[%s4 + $0x430] sm:$0xff]
    %v2603 = vld [vmem:[%s4 + $0x438] sm:$0xff]
    %v2604 = vld [vmem:[%s4 + $0x440] sm:$0xff]
    %v2605 = vld [vmem:[%s4 + $0x448] sm:$0xff]
    %v2606 = vld [vmem:[%s4 + $0x450] sm:$0xff]
    %v2607 = vld [vmem:[%s4 + $0x458] sm:$0xff]
    %v2608 = vld [vmem:[%s4 + $0x460] sm:$0xff]
    %v2609 = vld [vmem:[%s4 + $0x468] sm:$0xff]
    %v2610 = vld [vmem:[%s4 + $0x470] sm:$0xff]
    %v2611 = vld [vmem:[%s4 + $0x478] sm:$0xff]
    %v2612 = vld [vmem:[%s4 + $0x480] sm:$0xff]
    %v2613 = vld [vmem:[%s4 + $0x488] sm:$0xff]
    %v2614 = vld [vmem:[%s4 + $0x490] sm:$0xff]
    %v2615 = vld [vmem:[%s4 + $0x498] sm:$0xff]
    %v2616 = vld [vmem:[%s4 + $0x4a0] sm:$0xff]
    %v2617 = vld [vmem:[%s4 + $0x4a8] sm:$0xff]
    %v2618 = vld [vmem:[%s4 + $0x4b0] sm:$0xff]
    %v2619 = vld [vmem:[%s4 + $0x4b8] sm:$0xff]
    %v2620 = vld [vmem:[%s4 + $0x4c0] sm:$0xff]
    %v2621 = vld [vmem:[%s4 + $0x4c8] sm:$0xff]
    %v2622 = vld [vmem:[%s4 + $0x4d0] sm:$0xff]
    %v2623 = vld [vmem:[%s4 + $0x4d8] sm:$0xff]
    %v2624 = vld [vmem:[%s4 + $0x4e0] sm:$0xff]
    %v2625 = vld [vmem:[%s4 + $0x4e8] sm:$0xff]
    %v2626 = vld [vmem:[%s4 + $0x4f0] sm:$0xff]
    %v2627 = vld [vmem:[%s4 + $0x4f8] sm:$0xff]
    %v2628 = vld [vmem:[%s4 + $0x500] sm:$0xff]
    %v2629 = vld [vmem:[%s4 + $0x508] sm:$0xff]
    %v2630 = vld [vmem:[%s4 + $0x510] sm:$0xff]
    %v2631 = vld [vmem:[%s4 + $0x518] sm:$0xff]
    %v2632 = vld [vmem:[%s4 + $0x520] sm:$0xff]
    %v2633 = vld [vmem:[%s4 + $0x528] sm:$0xff]
    %v2634 = vld [vmem:[%s4 + $0x530] sm:$0xff]
    %v2635 = vld [vmem:[%s4 + $0x538] sm:$0xff]
    %v2636 = vld [vmem:[%s4 + $0x540] sm:$0xff]
    %v2637 = vld [vmem:[%s4 + $0x548] sm:$0xff]
    %v2638 = vld [vmem:[%s4 + $0x550] sm:$0xff]
    %v2639 = vld [vmem:[%s4 + $0x558] sm:$0xff]
    %v2640 = vld [vmem:[%s4 + $0x560] sm:$0xff]
    %v2641 = vld [vmem:[%s4 + $0x568] sm:$0xff]
    %v2642 = vld [vmem:[%s4 + $0x570] sm:$0xff]
    %v2643 = vld [vmem:[%s4 + $0x578] sm:$0xff]
    %v2644 = vld [vmem:[%s4 + $0x580] sm:$0xff]
    %v2645 = vld [vmem:[%s4 + $0x588] sm:$0xff]
    %v2646 = vld [vmem:[%s4 + $0x590] sm:$0xff]
    %v2647 = vld [vmem:[%s4 + $0x598] sm:$0xff]
    %v2648 = vld [vmem:[%s4 + $0x5a0] sm:$0xff]
    %v2649 = vld [vmem:[%s4 + $0x5a8] sm:$0xff]
    %v2650 = vld [vmem:[%s4 + $0x5b0] sm:$0xff]
    %v2651 = vld [vmem:[%s4 + $0x5b8] sm:$0xff]
    %v2652 = vld [vmem:[%s4 + $0x5c0] sm:$0xff]
    %v2653 = vld [vmem:[%s4 + $0x5c8] sm:$0xff]
    %v2654 = vld [vmem:[%s4 + $0x5d0] sm:$0xff]
    %v2655 = vld [vmem:[%s4 + $0x5d8] sm:$0xff]
    %v2656 = vld [vmem:[%s4 + $0x5e0] sm:$0xff]
    %v2657 = vld [vmem:[%s4 + $0x5e8] sm:$0xff]
    %v2658 = vld [vmem:[%s4 + $0x5f0] sm:$0xff]
    %v2659 = vld [vmem:[%s4 + $0x5f8] sm:$0xff]
    %v2660 = vld [vmem:[%s4 + $0x600] sm:$0xff]
    %v2661 = vld [vmem:[%s4 + $0x608] sm:$0xff]
    %v2662 = vld [vmem:[%s4 + $0x610] sm:$0xff]
    %v2663 = vld [vmem:[%s4 + $0x618] sm:$0xff]
    %v2664 = vld [vmem:[%s4 + $0x620] sm:$0xff]
    %v2665 = vld [vmem:[%s4 + $0x628] sm:$0xff]
    %v2666 = vld [vmem:[%s4 + $0x630] sm:$0xff]
    %v2667 = vld [vmem:[%s4 + $0x638] sm:$0xff]
    %v2668 = vld [vmem:[%s4 + $0x640] sm:$0xff]
    %v2669 = vld [vmem:[%s4 + $0x648] sm:$0xff]
    %v2670 = vld [vmem:[%s4 + $0x650] sm:$0xff]
    %v2671 = vld [vmem:[%s4 + $0x658] sm:$0xff]
    %v2672 = vld [vmem:[%s4 + $0x660] sm:$0xff]
    %v2673 = vld [vmem:[%s4 + $0x668] sm:$0xff]
    %v2674 = vld [vmem:[%s4 + $0x670] sm:$0xff]
    %v2675 = vld [vmem:[%s4 + $0x678] sm:$0xff]
    %v2676 = vld [vmem:[%s4 + $0x680] sm:$0xff]
    %v2677 = vld [vmem:[%s4 + $0x688] sm:$0xff]
    %v2678 = vld [vmem:[%s4 + $0x690] sm:$0xff]
    %v2679 = vld [vmem:[%s4 + $0x698] sm:$0xff]
    %v2680 = vld [vmem:[%s4 + $0x6a0] sm:$0xff]
    %v2681 = vld [vmem:[%s4 + $0x6a8] sm:$0xff]
    %v2682 = vld [vmem:[%s4 + $0x6b0] sm:$0xff]
    %v2683 = vld [vmem:[%s4 + $0x6b8] sm:$0xff]
    %v2684 = vld [vmem:[%s4 + $0x6c0] sm:$0xff]
    %v2685 = vld [vmem:[%s4 + $0x6c8] sm:$0xff]
    %v2686 = vld [vmem:[%s4 + $0x6d0] sm:$0xff]
    %v2687 = vld [vmem:[%s4 + $0x6d8] sm:$0xff]
    %v2688 = vld [vmem:[%s4 + $0x6e0] sm:$0xff]
    %v2689 = vld [vmem:[%s4 + $0x6e8] sm:$0xff]
    %v2690 = vld [vmem:[%s4 + $0x6f0] sm:$0xff]
    %v2691 = vld [vmem:[%s4 + $0x6f8] sm:$0xff]
    %v2692 = vld [vmem:[%s4 + $0x700] sm:$0xff]
    %v2693 = vld [vmem:[%s4 + $0x708] sm:$0xff]
    %v2694 = vld [vmem:[%s4 + $0x710] sm:$0xff]
    %v2695 = vld [vmem:[%s4 + $0x718] sm:$0xff]
    %v2696 = vld [vmem:[%s4 + $0x720] sm:$0xff]
    %v2697 = vld [vmem:[%s4 + $0x728] sm:$0xff]
    %v2698 = vld [vmem:[%s4 + $0x730] sm:$0xff]
    %v2699 = vld [vmem:[%s4 + $0x738] sm:$0xff]
    %v2700 = vld [vmem:[%s4 + $0x740] sm:$0xff]
    %v2701 = vld [vmem:[%s4 + $0x748] sm:$0xff]
    %v2702 = vld [vmem:[%s4 + $0x750] sm:$0xff]
    %v2703 = vld [vmem:[%s4 + $0x758] sm:$0xff]
    %v2704 = vld [vmem:[%s4 + $0x760] sm:$0xff]
    %v2705 = vld [vmem:[%s4 + $0x768] sm:$0xff]
    %v2706 = vld [vmem:[%s4 + $0x770] sm:$0xff]
    %v2707 = vld [vmem:[%s4 + $0x778] sm:$0xff]
    %v2708 = vld [vmem:[%s4 + $0x780] sm:$0xff]
    %v2709 = vld [vmem:[%s4 + $0x788] sm:$0xff]
    %v2710 = vld [vmem:[%s4 + $0x790] sm:$0xff]
    %v2711 = vld [vmem:[%s4 + $0x798] sm:$0xff]
    %v2712 = vld [vmem:[%s4 + $0x7a0] sm:$0xff]
    %v2713 = vld [vmem:[%s4 + $0x7a8] sm:$0xff]
    %v2714 = vld [vmem:[%s4 + $0x7b0] sm:$0xff]
    %v2715 = vld [vmem:[%s4 + $0x7b8] sm:$0xff]
    %v2716 = vld [vmem:[%s4 + $0x7c0] sm:$0xff]
    %v2717 = vld [vmem:[%s4 + $0x7c8] sm:$0xff]
    %v2718 = vld [vmem:[%s4 + $0x7d0] sm:$0xff]
    %v2719 = vld [vmem:[%s4 + $0x7d8] sm:$0xff]
    %v2720 = vld [vmem:[%s4 + $0x7e0] sm:$0xff]
    %v2721 = vld [vmem:[%s4 + $0x7e8] sm:$0xff]
    %v2722 = vld [vmem:[%s4 + $0x7f0] sm:$0xff]
    %v2723 = vld [vmem:[%s4 + $0x7f8] sm:$0xff]
    %v2724 = vld [vmem:[#allocation10] sm:$0x1]
    %v2726 = vlaneseq
    %v2727 = vshrl.u32 %v2726, 7
    %v2728 = vsub.s32 0, %v2727
    %v2729 = vrot.slane %v2724, %v2728
    %2731 = vmatprep.subr.mxu0 0.0
    %2732 = vmatpush1.msra.mxu0 %v2483
    %2733 = vmatprep.subr.mxu0 0.0
    %2734 = vmatpush1.msra.mxu0 %v2482
    %2735 = vmatprep.subr.mxu0 0.0
    %2736 = vmatpush1.msra.mxu0 %v2481
    %2737 = vmatprep.subr.mxu0 0.0
    %2738 = vmatpush1.msra.mxu0 %v2480
    %2739 = vmatprep.subr.mxu0 0.0
    %2740 = vmatpush1.msra.mxu0 %v2479
    %2741 = vmatprep.subr.mxu0 0.0
    %2742 = vmatpush1.msra.mxu0 %v2478
    %2743 = vmatprep.subr.mxu0 0.0
    %2744 = vmatpush1.msra.mxu0 %v2477
    %2745 = vmatprep.subr.mxu0 0.0
    %2746 = vmatpush1.msra.mxu0 %v2476
    %2747 = vmatprep.subr.mxu0 0.0
    %2748 = vmatpush1.msra.mxu0 %v2475
    %2749 = vmatprep.subr.mxu0 0.0
    %2750 = vmatpush1.msra.mxu0 %v2474
    %2751 = vmatprep.subr.mxu0 0.0
    %2752 = vmatpush1.msra.mxu0 %v2473
    %2753 = vmatprep.subr.mxu0 0.0
    %2754 = vmatpush1.msra.mxu0 %v2472
    %2755 = vmatprep.subr.mxu0 0.0
    %2756 = vmatpush1.msra.mxu0 %v2471
    %2757 = vmatprep.subr.mxu0 0.0
    %2758 = vmatpush1.msra.mxu0 %v2470
    %2759 = vmatprep.subr.mxu0 0.0
    %2760 = vmatpush1.msra.mxu0 %v2469
    %2761 = vmatprep.subr.mxu0 0.0
    %2762 = vmatpush1.msra.mxu0 %v2468
    %2763 = vmatprep.subr.mxu0 0.0
    %2764 = vmatpush2.msra.mxu0 %v2499
    %2765 = vmatprep.subr.mxu0 0.0
    %2766 = vmatpush2.msra.mxu0 %v2498
    %2767 = vmatprep.subr.mxu0 0.0
    %2768 = vmatpush2.msra.mxu0 %v2497
    %2769 = vmatprep.subr.mxu0 0.0
    %2770 = vmatpush2.msra.mxu0 %v2496
    %2771 = vmatprep.subr.mxu0 0.0
    %2772 = vmatpush2.msra.mxu0 %v2495
    %2773 = vmatprep.subr.mxu0 0.0
    %2774 = vmatpush2.msra.mxu0 %v2494
    %2775 = vmatprep.subr.mxu0 0.0
    %2776 = vmatpush2.msra.mxu0 %v2493
    %2777 = vmatprep.subr.mxu0 0.0
    %2778 = vmatpush2.msra.mxu0 %v2492
    %2779 = vmatprep.subr.mxu0 0.0
    %2780 = vmatpush2.msra.mxu0 %v2491
    %2781 = vmatprep.subr.mxu0 0.0
    %2782 = vmatpush2.msra.mxu0 %v2490
    %2783 = vmatprep.subr.mxu0 0.0
    %2784 = vmatpush2.msra.mxu0 %v2489
    %2785 = vmatprep.subr.mxu0 0.0
    %2786 = vmatpush2.msra.mxu0 %v2488
    %2787 = vmatprep.subr.mxu0 0.0
    %2788 = vmatpush2.msra.mxu0 %v2487
    %2789 = vmatprep.subr.mxu0 0.0
    %2790 = vmatpush2.msra.mxu0 %v2486
    %2791 = vmatprep.subr.mxu0 0.0
    %2792 = vmatpush2.msra.mxu0 %v2485
    %2793 = vmatprep.subr.mxu0 0.0
    %2794 = vmatpush2.msra.mxu0 %v2484
    %2795 = vmatprep.mubr.f32.mxu0 %v2453
    %2796 = vmatmul.mubr.f32.gmra.mxu0 %v2452
    %v2797 = vpop.f32.mrf.mxu0
    %v2798 = vadd.f32 %v2729, %v2797
    %v2799 = vpop.f32.mrf.mxu0
    %2800 = vdwg.mxu0
    %2801 = vmatprep.subr.mxu0 0.0
    %2802 = vmatpush1.msra.mxu0 %v2515
    %2803 = vmatprep.subr.mxu0 0.0
    %2804 = vmatpush1.msra.mxu0 %v2514
    %2805 = vmatprep.subr.mxu0 0.0
    %2806 = vmatpush1.msra.mxu0 %v2513
    %2807 = vmatprep.subr.mxu0 0.0
    %2808 = vmatpush1.msra.mxu0 %v2512
    %2809 = vmatprep.subr.mxu0 0.0
    %2810 = vmatpush1.msra.mxu0 %v2511
    %2811 = vmatprep.subr.mxu0 0.0
    %2812 = vmatpush1.msra.mxu0 %v2510
    %2813 = vmatprep.subr.mxu0 0.0
    %2814 = vmatpush1.msra.mxu0 %v2509
    %2815 = vmatprep.subr.mxu0 0.0
    %2816 = vmatpush1.msra.mxu0 %v2508
    %2817 = vmatprep.subr.mxu0 0.0
    %2818 = vmatpush1.msra.mxu0 %v2507
    %2819 = vmatprep.subr.mxu0 0.0
    %2820 = vmatpush1.msra.mxu0 %v2506
    %2821 = vmatprep.subr.mxu0 0.0
    %2822 = vmatpush1.msra.mxu0 %v2505
    %2823 = vmatprep.subr.mxu0 0.0
    %2824 = vmatpush1.msra.mxu0 %v2504
    %2825 = vmatprep.subr.mxu0 0.0
    %2826 = vmatpush1.msra.mxu0 %v2503
    %2827 = vmatprep.subr.mxu0 0.0
    %2828 = vmatpush1.msra.mxu0 %v2502
    %2829 = vmatprep.subr.mxu0 0.0
    %2830 = vmatpush1.msra.mxu0 %v2501
    %2831 = vmatprep.subr.mxu0 0.0
    %2832 = vmatpush1.msra.mxu0 %v2500
    %2833 = vmatprep.subr.mxu0 0.0
    %2834 = vmatpush2.msra.mxu0 %v2531
    %2835 = vmatprep.subr.mxu0 0.0
    %2836 = vmatpush2.msra.mxu0 %v2530
    %2837 = vmatprep.subr.mxu0 0.0
    %2838 = vmatpush2.msra.mxu0 %v2529
    %2839 = vmatprep.subr.mxu0 0.0
    %2840 = vmatpush2.msra.mxu0 %v2528
    %2841 = vmatprep.subr.mxu0 0.0
    %2842 = vmatpush2.msra.mxu0 %v2527
    %2843 = vmatprep.subr.mxu0 0.0
    %2844 = vmatpush2.msra.mxu0 %v2526
    %2845 = vmatprep.subr.mxu0 0.0
    %2846 = vmatpush2.msra.mxu0 %v2525
    %2847 = vmatprep.subr.mxu0 0.0
    %2848 = vmatpush2.msra.mxu0 %v2524
    %2849 = vmatprep.subr.mxu0 0.0
    %2850 = vmatpush2.msra.mxu0 %v2523
    %2851 = vmatprep.subr.mxu0 0.0
    %2852 = vmatpush2.msra.mxu0 %v2522
    %2853 = vmatprep.subr.mxu0 0.0
    %2854 = vmatpush2.msra.mxu0 %v2521
    %2855 = vmatprep.subr.mxu0 0.0
    %2856 = vmatpush2.msra.mxu0 %v2520
    %2857 = vmatprep.subr.mxu0 0.0
    %2858 = vmatpush2.msra.mxu0 %v2519
    %2859 = vmatprep.subr.mxu0 0.0
    %2860 = vmatpush2.msra.mxu0 %v2518
    %2861 = vmatprep.subr.mxu0 0.0
    %2862 = vmatpush2.msra.mxu0 %v2517
    %2863 = vmatprep.subr.mxu0 0.0
    %2864 = vmatpush2.msra.mxu0 %v2516
    %2865 = vmatprep.mubr.f32.mxu0 %v2455
    %2866 = vmatmul.mubr.f32.gmra.mxu0 %v2454
    %v2867 = vpop.f32.mrf.mxu0
    %v2868 = vadd.f32 %v2798, %v2867
    %v2869 = vpop.f32.mrf.mxu0
    %2870 = vdwg.mxu0
    %2871 = vmatprep.subr.mxu0 0.0
    %2872 = vmatpush1.msra.mxu0 %v2547
    %2873 = vmatprep.subr.mxu0 0.0
    %2874 = vmatpush1.msra.mxu0 %v2546
    %2875 = vmatprep.subr.mxu0 0.0
    %2876 = vmatpush1.msra.mxu0 %v2545
    %2877 = vmatprep.subr.mxu0 0.0
    %2878 = vmatpush1.msra.mxu0 %v2544
    %2879 = vmatprep.subr.mxu0 0.0
    %2880 = vmatpush1.msra.mxu0 %v2543
    %2881 = vmatprep.subr.mxu0 0.0
    %2882 = vmatpush1.msra.mxu0 %v2542
    %2883 = vmatprep.subr.mxu0 0.0
    %2884 = vmatpush1.msra.mxu0 %v2541
    %2885 = vmatprep.subr.mxu0 0.0
    %2886 = vmatpush1.msra.mxu0 %v2540
    %2887 = vmatprep.subr.mxu0 0.0
    %2888 = vmatpush1.msra.mxu0 %v2539
    %2889 = vmatprep.subr.mxu0 0.0
    %2890 = vmatpush1.msra.mxu0 %v2538
    %2891 = vmatprep.subr.mxu0 0.0
    %2892 = vmatpush1.msra.mxu0 %v2537
    %2893 = vmatprep.subr.mxu0 0.0
    %2894 = vmatpush1.msra.mxu0 %v2536
    %2895 = vmatprep.subr.mxu0 0.0
    %2896 = vmatpush1.msra.mxu0 %v2535
    %2897 = vmatprep.subr.mxu0 0.0
    %2898 = vmatpush1.msra.mxu0 %v2534
    %2899 = vmatprep.subr.mxu0 0.0
    %2900 = vmatpush1.msra.mxu0 %v2533
    %2901 = vmatprep.subr.mxu0 0.0
    %2902 = vmatpush1.msra.mxu0 %v2532
    %2903 = vmatprep.subr.mxu0 0.0
    %2904 = vmatpush2.msra.mxu0 %v2563
    %2905 = vmatprep.subr.mxu0 0.0
    %2906 = vmatpush2.msra.mxu0 %v2562
    %2907 = vmatprep.subr.mxu0 0.0
    %2908 = vmatpush2.msra.mxu0 %v2561
    %2909 = vmatprep.subr.mxu0 0.0
    %2910 = vmatpush2.msra.mxu0 %v2560
    %2911 = vmatprep.subr.mxu0 0.0
    %2912 = vmatpush2.msra.mxu0 %v2559
    %2913 = vmatprep.subr.mxu0 0.0
    %2914 = vmatpush2.msra.mxu0 %v2558
    %2915 = vmatprep.subr.mxu0 0.0
    %2916 = vmatpush2.msra.mxu0 %v2557
    %2917 = vmatprep.subr.mxu0 0.0
    %2918 = vmatpush2.msra.mxu0 %v2556
    %2919 = vmatprep.subr.mxu0 0.0
    %2920 = vmatpush2.msra.mxu0 %v2555
    %2921 = vmatprep.subr.mxu0 0.0
    %2922 = vmatpush2.msra.mxu0 %v2554
    %2923 = vmatprep.subr.mxu0 0.0
    %2924 = vmatpush2.msra.mxu0 %v2553
    %2925 = vmatprep.subr.mxu0 0.0
    %2926 = vmatpush2.msra.mxu0 %v2552
    %2927 = vmatprep.subr.mxu0 0.0
    %2928 = vmatpush2.msra.mxu0 %v2551
    %2929 = vmatprep.subr.mxu0 0.0
    %2930 = vmatpush2.msra.mxu0 %v2550
    %2931 = vmatprep.subr.mxu0 0.0
    %2932 = vmatpush2.msra.mxu0 %v2549
    %2933 = vmatprep.subr.mxu0 0.0
    %2934 = vmatpush2.msra.mxu0 %v2548
    %2935 = vmatprep.mubr.f32.mxu0 %v2457
    %2936 = vmatmul.mubr.f32.gmra.mxu0 %v2456
    %v2937 = vpop.f32.mrf.mxu0
    %v2938 = vadd.f32 %v2868, %v2937
    %v2939 = vpop.f32.mrf.mxu0
    %2940 = vdwg.mxu0
    %2941 = vmatprep.subr.mxu0 0.0
    %2942 = vmatpush1.msra.mxu0 %v2579
    %2943 = vmatprep.subr.mxu0 0.0
    %2944 = vmatpush1.msra.mxu0 %v2578
    %2945 = vmatprep.subr.mxu0 0.0
    %2946 = vmatpush1.msra.mxu0 %v2577
    %2947 = vmatprep.subr.mxu0 0.0
    %2948 = vmatpush1.msra.mxu0 %v2576
    %2949 = vmatprep.subr.mxu0 0.0
    %2950 = vmatpush1.msra.mxu0 %v2575
    %2951 = vmatprep.subr.mxu0 0.0
    %2952 = vmatpush1.msra.mxu0 %v2574
    %2953 = vmatprep.subr.mxu0 0.0
    %2954 = vmatpush1.msra.mxu0 %v2573
    %2955 = vmatprep.subr.mxu0 0.0
    %2956 = vmatpush1.msra.mxu0 %v2572
    %2957 = vmatprep.subr.mxu0 0.0
    %2958 = vmatpush1.msra.mxu0 %v2571
    %2959 = vmatprep.subr.mxu0 0.0
    %2960 = vmatpush1.msra.mxu0 %v2570
    %2961 = vmatprep.subr.mxu0 0.0
    %2962 = vmatpush1.msra.mxu0 %v2569
    %2963 = vmatprep.subr.mxu0 0.0
    %2964 = vmatpush1.msra.mxu0 %v2568
    %2965 = vmatprep.subr.mxu0 0.0
    %2966 = vmatpush1.msra.mxu0 %v2567
    %2967 = vmatprep.subr.mxu0 0.0
    %2968 = vmatpush1.msra.mxu0 %v2566
    %2969 = vmatprep.subr.mxu0 0.0
    %2970 = vmatpush1.msra.mxu0 %v2565
    %2971 = vmatprep.subr.mxu0 0.0
    %2972 = vmatpush1.msra.mxu0 %v2564
    %2973 = vmatprep.subr.mxu0 0.0
    %2974 = vmatpush2.msra.mxu0 %v2595
    %2975 = vmatprep.subr.mxu0 0.0
    %2976 = vmatpush2.msra.mxu0 %v2594
    %2977 = vmatprep.subr.mxu0 0.0
    %2978 = vmatpush2.msra.mxu0 %v2593
    %2979 = vmatprep.subr.mxu0 0.0
    %2980 = vmatpush2.msra.mxu0 %v2592
    %2981 = vmatprep.subr.mxu0 0.0
    %2982 = vmatpush2.msra.mxu0 %v2591
    %2983 = vmatprep.subr.mxu0 0.0
    %2984 = vmatpush2.msra.mxu0 %v2590
    %2985 = vmatprep.subr.mxu0 0.0
    %2986 = vmatpush2.msra.mxu0 %v2589
    %2987 = vmatprep.subr.mxu0 0.0
    %2988 = vmatpush2.msra.mxu0 %v2588
    %2989 = vmatprep.subr.mxu0 0.0
    %2990 = vmatpush2.msra.mxu0 %v2587
    %2991 = vmatprep.subr.mxu0 0.0
    %2992 = vmatpush2.msra.mxu0 %v2586
    %2993 = vmatprep.subr.mxu0 0.0
    %2994 = vmatpush2.msra.mxu0 %v2585
    %2995 = vmatprep.subr.mxu0 0.0
    %2996 = vmatpush2.msra.mxu0 %v2584
    %2997 = vmatprep.subr.mxu0 0.0
    %2998 = vmatpush2.msra.mxu0 %v2583
    %2999 = vmatprep.subr.mxu0 0.0
    %3000 = vmatpush2.msra.mxu0 %v2582
    %3001 = vmatprep.subr.mxu0 0.0
    %3002 = vmatpush2.msra.mxu0 %v2581
    %3003 = vmatprep.subr.mxu0 0.0
    %3004 = vmatpush2.msra.mxu0 %v2580
    %3005 = vmatprep.mubr.f32.mxu0 %v2459
    %3006 = vmatmul.mubr.f32.gmra.mxu0 %v2458
    %v3007 = vpop.f32.mrf.mxu0
    %v3008 = vadd.f32 %v2938, %v3007
    %v3009 = vpop.f32.mrf.mxu0
    %3010 = vdwg.mxu0
    %3011 = vmatprep.subr.mxu0 0.0
    %3012 = vmatpush1.msra.mxu0 %v2611
    %3013 = vmatprep.subr.mxu0 0.0
    %3014 = vmatpush1.msra.mxu0 %v2610
    %3015 = vmatprep.subr.mxu0 0.0
    %3016 = vmatpush1.msra.mxu0 %v2609
    %3017 = vmatprep.subr.mxu0 0.0
    %3018 = vmatpush1.msra.mxu0 %v2608
    %3019 = vmatprep.subr.mxu0 0.0
    %3020 = vmatpush1.msra.mxu0 %v2607
    %3021 = vmatprep.subr.mxu0 0.0
    %3022 = vmatpush1.msra.mxu0 %v2606
    %3023 = vmatprep.subr.mxu0 0.0
    %3024 = vmatpush1.msra.mxu0 %v2605
    %3025 = vmatprep.subr.mxu0 0.0
    %3026 = vmatpush1.msra.mxu0 %v2604
    %3027 = vmatprep.subr.mxu0 0.0
    %3028 = vmatpush1.msra.mxu0 %v2603
    %3029 = vmatprep.subr.mxu0 0.0
    %3030 = vmatpush1.msra.mxu0 %v2602
    %3031 = vmatprep.subr.mxu0 0.0
    %3032 = vmatpush1.msra.mxu0 %v2601
    %3033 = vmatprep.subr.mxu0 0.0
    %3034 = vmatpush1.msra.mxu0 %v2600
    %3035 = vmatprep.subr.mxu0 0.0
    %3036 = vmatpush1.msra.mxu0 %v2599
    %3037 = vmatprep.subr.mxu0 0.0
    %3038 = vmatpush1.msra.mxu0 %v2598
    %3039 = vmatprep.subr.mxu0 0.0
    %3040 = vmatpush1.msra.mxu0 %v2597
    %3041 = vmatprep.subr.mxu0 0.0
    %3042 = vmatpush1.msra.mxu0 %v2596
    %3043 = vmatprep.subr.mxu0 0.0
    %3044 = vmatpush2.msra.mxu0 %v2627
    %3045 = vmatprep.subr.mxu0 0.0
    %3046 = vmatpush2.msra.mxu0 %v2626
    %3047 = vmatprep.subr.mxu0 0.0
    %3048 = vmatpush2.msra.mxu0 %v2625
    %3049 = vmatprep.subr.mxu0 0.0
    %3050 = vmatpush2.msra.mxu0 %v2624
    %3051 = vmatprep.subr.mxu0 0.0
    %3052 = vmatpush2.msra.mxu0 %v2623
    %3053 = vmatprep.subr.mxu0 0.0
    %3054 = vmatpush2.msra.mxu0 %v2622
    %3055 = vmatprep.subr.mxu0 0.0
    %3056 = vmatpush2.msra.mxu0 %v2621
    %3057 = vmatprep.subr.mxu0 0.0
    %3058 = vmatpush2.msra.mxu0 %v2620
    %3059 = vmatprep.subr.mxu0 0.0
    %3060 = vmatpush2.msra.mxu0 %v2619
    %3061 = vmatprep.subr.mxu0 0.0
    %3062 = vmatpush2.msra.mxu0 %v2618
    %3063 = vmatprep.subr.mxu0 0.0
    %3064 = vmatpush2.msra.mxu0 %v2617
    %3065 = vmatprep.subr.mxu0 0.0
    %3066 = vmatpush2.msra.mxu0 %v2616
    %3067 = vmatprep.subr.mxu0 0.0
    %3068 = vmatpush2.msra.mxu0 %v2615
    %3069 = vmatprep.subr.mxu0 0.0
    %3070 = vmatpush2.msra.mxu0 %v2614
    %3071 = vmatprep.subr.mxu0 0.0
    %3072 = vmatpush2.msra.mxu0 %v2613
    %3073 = vmatprep.subr.mxu0 0.0
    %3074 = vmatpush2.msra.mxu0 %v2612
    %3075 = vmatprep.mubr.f32.mxu0 %v2461
    %3076 = vmatmul.mubr.f32.gmra.mxu0 %v2460
    %v3077 = vpop.f32.mrf.mxu0
    %v3078 = vadd.f32 %v3008, %v3077
    %v3079 = vpop.f32.mrf.mxu0
    %3080 = vdwg.mxu0
    %3081 = vmatprep.subr.mxu0 0.0
    %3082 = vmatpush1.msra.mxu0 %v2643
    %3083 = vmatprep.subr.mxu0 0.0
    %3084 = vmatpush1.msra.mxu0 %v2642
    %3085 = vmatprep.subr.mxu0 0.0
    %3086 = vmatpush1.msra.mxu0 %v2641
    %3087 = vmatprep.subr.mxu0 0.0
    %3088 = vmatpush1.msra.mxu0 %v2640
    %3089 = vmatprep.subr.mxu0 0.0
    %3090 = vmatpush1.msra.mxu0 %v2639
    %3091 = vmatprep.subr.mxu0 0.0
    %3092 = vmatpush1.msra.mxu0 %v2638
    %3093 = vmatprep.subr.mxu0 0.0
    %3094 = vmatpush1.msra.mxu0 %v2637
    %3095 = vmatprep.subr.mxu0 0.0
    %3096 = vmatpush1.msra.mxu0 %v2636
    %3097 = vmatprep.subr.mxu0 0.0
    %3098 = vmatpush1.msra.mxu0 %v2635
    %3099 = vmatprep.subr.mxu0 0.0
    %3100 = vmatpush1.msra.mxu0 %v2634
    %3101 = vmatprep.subr.mxu0 0.0
    %3102 = vmatpush1.msra.mxu0 %v2633
    %3103 = vmatprep.subr.mxu0 0.0
    %3104 = vmatpush1.msra.mxu0 %v2632
    %3105 = vmatprep.subr.mxu0 0.0
    %3106 = vmatpush1.msra.mxu0 %v2631
    %3107 = vmatprep.subr.mxu0 0.0
    %3108 = vmatpush1.msra.mxu0 %v2630
    %3109 = vmatprep.subr.mxu0 0.0
    %3110 = vmatpush1.msra.mxu0 %v2629
    %3111 = vmatprep.subr.mxu0 0.0
    %3112 = vmatpush1.msra.mxu0 %v2628
    %3113 = vmatprep.subr.mxu0 0.0
    %3114 = vmatpush2.msra.mxu0 %v2659
    %3115 = vmatprep.subr.mxu0 0.0
    %3116 = vmatpush2.msra.mxu0 %v2658
    %3117 = vmatprep.subr.mxu0 0.0
    %3118 = vmatpush2.msra.mxu0 %v2657
    %3119 = vmatprep.subr.mxu0 0.0
    %3120 = vmatpush2.msra.mxu0 %v2656
    %3121 = vmatprep.subr.mxu0 0.0
    %3122 = vmatpush2.msra.mxu0 %v2655
    %3123 = vmatprep.subr.mxu0 0.0
    %3124 = vmatpush2.msra.mxu0 %v2654
    %3125 = vmatprep.subr.mxu0 0.0
    %3126 = vmatpush2.msra.mxu0 %v2653
    %3127 = vmatprep.subr.mxu0 0.0
    %3128 = vmatpush2.msra.mxu0 %v2652
    %3129 = vmatprep.subr.mxu0 0.0
    %3130 = vmatpush2.msra.mxu0 %v2651
    %3131 = vmatprep.subr.mxu0 0.0
    %3132 = vmatpush2.msra.mxu0 %v2650
    %3133 = vmatprep.subr.mxu0 0.0
    %3134 = vmatpush2.msra.mxu0 %v2649
    %3135 = vmatprep.subr.mxu0 0.0
    %3136 = vmatpush2.msra.mxu0 %v2648
    %3137 = vmatprep.subr.mxu0 0.0
    %3138 = vmatpush2.msra.mxu0 %v2647
    %3139 = vmatprep.subr.mxu0 0.0
    %3140 = vmatpush2.msra.mxu0 %v2646
    %3141 = vmatprep.subr.mxu0 0.0
    %3142 = vmatpush2.msra.mxu0 %v2645
    %3143 = vmatprep.subr.mxu0 0.0
    %3144 = vmatpush2.msra.mxu0 %v2644
    %3145 = vmatprep.mubr.f32.mxu0 %v2463
    %3146 = vmatmul.mubr.f32.gmra.mxu0 %v2462
    %v3147 = vpop.f32.mrf.mxu0
    %v3148 = vadd.f32 %v3078, %v3147
    %v3149 = vpop.f32.mrf.mxu0
    %3150 = vdwg.mxu0
    %3151 = vmatprep.subr.mxu0 0.0
    %3152 = vmatpush1.msra.mxu0 %v2675
    %3153 = vmatprep.subr.mxu0 0.0
    %3154 = vmatpush1.msra.mxu0 %v2674
    %3155 = vmatprep.subr.mxu0 0.0
    %3156 = vmatpush1.msra.mxu0 %v2673
    %3157 = vmatprep.subr.mxu0 0.0
    %3158 = vmatpush1.msra.mxu0 %v2672
    %3159 = vmatprep.subr.mxu0 0.0
    %3160 = vmatpush1.msra.mxu0 %v2671
    %3161 = vmatprep.subr.mxu0 0.0
    %3162 = vmatpush1.msra.mxu0 %v2670
    %3163 = vmatprep.subr.mxu0 0.0
    %3164 = vmatpush1.msra.mxu0 %v2669
    %3165 = vmatprep.subr.mxu0 0.0
    %3166 = vmatpush1.msra.mxu0 %v2668
    %3167 = vmatprep.subr.mxu0 0.0
    %3168 = vmatpush1.msra.mxu0 %v2667
    %3169 = vmatprep.subr.mxu0 0.0
    %3170 = vmatpush1.msra.mxu0 %v2666
    %3171 = vmatprep.subr.mxu0 0.0
    %3172 = vmatpush1.msra.mxu0 %v2665
    %3173 = vmatprep.subr.mxu0 0.0
    %3174 = vmatpush1.msra.mxu0 %v2664
    %3175 = vmatprep.subr.mxu0 0.0
    %3176 = vmatpush1.msra.mxu0 %v2663
    %3177 = vmatprep.subr.mxu0 0.0
    %3178 = vmatpush1.msra.mxu0 %v2662
    %3179 = vmatprep.subr.mxu0 0.0
    %3180 = vmatpush1.msra.mxu0 %v2661
    %3181 = vmatprep.subr.mxu0 0.0
    %3182 = vmatpush1.msra.mxu0 %v2660
    %3183 = vmatprep.subr.mxu0 0.0
    %3184 = vmatpush2.msra.mxu0 %v2691
    %3185 = vmatprep.subr.mxu0 0.0
    %3186 = vmatpush2.msra.mxu0 %v2690
    %3187 = vmatprep.subr.mxu0 0.0
    %3188 = vmatpush2.msra.mxu0 %v2689
    %3189 = vmatprep.subr.mxu0 0.0
    %3190 = vmatpush2.msra.mxu0 %v2688
    %3191 = vmatprep.subr.mxu0 0.0
    %3192 = vmatpush2.msra.mxu0 %v2687
    %3193 = vmatprep.subr.mxu0 0.0
    %3194 = vmatpush2.msra.mxu0 %v2686
    %3195 = vmatprep.subr.mxu0 0.0
    %3196 = vmatpush2.msra.mxu0 %v2685
    %3197 = vmatprep.subr.mxu0 0.0
    %3198 = vmatpush2.msra.mxu0 %v2684
    %3199 = vmatprep.subr.mxu0 0.0
    %3200 = vmatpush2.msra.mxu0 %v2683
    %3201 = vmatprep.subr.mxu0 0.0
    %3202 = vmatpush2.msra.mxu0 %v2682
    %3203 = vmatprep.subr.mxu0 0.0
    %3204 = vmatpush2.msra.mxu0 %v2681
    %3205 = vmatprep.subr.mxu0 0.0
    %3206 = vmatpush2.msra.mxu0 %v2680
    %3207 = vmatprep.subr.mxu0 0.0
    %3208 = vmatpush2.msra.mxu0 %v2679
    %3209 = vmatprep.subr.mxu0 0.0
    %3210 = vmatpush2.msra.mxu0 %v2678
    %3211 = vmatprep.subr.mxu0 0.0
    %3212 = vmatpush2.msra.mxu0 %v2677
    %3213 = vmatprep.subr.mxu0 0.0
    %3214 = vmatpush2.msra.mxu0 %v2676
    %3215 = vmatprep.mubr.f32.mxu0 %v2465
    %3216 = vmatmul.mubr.f32.gmra.mxu0 %v2464
    %v3217 = vpop.f32.mrf.mxu0
    %v3218 = vadd.f32 %v3148, %v3217
    %v3219 = vpop.f32.mrf.mxu0
    %3220 = vdwg.mxu0
    %3221 = vmatprep.subr.mxu0 0.0
    %3222 = vmatpush1.msra.mxu0 %v2707
    %3223 = vmatprep.subr.mxu0 0.0
    %3224 = vmatpush1.msra.mxu0 %v2706
    %3225 = vmatprep.subr.mxu0 0.0
    %3226 = vmatpush1.msra.mxu0 %v2705
    %3227 = vmatprep.subr.mxu0 0.0
    %3228 = vmatpush1.msra.mxu0 %v2704
    %3229 = vmatprep.subr.mxu0 0.0
    %3230 = vmatpush1.msra.mxu0 %v2703
    %3231 = vmatprep.subr.mxu0 0.0
    %3232 = vmatpush1.msra.mxu0 %v2702
    %3233 = vmatprep.subr.mxu0 0.0
    %3234 = vmatpush1.msra.mxu0 %v2701
    %3235 = vmatprep.subr.mxu0 0.0
    %3236 = vmatpush1.msra.mxu0 %v2700
    %3237 = vmatprep.subr.mxu0 0.0
    %3238 = vmatpush1.msra.mxu0 %v2699
    %3239 = vmatprep.subr.mxu0 0.0
    %3240 = vmatpush1.msra.mxu0 %v2698
    %3241 = vmatprep.subr.mxu0 0.0
    %3242 = vmatpush1.msra.mxu0 %v2697
    %3243 = vmatprep.subr.mxu0 0.0
    %3244 = vmatpush1.msra.mxu0 %v2696
    %3245 = vmatprep.subr.mxu0 0.0
    %3246 = vmatpush1.msra.mxu0 %v2695
    %3247 = vmatprep.subr.mxu0 0.0
    %3248 = vmatpush1.msra.mxu0 %v2694
    %3249 = vmatprep.subr.mxu0 0.0
    %3250 = vmatpush1.msra.mxu0 %v2693
    %3251 = vmatprep.subr.mxu0 0.0
    %3252 = vmatpush1.msra.mxu0 %v2692
    %3253 = vmatprep.subr.mxu0 0.0
    %3254 = vmatpush2.msra.mxu0 %v2723
    %3255 = vmatprep.subr.mxu0 0.0
    %3256 = vmatpush2.msra.mxu0 %v2722
    %3257 = vmatprep.subr.mxu0 0.0
    %3258 = vmatpush2.msra.mxu0 %v2721
    %3259 = vmatprep.subr.mxu0 0.0
    %3260 = vmatpush2.msra.mxu0 %v2720
    %3261 = vmatprep.subr.mxu0 0.0
    %3262 = vmatpush2.msra.mxu0 %v2719
    %3263 = vmatprep.subr.mxu0 0.0
    %3264 = vmatpush2.msra.mxu0 %v2718
    %3265 = vmatprep.subr.mxu0 0.0
    %3266 = vmatpush2.msra.mxu0 %v2717
    %3267 = vmatprep.subr.mxu0 0.0
    %3268 = vmatpush2.msra.mxu0 %v2716
    %3269 = vmatprep.subr.mxu0 0.0
    %3270 = vmatpush2.msra.mxu0 %v2715
    %3271 = vmatprep.subr.mxu0 0.0
    %3272 = vmatpush2.msra.mxu0 %v2714
    %3273 = vmatprep.subr.mxu0 0.0
    %3274 = vmatpush2.msra.mxu0 %v2713
    %3275 = vmatprep.subr.mxu0 0.0
    %3276 = vmatpush2.msra.mxu0 %v2712
    %3277 = vmatprep.subr.mxu0 0.0
    %3278 = vmatpush2.msra.mxu0 %v2711
    %3279 = vmatprep.subr.mxu0 0.0
    %3280 = vmatpush2.msra.mxu0 %v2710
    %3281 = vmatprep.subr.mxu0 0.0
    %3282 = vmatpush2.msra.mxu0 %v2709
    %3283 = vmatprep.subr.mxu0 0.0
    %3284 = vmatpush2.msra.mxu0 %v2708
    %3285 = vmatprep.mubr.f32.mxu0 %v2467
    %3286 = vmatmul.mubr.f32.gmra.mxu0 %v2466
    %v3287 = vpop.f32.mrf.mxu0
    %v3288 = vadd.f32 %v3218, %v3287
    %v3289 = vpop.f32.mrf.mxu0
    %3290 = vdwg.mxu0
    %v3291 = vld [vmem:[#allocation12] sm:$0xff]
    %v3292 = vld [vmem:[#allocation12 + $0x8] sm:$0xff]
    %v3293 = vld [vmem:[#allocation12 + $0x10] sm:$0xff]
    %v3294 = vld [vmem:[#allocation12 + $0x18] sm:$0xff]
    %v3295 = vld [vmem:[#allocation12 + $0x20] sm:$0xff]
    %v3296 = vld [vmem:[#allocation12 + $0x28] sm:$0xff]
    %v3297 = vld [vmem:[#allocation12 + $0x30] sm:$0xff]
    %v3298 = vld [vmem:[#allocation12 + $0x38] sm:$0xff]
    %v3299 = vld [vmem:[#allocation12 + $0x40] sm:$0xff]
    %v3300 = vld [vmem:[#allocation12 + $0x48] sm:$0xff]
    %v3301 = vld [vmem:[#allocation12 + $0x50] sm:$0xff]
    %v3302 = vld [vmem:[#allocation12 + $0x58] sm:$0xff]
    %v3303 = vld [vmem:[#allocation12 + $0x60] sm:$0xff]
    %v3304 = vld [vmem:[#allocation12 + $0x68] sm:$0xff]
    %v3305 = vld [vmem:[#allocation12 + $0x70] sm:$0xff]
    %v3306 = vld [vmem:[#allocation12 + $0x78] sm:$0xff]
    %v3307 = vld [vmem:[#allocation12 + $0x80] sm:$0xff]
    %v3308 = vld [vmem:[#allocation12 + $0x88] sm:$0xff]
    %v3309 = vld [vmem:[#allocation12 + $0x90] sm:$0xff]
    %v3310 = vld [vmem:[#allocation12 + $0x98] sm:$0xff]
    %v3311 = vld [vmem:[#allocation12 + $0xa0] sm:$0xff]
    %v3312 = vld [vmem:[#allocation12 + $0xa8] sm:$0xff]
    %v3313 = vld [vmem:[#allocation12 + $0xb0] sm:$0xff]
    %v3314 = vld [vmem:[#allocation12 + $0xb8] sm:$0xff]
    %v3315 = vld [vmem:[#allocation12 + $0xc0] sm:$0xff]
    %v3316 = vld [vmem:[#allocation12 + $0xc8] sm:$0xff]
    %v3317 = vld [vmem:[#allocation12 + $0xd0] sm:$0xff]
    %v3318 = vld [vmem:[#allocation12 + $0xd8] sm:$0xff]
    %v3319 = vld [vmem:[#allocation12 + $0xe0] sm:$0xff]
    %v3320 = vld [vmem:[#allocation12 + $0xe8] sm:$0xff]
    %v3321 = vld [vmem:[#allocation12 + $0xf0] sm:$0xff]
    %v3322 = vld [vmem:[#allocation12 + $0xf8] sm:$0xff]
    %v3323 = vld [vmem:[#allocation12 + $0x100] sm:$0xff]
    %v3324 = vld [vmem:[#allocation12 + $0x108] sm:$0xff]
    %v3325 = vld [vmem:[#allocation12 + $0x110] sm:$0xff]
    %v3326 = vld [vmem:[#allocation12 + $0x118] sm:$0xff]
    %vm3327 = vcmask 392192
    %v3329 = vsel %vm3327, %v3288, 0
    %3331 = vmatprep.subr.mxu0 0.0
    %3332 = vmatpush1.msra.mxu0 0.0
    %3333 = vmatprep.subr.mxu0 0.0
    %3334 = vmatpush1.msra.mxu0 0.0
    %3335 = vmatprep.subr.mxu0 0.0
    %3336 = vmatpush1.msra.mxu0 0.0
    %3337 = vmatprep.subr.mxu0 0.0
    %3338 = vmatpush1.msra.mxu0 0.0
    %3339 = vmatprep.subr.mxu0 0.0
    %3340 = vmatpush1.msra.mxu0 0.0
    %3341 = vmatprep.subr.mxu0 0.0
    %3342 = vmatpush1.msra.mxu0 0.0
    %3343 = vmatprep.subr.mxu0 0.0
    %3344 = vmatpush1.msra.mxu0 0.0
    %3345 = vmatprep.subr.mxu0 0.0
    %3346 = vmatpush1.msra.mxu0 0.0
    %3347 = vmatprep.subr.mxu0 0.0
    %3348 = vmatpush1.msra.mxu0 0.0
    %3349 = vmatprep.subr.mxu0 0.0
    %3350 = vmatpush1.msra.mxu0 0.0
    %3351 = vmatprep.subr.mxu0 %v3322
    %3352 = vmatpush1.msra.mxu0 %v3321
    %3353 = vmatprep.subr.mxu0 %v3316
    %3354 = vmatpush1.msra.mxu0 %v3315
    %3355 = vmatprep.subr.mxu0 %v3310
    %3356 = vmatpush1.msra.mxu0 %v3309
    %3357 = vmatprep.subr.mxu0 %v3304
    %3358 = vmatpush1.msra.mxu0 %v3303
    %3359 = vmatprep.subr.mxu0 %v3298
    %3360 = vmatpush1.msra.mxu0 %v3297
    %3361 = vmatprep.subr.mxu0 %v3292
    %3362 = vmatpush1.msra.mxu0 %v3291
    %3363 = vmatprep.subr.mxu0 0.0
    %3364 = vmatpush2.msra.mxu0 0.0
    %3365 = vmatprep.subr.mxu0 0.0
    %3366 = vmatpush2.msra.mxu0 0.0
    %3367 = vmatprep.subr.mxu0 0.0
    %3368 = vmatpush2.msra.mxu0 0.0
    %3369 = vmatprep.subr.mxu0 0.0
    %3370 = vmatpush2.msra.mxu0 0.0
    %3371 = vmatprep.subr.mxu0 0.0
    %3372 = vmatpush2.msra.mxu0 0.0
    %3373 = vmatprep.subr.mxu0 0.0
    %3374 = vmatpush2.msra.mxu0 0.0
    %3375 = vmatprep.subr.mxu0 0.0
    %3376 = vmatpush2.msra.mxu0 0.0
    %3377 = vmatprep.subr.mxu0 0.0
    %3378 = vmatpush2.msra.mxu0 0.0
    %3379 = vmatprep.subr.mxu0 0.0
    %3380 = vmatpush2.msra.mxu0 0.0
    %3381 = vmatprep.subr.mxu0 0.0
    %3382 = vmatpush2.msra.mxu0 0.0
    %3383 = vmatprep.subr.mxu0 0.0
    %3384 = vmatpush2.msra.mxu0 0.0
    %3385 = vmatprep.subr.mxu0 0.0
    %3386 = vmatpush2.msra.mxu0 0.0
    %3387 = vmatprep.subr.mxu0 0.0
    %3388 = vmatpush2.msra.mxu0 0.0
    %3389 = vmatprep.subr.mxu0 0.0
    %3390 = vmatpush2.msra.mxu0 0.0
    %3391 = vmatprep.subr.mxu0 0.0
    %3392 = vmatpush2.msra.mxu0 0.0
    %3393 = vmatprep.subr.mxu0 0.0
    %3394 = vmatpush2.msra.mxu0 0.0
    %3395 = vmatprep.mubr.f32.mxu0 0.0
    %3396 = vmatmul.mubr.f32.gmra.mxu0 %v3329
    %v3397 = vpop.f32.mrf.mxu0
    %v3398 = vadd.f32 0.0, %v3397
    %v3399 = vpop.f32.mrf.mxu0
    %v3400 = vadd.f32 0.0, %v3399
    %3401 = vdwg.mxu0
    %3402 = vmatprep.subr.mxu0 0.0
    %3403 = vmatpush1.msra.mxu0 0.0
    %3404 = vmatprep.subr.mxu0 0.0
    %3405 = vmatpush1.msra.mxu0 0.0
    %3406 = vmatprep.subr.mxu0 0.0
    %3407 = vmatpush1.msra.mxu0 0.0
    %3408 = vmatprep.subr.mxu0 0.0
    %3409 = vmatpush1.msra.mxu0 0.0
    %3410 = vmatprep.subr.mxu0 0.0
    %3411 = vmatpush1.msra.mxu0 0.0
    %3412 = vmatprep.subr.mxu0 0.0
    %3413 = vmatpush1.msra.mxu0 0.0
    %3414 = vmatprep.subr.mxu0 0.0
    %3415 = vmatpush1.msra.mxu0 0.0
    %3416 = vmatprep.subr.mxu0 0.0
    %3417 = vmatpush1.msra.mxu0 0.0
    %3418 = vmatprep.subr.mxu0 0.0
    %3419 = vmatpush1.msra.mxu0 0.0
    %3420 = vmatprep.subr.mxu0 0.0
    %3421 = vmatpush1.msra.mxu0 0.0
    %3422 = vmatprep.subr.mxu0 %v3324
    %3423 = vmatpush1.msra.mxu0 %v3323
    %3424 = vmatprep.subr.mxu0 %v3318
    %3425 = vmatpush1.msra.mxu0 %v3317
    %3426 = vmatprep.subr.mxu0 %v3312
    %3427 = vmatpush1.msra.mxu0 %v3311
    %3428 = vmatprep.subr.mxu0 %v3306
    %3429 = vmatpush1.msra.mxu0 %v3305
    %3430 = vmatprep.subr.mxu0 %v3300
    %3431 = vmatpush1.msra.mxu0 %v3299
    %3432 = vmatprep.subr.mxu0 %v3294
    %3433 = vmatpush1.msra.mxu0 %v3293
    %3434 = vmatprep.subr.mxu0 0.0
    %3435 = vmatpush2.msra.mxu0 0.0
    %3436 = vmatprep.subr.mxu0 0.0
    %3437 = vmatpush2.msra.mxu0 0.0
    %3438 = vmatprep.subr.mxu0 0.0
    %3439 = vmatpush2.msra.mxu0 0.0
    %3440 = vmatprep.subr.mxu0 0.0
    %3441 = vmatpush2.msra.mxu0 0.0
    %3442 = vmatprep.subr.mxu0 0.0
    %3443 = vmatpush2.msra.mxu0 0.0
    %3444 = vmatprep.subr.mxu0 0.0
    %3445 = vmatpush2.msra.mxu0 0.0
    %3446 = vmatprep.subr.mxu0 0.0
    %3447 = vmatpush2.msra.mxu0 0.0
    %3448 = vmatprep.subr.mxu0 0.0
    %3449 = vmatpush2.msra.mxu0 0.0
    %3450 = vmatprep.subr.mxu0 0.0
    %3451 = vmatpush2.msra.mxu0 0.0
    %3452 = vmatprep.subr.mxu0 0.0
    %3453 = vmatpush2.msra.mxu0 0.0
    %3454 = vmatprep.subr.mxu0 0.0
    %3455 = vmatpush2.msra.mxu0 0.0
    %3456 = vmatprep.subr.mxu0 0.0
    %3457 = vmatpush2.msra.mxu0 0.0
    %3458 = vmatprep.subr.mxu0 0.0
    %3459 = vmatpush2.msra.mxu0 0.0
    %3460 = vmatprep.subr.mxu0 0.0
    %3461 = vmatpush2.msra.mxu0 0.0
    %3462 = vmatprep.subr.mxu0 0.0
    %3463 = vmatpush2.msra.mxu0 0.0
    %3464 = vmatprep.subr.mxu0 0.0
    %3465 = vmatpush2.msra.mxu0 0.0
    %3466 = vmatprep.mubr.f32.mxu0 0.0
    %3467 = vmatmul.mubr.f32.gmra.mxu0 %v3329
    %v3468 = vpop.f32.mrf.mxu0
    %v3469 = vadd.f32 0.0, %v3468
    %v3470 = vpop.f32.mrf.mxu0
    %v3471 = vadd.f32 0.0, %v3470
    %3472 = vdwg.mxu0
    %3473 = vmatprep.subr.mxu0 0.0
    %3474 = vmatpush1.msra.mxu0 0.0
    %3475 = vmatprep.subr.mxu0 0.0
    %3476 = vmatpush1.msra.mxu0 0.0
    %3477 = vmatprep.subr.mxu0 0.0
    %3478 = vmatpush1.msra.mxu0 0.0
    %3479 = vmatprep.subr.mxu0 0.0
    %3480 = vmatpush1.msra.mxu0 0.0
    %3481 = vmatprep.subr.mxu0 0.0
    %3482 = vmatpush1.msra.mxu0 0.0
    %3483 = vmatprep.subr.mxu0 0.0
    %3484 = vmatpush1.msra.mxu0 0.0
    %3485 = vmatprep.subr.mxu0 0.0
    %3486 = vmatpush1.msra.mxu0 0.0
    %3487 = vmatprep.subr.mxu0 0.0
    %3488 = vmatpush1.msra.mxu0 0.0
    %3489 = vmatprep.subr.mxu0 0.0
    %3490 = vmatpush1.msra.mxu0 0.0
    %3491 = vmatprep.subr.mxu0 0.0
    %3492 = vmatpush1.msra.mxu0 0.0
    %3493 = vmatprep.subr.mxu0 %v3326
    %3494 = vmatpush1.msra.mxu0 %v3325
    %3495 = vmatprep.subr.mxu0 %v3320
    %3496 = vmatpush1.msra.mxu0 %v3319
    %3497 = vmatprep.subr.mxu0 %v3314
    %3498 = vmatpush1.msra.mxu0 %v3313
    %3499 = vmatprep.subr.mxu0 %v3308
    %3500 = vmatpush1.msra.mxu0 %v3307
    %3501 = vmatprep.subr.mxu0 %v3302
    %3502 = vmatpush1.msra.mxu0 %v3301
    %3503 = vmatprep.subr.mxu0 %v3296
    %3504 = vmatpush1.msra.mxu0 %v3295
    %3505 = vmatprep.subr.mxu0 0.0
    %3506 = vmatpush2.msra.mxu0 0.0
    %3507 = vmatprep.subr.mxu0 0.0
    %3508 = vmatpush2.msra.mxu0 0.0
    %3509 = vmatprep.subr.mxu0 0.0
    %3510 = vmatpush2.msra.mxu0 0.0
    %3511 = vmatprep.subr.mxu0 0.0
    %3512 = vmatpush2.msra.mxu0 0.0
    %3513 = vmatprep.subr.mxu0 0.0
    %3514 = vmatpush2.msra.mxu0 0.0
    %3515 = vmatprep.subr.mxu0 0.0
    %3516 = vmatpush2.msra.mxu0 0.0
    %3517 = vmatprep.subr.mxu0 0.0
    %3518 = vmatpush2.msra.mxu0 0.0
    %3519 = vmatprep.subr.mxu0 0.0
    %3520 = vmatpush2.msra.mxu0 0.0
    %3521 = vmatprep.subr.mxu0 0.0
    %3522 = vmatpush2.msra.mxu0 0.0
    %3523 = vmatprep.subr.mxu0 0.0
    %3524 = vmatpush2.msra.mxu0 0.0
    %3525 = vmatprep.subr.mxu0 0.0
    %3526 = vmatpush2.msra.mxu0 0.0
    %3527 = vmatprep.subr.mxu0 0.0
    %3528 = vmatpush2.msra.mxu0 0.0
    %3529 = vmatprep.subr.mxu0 0.0
    %3530 = vmatpush2.msra.mxu0 0.0
    %3531 = vmatprep.subr.mxu0 0.0
    %3532 = vmatpush2.msra.mxu0 0.0
    %3533 = vmatprep.subr.mxu0 0.0
    %3534 = vmatpush2.msra.mxu0 0.0
    %3535 = vmatprep.subr.mxu0 0.0
    %3536 = vmatpush2.msra.mxu0 0.0
    %3537 = vmatprep.mubr.f32.mxu0 0.0
    %3538 = vmatmul.mubr.f32.gmra.mxu0 %v3329
    %v3539 = vpop.f32.mrf.mxu0
    %v3540 = vadd.f32 0.0, %v3539
    %v3541 = vpop.f32.mrf.mxu0
    %v3542 = vadd.f32 0.0, %v3541
    %3543 = vdwg.mxu0
    %v3546 = vunpack.c.l.s4 1966171168
    %v3547 = vunpack.c.0.s8 %v3546
    %v3548 = vlaneseq
    %v3549 = vshrl.u32 %v3548, 7
    %v3550 = vsub.s32 %v3547, %v3549
    %v3551 = vrot.slane %v3398, %v3550
    %v3552 = vcombine.high %v3551, %v3551
    %v3554 = vunpack.c.l.s4 1966171168
    %v3555 = vunpack.c.0.s8 %v3554
    %v3556 = vlaneseq
    %v3557 = vshrl.u32 %v3556, 7
    %v3558 = vsub.s32 %v3555, %v3557
    %v3559 = vrot.slane %v3551, %v3558
    %v3561 = vunpack.c.l.s4 1966171168
    %v3562 = vunpack.c.0.s8 %v3561
    %v3563 = vlaneseq
    %v3564 = vshrl.u32 %v3563, 7
    %v3565 = vsub.s32 %v3562, %v3564
    %v3566 = vrot.slane %v3552, %v3565
    %v3569 = vunpack.c.l.s4 1966171168
    %v3570 = vunpack.c.0.s8 %v3569
    %v3571 = vlaneseq
    %v3572 = vshrl.u32 %v3571, 7
    %v3573 = vsub.s32 %v3570, %v3572
    %v3574 = vrot.slane %v3400, %v3573
    %v3575 = vcombine.high %v3574, %v3574
    %v3577 = vunpack.c.l.s4 1966171168
    %v3578 = vunpack.c.0.s8 %v3577
    %v3579 = vlaneseq
    %v3580 = vshrl.u32 %v3579, 7
    %v3581 = vsub.s32 %v3578, %v3580
    %v3582 = vrot.slane %v3574, %v3581
    %v3584 = vunpack.c.l.s4 1966171168
    %v3585 = vunpack.c.0.s8 %v3584
    %v3586 = vlaneseq
    %v3587 = vshrl.u32 %v3586, 7
    %v3588 = vsub.s32 %v3585, %v3587
    %v3589 = vrot.slane %v3575, %v3588
    %v3592 = vunpack.c.l.s4 1966171168
    %v3593 = vunpack.c.0.s8 %v3592
    %v3594 = vlaneseq
    %v3595 = vshrl.u32 %v3594, 7
    %v3596 = vsub.s32 %v3593, %v3595
    %v3597 = vrot.slane %v3469, %v3596
    %v3598 = vcombine.high %v3597, %v3597
    %v3600 = vunpack.c.l.s4 1966171168
    %v3601 = vunpack.c.0.s8 %v3600
    %v3602 = vlaneseq
    %v3603 = vshrl.u32 %v3602, 7
    %v3604 = vsub.s32 %v3601, %v3603
    %v3605 = vrot.slane %v3597, %v3604
    %v3607 = vunpack.c.l.s4 1966171168
    %v3608 = vunpack.c.0.s8 %v3607
    %v3609 = vlaneseq
    %v3610 = vshrl.u32 %v3609, 7
    %v3611 = vsub.s32 %v3608, %v3610
    %v3612 = vrot.slane %v3598, %v3611
    %v3615 = vunpack.c.l.s4 1966171168
    %v3616 = vunpack.c.0.s8 %v3615
    %v3617 = vlaneseq
    %v3618 = vshrl.u32 %v3617, 7
    %v3619 = vsub.s32 %v3616, %v3618
    %v3620 = vrot.slane %v3471, %v3619
    %v3621 = vcombine.high %v3620, %v3620
    %v3623 = vunpack.c.l.s4 1966171168
    %v3624 = vunpack.c.0.s8 %v3623
    %v3625 = vlaneseq
    %v3626 = vshrl.u32 %v3625, 7
    %v3627 = vsub.s32 %v3624, %v3626
    %v3628 = vrot.slane %v3620, %v3627
    %v3630 = vunpack.c.l.s4 1966171168
    %v3631 = vunpack.c.0.s8 %v3630
    %v3632 = vlaneseq
    %v3633 = vshrl.u32 %v3632, 7
    %v3634 = vsub.s32 %v3631, %v3633
    %v3635 = vrot.slane %v3621, %v3634
    %v3638 = vunpack.c.l.s4 1966171168
    %v3639 = vunpack.c.0.s8 %v3638
    %v3640 = vlaneseq
    %v3641 = vshrl.u32 %v3640, 7
    %v3642 = vsub.s32 %v3639, %v3641
    %v3643 = vrot.slane %v3540, %v3642
    %v3644 = vcombine.high %v3643, %v3643
    %v3646 = vunpack.c.l.s4 1966171168
    %v3647 = vunpack.c.0.s8 %v3646
    %v3648 = vlaneseq
    %v3649 = vshrl.u32 %v3648, 7
    %v3650 = vsub.s32 %v3647, %v3649
    %v3651 = vrot.slane %v3643, %v3650
    %v3653 = vunpack.c.l.s4 1966171168
    %v3654 = vunpack.c.0.s8 %v3653
    %v3655 = vlaneseq
    %v3656 = vshrl.u32 %v3655, 7
    %v3657 = vsub.s32 %v3654, %v3656
    %v3658 = vrot.slane %v3644, %v3657
    %v3661 = vunpack.c.l.s4 1966171168
    %v3662 = vunpack.c.0.s8 %v3661
    %v3663 = vlaneseq
    %v3664 = vshrl.u32 %v3663, 7
    %v3665 = vsub.s32 %v3662, %v3664
    %v3666 = vrot.slane %v3542, %v3665
    %v3667 = vcombine.high %v3666, %v3666
    %v3669 = vunpack.c.l.s4 1966171168
    %v3670 = vunpack.c.0.s8 %v3669
    %v3671 = vlaneseq
    %v3672 = vshrl.u32 %v3671, 7
    %v3673 = vsub.s32 %v3670, %v3672
    %v3674 = vrot.slane %v3666, %v3673
    %v3676 = vunpack.c.l.s4 1966171168
    %v3677 = vunpack.c.0.s8 %v3676
    %v3678 = vlaneseq
    %v3679 = vshrl.u32 %v3678, 7
    %v3680 = vsub.s32 %v3677, %v3679
    %v3681 = vrot.slane %v3667, %v3680
    %v3682 = vld [vmem:[%s1] sm:$0xff]
    %v3683 = vld [vmem:[%s1 + $0x8] sm:$0xff]
    %v3684 = vld [vmem:[%s1 + $0x10] sm:$0xff]
    %v3685 = vld [vmem:[%s1 + $0x18] sm:$0xff]
    %v3686 = vlaneseq
    %v3687 = vshrl.u32 %v3686, 7
    %v3688 = vsub.s32 0, %v3687
    %v3689 = vrot.slane %v3559, %v3688
    %v3690 = vlaneseq
    %v3691 = vshrl.u32 %v3690, 7
    %v3692 = vsub.s32 0, %v3691
    %v3693 = vrot.slane %v3566, %v3692
    %v3696 = vmul.f32 %v3689, %v3682
    %v3697 = vmul.f32 %v3689, %v3683
    %v3698 = vmul.f32 %v3693, %v3684
    %v3699 = vmul.f32 %v3693, %v3685
    %3700 = vrot.lane.b32.xlu0 %v3689, 64
    %v3701 = vpop.permute.xlu0 %3700
    %3702 = vrot.lane.b32.xlu0 %v3693, 64
    %v3703 = vpop.permute.xlu0 %3702
    %v3706 = vadd.f32 %v3696, %v3701
    %v3707 = vadd.f32 %v3697, %v3701
    %v3708 = vadd.f32 %v3698, %v3703
    %v3709 = vadd.f32 %v3699, %v3703
    %vm3710 = vcmp.ge.f32.partialorder %v3706, 0.0
    %vm3711 = vcmp.ge.f32.partialorder %v3707, 0.0
    %vm3712 = vcmp.ge.f32.partialorder %v3708, 0.0
    %vm3713 = vcmp.ge.f32.partialorder %v3709, 0.0
    %v3714 = vmul.f32 %v3706, 0.2
    %v3715 = vmul.f32 %v3707, 0.2
    %v3716 = vmul.f32 %v3708, 0.2
    %v3717 = vmul.f32 %v3709, 0.2
    %v3718 = vsel %vm3710, %v3706, %v3714
    %v3719 = vsel %vm3711, %v3707, %v3715
    %v3720 = vsel %vm3712, %v3708, %v3716
    %v3721 = vsel %vm3713, %v3709, %v3717
    %v3722 = vlaneseq
    %v3723 = vshrl.u32 %v3722, 7
    %v3724 = vsub.s32 0, %v3723
    %v3725 = vrot.slane %v3582, %v3724
    %v3726 = vlaneseq
    %v3727 = vshrl.u32 %v3726, 7
    %v3728 = vsub.s32 0, %v3727
    %v3729 = vrot.slane %v3589, %v3728
    %v3732 = vmul.f32 %v3725, %v3718
    %v3733 = vmul.f32 %v3725, %v3719
    %v3734 = vmul.f32 %v3729, %v3720
    %v3735 = vmul.f32 %v3729, %v3721
    %3736 = vrot.lane.b32.xlu0 %v3725, 64
    %v3737 = vpop.permute.xlu0 %3736
    %3738 = vrot.lane.b32.xlu0 %v3729, 64
    %v3739 = vpop.permute.xlu0 %3738
    %v3742 = vadd.f32 %v3732, %v3737
    %v3743 = vadd.f32 %v3733, %v3737
    %v3744 = vadd.f32 %v3734, %v3739
    %v3745 = vadd.f32 %v3735, %v3739
    %vm3746 = vcmp.ge.f32.partialorder %v3742, 0.0
    %vm3747 = vcmp.ge.f32.partialorder %v3743, 0.0
    %vm3748 = vcmp.ge.f32.partialorder %v3744, 0.0
    %vm3749 = vcmp.ge.f32.partialorder %v3745, 0.0
    %v3750 = vmul.f32 %v3742, 0.2
    %v3751 = vmul.f32 %v3743, 0.2
    %v3752 = vmul.f32 %v3744, 0.2
    %v3753 = vmul.f32 %v3745, 0.2
    %v3754 = vsel %vm3746, %v3742, %v3750
    %v3755 = vsel %vm3747, %v3743, %v3751
    %v3756 = vsel %vm3748, %v3744, %v3752
    %v3757 = vsel %vm3749, %v3745, %v3753
    %vm3758 = vcmask 523264
    %3759 = vst.msk [vmem:[#allocation2] sm:$0xff] %vm3758, 0.0
    %3760 = vst.msk [vmem:[#allocation2 + $0x8] sm:$0xff] %vm3758, 0.0
    %vm3761 = vcmask 517120
    %3762 = vst.msk [vmem:[#allocation2 + $0x10] sm:$0x3] %vm3761, 0.0
    %3763 = vst.msk [vmem:[#allocation2 + $0x18] sm:$0xff] %vm3758, 0.0
    %3764 = vst.msk [vmem:[#allocation2 + $0x20] sm:$0xff] %vm3758, 0.0
    %3765 = vst.msk [vmem:[#allocation2 + $0x28] sm:$0x3] %vm3761, 0.0
    %3766 = vst.msk [vmem:[#allocation2 + $0x1] sm:$0xff] %vm3758, %v3754
    %3767 = vst.msk [vmem:[#allocation2 + $0x9] sm:$0xff] %vm3758, %v3755
    %3768 = vst.msk [vmem:[#allocation2 + $0x19] sm:$0xff] %vm3758, %v3756
    %3769 = vst.msk [vmem:[#allocation2 + $0x21] sm:$0xff] %vm3758, %v3757
    %v3770 = vld [vmem:[#allocation2] sm:$0xff]
    %v3771 = vld [vmem:[#allocation2 + $0x8] sm:$0xff]
    %v3772 = vld [vmem:[#allocation2 + $0x10] sm:$0x3]
    %v3773 = vld [vmem:[#allocation2 + $0x18] sm:$0xff]
    %v3774 = vld [vmem:[#allocation2 + $0x20] sm:$0xff]
    %v3775 = vld [vmem:[#allocation2 + $0x28] sm:$0x3]
    %vm3782 = vcmask 1046528
    %v3783 = vrot.slane %v3770, 1
    %v3784 = vrot.slane %v3771, 1
    %v3785 = vsel %vm3782, %v3783, %v3784
    %v3786 = vrot.slane %v3772, 1
    %v3787 = vsel %vm3782, %v3784, %v3786
    %v3788 = vrot.slane %v3773, 1
    %v3789 = vrot.slane %v3774, 1
    %v3790 = vsel %vm3782, %v3788, %v3789
    %v3791 = vrot.slane %v3775, 1
    %v3792 = vsel %vm3782, %v3789, %v3791
    %3793 = vrot.lane.b32.xlu0 %v3785, 64
    %v3794 = vpop.permute.xlu0 %3793
    %3795 = vrot.lane.b32.xlu0 %v3787, 64
    %v3796 = vpop.permute.xlu0 %3795
    %3797 = vrot.lane.b32.xlu0 %v3790, 64
    %v3798 = vpop.permute.xlu0 %3797
    %3799 = vrot.lane.b32.xlu0 %v3792, 64
    %v3800 = vpop.permute.xlu0 %3799
    %vm3805 = vcmask 1045504
    %v3806 = vrot.slane %v3770, 2
    %v3807 = vrot.slane %v3771, 2
    %v3808 = vsel %vm3805, %v3806, %v3807
    %v3809 = vrot.slane %v3772, 2
    %v3810 = vsel %vm3805, %v3807, %v3809
    %v3811 = vrot.slane %v3773, 2
    %v3812 = vrot.slane %v3774, 2
    %v3813 = vsel %vm3805, %v3811, %v3812
    %v3814 = vrot.slane %v3775, 2
    %v3815 = vsel %vm3805, %v3812, %v3814
    %v3816 = vsel %vm3758, %v3770, %v3794
    %v3817 = vsel %vm3758, %v3771, %v3796
    %v3818 = vsel %vm3758, %v3773, %v3798
    %v3819 = vsel %vm3758, %v3774, %v3800
    %v3820 = vld [vmem:[#allocation13] sm:$0xff]
    %v3821 = vld [vmem:[#allocation13 + $0x8] sm:$0xff]
    %v3822 = vld [vmem:[#allocation13 + $0x10] sm:$0xff]
    %v3823 = vld [vmem:[#allocation13 + $0x18] sm:$0xff]
    %v3824 = vld [vmem:[#allocation13 + $0x20] sm:$0xff]
    %v3825 = vld [vmem:[#allocation13 + $0x28] sm:$0xff]
    %v3826 = vld [vmem:[#allocation13 + $0x30] sm:$0xff]
    %v3827 = vld [vmem:[#allocation13 + $0x38] sm:$0xff]
    %v3828 = vld [vmem:[#allocation13 + $0x40] sm:$0xff]
    %v3829 = vld [vmem:[#allocation13 + $0x48] sm:$0xff]
    %v3830 = vld [vmem:[#allocation13 + $0x50] sm:$0xff]
    %v3831 = vld [vmem:[#allocation13 + $0x58] sm:$0xff]
    %v3832 = vld [vmem:[#allocation13 + $0x60] sm:$0xff]
    %v3833 = vld [vmem:[#allocation13 + $0x68] sm:$0xff]
    %v3834 = vld [vmem:[#allocation13 + $0x70] sm:$0xff]
    %v3835 = vld [vmem:[#allocation13 + $0x78] sm:$0xff]
    %v3836 = vld [vmem:[#allocation13 + $0x80] sm:$0xff]
    %v3837 = vld [vmem:[#allocation13 + $0x88] sm:$0xff]
    %v3838 = vld [vmem:[#allocation13 + $0x90] sm:$0xff]
    %v3839 = vld [vmem:[#allocation13 + $0x98] sm:$0xff]
    %v3840 = vld [vmem:[#allocation13 + $0xa0] sm:$0xff]
    %v3841 = vld [vmem:[#allocation13 + $0xa8] sm:$0xff]
    %v3842 = vld [vmem:[#allocation13 + $0xb0] sm:$0xff]
    %v3843 = vld [vmem:[#allocation13 + $0xb8] sm:$0xff]
    %v3844 = vld [vmem:[#allocation15] sm:$0x1]
    %v3846 = vlaneseq
    %v3847 = vshrl.u32 %v3846, 7
    %v3848 = vsub.s32 0, %v3847
    %v3849 = vrot.slane %v3844, %v3848
    %v3851 = vsel %vm3758, %v3808, 0
    %v3853 = vsel %vm3758, %v3810, 0
    %v3855 = vsel %vm3758, %v3813, 0
    %v3857 = vsel %vm3758, %v3815, 0
    %3859 = vmatprep.subr.mxu0 0.0
    %3860 = vmatpush1.msra.mxu0 %v3835
    %3861 = vmatprep.subr.mxu0 0.0
    %3862 = vmatpush1.msra.mxu0 %v3834
    %3863 = vmatprep.subr.mxu0 0.0
    %3864 = vmatpush1.msra.mxu0 %v3833
    %3865 = vmatprep.subr.mxu0 0.0
    %3866 = vmatpush1.msra.mxu0 %v3832
    %3867 = vmatprep.subr.mxu0 0.0
    %3868 = vmatpush1.msra.mxu0 %v3831
    %3869 = vmatprep.subr.mxu0 0.0
    %3870 = vmatpush1.msra.mxu0 %v3830
    %3871 = vmatprep.subr.mxu0 0.0
    %3872 = vmatpush1.msra.mxu0 %v3829
    %3873 = vmatprep.subr.mxu0 0.0
    %3874 = vmatpush1.msra.mxu0 %v3828
    %3875 = vmatprep.subr.mxu0 0.0
    %3876 = vmatpush1.msra.mxu0 %v3827
    %3877 = vmatprep.subr.mxu0 0.0
    %3878 = vmatpush1.msra.mxu0 %v3826
    %3879 = vmatprep.subr.mxu0 0.0
    %3880 = vmatpush1.msra.mxu0 %v3825
    %3881 = vmatprep.subr.mxu0 0.0
    %3882 = vmatpush1.msra.mxu0 %v3824
    %3883 = vmatprep.subr.mxu0 0.0
    %3884 = vmatpush1.msra.mxu0 %v3823
    %3885 = vmatprep.subr.mxu0 0.0
    %3886 = vmatpush1.msra.mxu0 %v3822
    %3887 = vmatprep.subr.mxu0 0.0
    %3888 = vmatpush1.msra.mxu0 %v3821
    %3889 = vmatprep.subr.mxu0 0.0
    %3890 = vmatpush1.msra.mxu0 %v3820
    %3891 = vmatprep.subr.mxu0 0.0
    %3892 = vmatpush2.msra.mxu0 0.0
    %3893 = vmatprep.subr.mxu0 0.0
    %3894 = vmatpush2.msra.mxu0 0.0
    %3895 = vmatprep.subr.mxu0 0.0
    %3896 = vmatpush2.msra.mxu0 0.0
    %3897 = vmatprep.subr.mxu0 0.0
    %3898 = vmatpush2.msra.mxu0 0.0
    %3899 = vmatprep.subr.mxu0 0.0
    %3900 = vmatpush2.msra.mxu0 0.0
    %3901 = vmatprep.subr.mxu0 0.0
    %3902 = vmatpush2.msra.mxu0 0.0
    %3903 = vmatprep.subr.mxu0 0.0
    %3904 = vmatpush2.msra.mxu0 0.0
    %3905 = vmatprep.subr.mxu0 0.0
    %3906 = vmatpush2.msra.mxu0 0.0
    %3907 = vmatprep.subr.mxu0 0.0
    %3908 = vmatpush2.msra.mxu0 %v3843
    %3909 = vmatprep.subr.mxu0 0.0
    %3910 = vmatpush2.msra.mxu0 %v3842
    %3911 = vmatprep.subr.mxu0 0.0
    %3912 = vmatpush2.msra.mxu0 %v3841
    %3913 = vmatprep.subr.mxu0 0.0
    %3914 = vmatpush2.msra.mxu0 %v3840
    %3915 = vmatprep.subr.mxu0 0.0
    %3916 = vmatpush2.msra.mxu0 %v3839
    %3917 = vmatprep.subr.mxu0 0.0
    %3918 = vmatpush2.msra.mxu0 %v3838
    %3919 = vmatprep.subr.mxu0 0.0
    %3920 = vmatpush2.msra.mxu0 %v3837
    %3921 = vmatprep.subr.mxu0 0.0
    %3922 = vmatpush2.msra.mxu0 %v3836
    %3923 = vmatprep.mubr.f32.mxu0 %v3851
    %3924 = vmatmul.mubr.f32.gmra.mxu0 %v3816
    %v3925 = vpop.f32.mrf.mxu0
    %v3926 = vadd.f32 %v3849, %v3925
    %v3927 = vpop.f32.mrf.mxu0
    %3928 = vmatprep.mubr.f32.mxu0 %v3853
    %3929 = vmatmul.mubr.f32.gmra.mxu0 %v3817
    %v3930 = vpop.f32.mrf.mxu0
    %v3931 = vadd.f32 %v3849, %v3930
    %v3932 = vpop.f32.mrf.mxu0
    %3933 = vmatprep.mubr.f32.mxu0 %v3855
    %3934 = vmatmul.mubr.f32.gmra.mxu0 %v3818
    %v3935 = vpop.f32.mrf.mxu0
    %v3936 = vadd.f32 %v3849, %v3935
    %v3937 = vpop.f32.mrf.mxu0
    %3938 = vmatprep.mubr.f32.mxu0 %v3857
    %3939 = vmatmul.mubr.f32.gmra.mxu0 %v3819
    %v3940 = vpop.f32.mrf.mxu0
    %v3941 = vadd.f32 %v3849, %v3940
    %v3942 = vpop.f32.mrf.mxu0
    %3943 = vdwg.mxu0
    %v3944 = vlaneseq
    %v3945 = vshrl.u32 %v3944, 7
    %v3946 = vsub.s32 0, %v3945
    %v3947 = vrot.slane %v3605, %v3946
    %v3948 = vlaneseq
    %v3949 = vshrl.u32 %v3948, 7
    %v3950 = vsub.s32 0, %v3949
    %v3951 = vrot.slane %v3612, %v3950
    %v3954 = vmul.f32 %v3947, %v3926
    %v3955 = vmul.f32 %v3947, %v3931
    %v3956 = vmul.f32 %v3951, %v3936
    %v3957 = vmul.f32 %v3951, %v3941
    %v3958 = vlaneseq
    %v3959 = vshrl.u32 %v3958, 7
    %v3960 = vsub.s32 0, %v3959
    %v3961 = vrot.slane %v3628, %v3960
    %v3962 = vlaneseq
    %v3963 = vshrl.u32 %v3962, 7
    %v3964 = vsub.s32 0, %v3963
    %v3965 = vrot.slane %v3635, %v3964
    %v3968 = vadd.f32 %v3954, %v3961
    %v3969 = vadd.f32 %v3955, %v3961
    %v3970 = vadd.f32 %v3956, %v3965
    %v3971 = vadd.f32 %v3957, %v3965
    %vm3972 = vcmp.ge.f32.partialorder %v3968, 0.0
    %vm3973 = vcmp.ge.f32.partialorder %v3969, 0.0
    %vm3974 = vcmp.ge.f32.partialorder %v3970, 0.0
    %vm3975 = vcmp.ge.f32.partialorder %v3971, 0.0
    %v3976 = vmul.f32 %v3968, 0.2
    %v3977 = vmul.f32 %v3969, 0.2
    %v3978 = vmul.f32 %v3970, 0.2
    %v3979 = vmul.f32 %v3971, 0.2
    %v3980 = vsel %vm3972, %v3968, %v3976
    %v3981 = vsel %vm3973, %v3969, %v3977
    %v3982 = vsel %vm3974, %v3970, %v3978
    %v3983 = vsel %vm3975, %v3971, %v3979
    %v3984 = vlaneseq
    %v3985 = vshrl.u32 %v3984, 7
    %v3986 = vsub.s32 0, %v3985
    %v3987 = vrot.slane %v3651, %v3986
    %v3988 = vlaneseq
    %v3989 = vshrl.u32 %v3988, 7
    %v3990 = vsub.s32 0, %v3989
    %v3991 = vrot.slane %v3658, %v3990
    %v3994 = vmul.f32 %v3987, %v3980
    %v3995 = vmul.f32 %v3987, %v3981
    %v3996 = vmul.f32 %v3991, %v3982
    %v3997 = vmul.f32 %v3991, %v3983
    %v3998 = vlaneseq
    %v3999 = vshrl.u32 %v3998, 7
    %v4000 = vsub.s32 0, %v3999
    %v4001 = vrot.slane %v3674, %v4000
    %v4002 = vlaneseq
    %v4003 = vshrl.u32 %v4002, 7
    %v4004 = vsub.s32 0, %v4003
    %v4005 = vrot.slane %v3681, %v4004
    %v4008 = vadd.f32 %v3994, %v4001
    %v4009 = vadd.f32 %v3995, %v4001
    %v4010 = vadd.f32 %v3996, %v4005
    %v4011 = vadd.f32 %v3997, %v4005
    %vm4012 = vcmp.ge.f32.partialorder %v4008, 0.0
    %vm4013 = vcmp.ge.f32.partialorder %v4009, 0.0
    %vm4014 = vcmp.ge.f32.partialorder %v4010, 0.0
    %vm4015 = vcmp.ge.f32.partialorder %v4011, 0.0
    %v4016 = vmul.f32 %v4008, 0.2
    %v4017 = vmul.f32 %v4009, 0.2
    %v4018 = vmul.f32 %v4010, 0.2
    %v4019 = vmul.f32 %v4011, 0.2
    %v4020 = vsel %vm4012, %v4008, %v4016
    %v4021 = vsel %vm4013, %v4009, %v4017
    %v4022 = vsel %vm4014, %v4010, %v4018
    %v4023 = vsel %vm4015, %v4011, %v4019
    %4024 = vst [vmem:[#allocation3] sm:$0xff] 0.0
    %4025 = vst [vmem:[#allocation3 + $0x8] sm:$0xff] 0.0
    %4026 = vst [vmem:[#allocation3 + $0x10] sm:$0x3] 0.0
    %4027 = vst [vmem:[#allocation3 + $0x18] sm:$0xff] 0.0
    %4028 = vst [vmem:[#allocation3 + $0x20] sm:$0xff] 0.0
    %4029 = vst [vmem:[#allocation3 + $0x28] sm:$0x3] 0.0
    %4030 = vst [vmem:[#allocation3 + $0x1] sm:$0xff] %v4020
    %4031 = vst [vmem:[#allocation3 + $0x9] sm:$0xff] %v4021
    %4032 = vst [vmem:[#allocation3 + $0x19] sm:$0xff] %v4022
    %4033 = vst [vmem:[#allocation3 + $0x21] sm:$0xff] %v4023
    %v4034 = vld [vmem:[#allocation3] sm:$0xff]
    %v4035 = vld [vmem:[#allocation3 + $0x8] sm:$0xff]
    %v4036 = vld [vmem:[#allocation3 + $0x10] sm:$0x3]
    %v4037 = vld [vmem:[#allocation3 + $0x18] sm:$0xff]
    %v4038 = vld [vmem:[#allocation3 + $0x20] sm:$0xff]
    %v4039 = vld [vmem:[#allocation3 + $0x28] sm:$0x3]
    %v4046 = vrot.slane %v4034, 1
    %v4047 = vrot.slane %v4035, 1
    %v4048 = vsel %vm3782, %v4046, %v4047
    %v4049 = vrot.slane %v4036, 1
    %v4050 = vsel %vm3782, %v4047, %v4049
    %v4051 = vrot.slane %v4037, 1
    %v4052 = vrot.slane %v4038, 1
    %v4053 = vsel %vm3782, %v4051, %v4052
    %v4054 = vrot.slane %v4039, 1
    %v4055 = vsel %vm3782, %v4052, %v4054
    %v4060 = vrot.slane %v4034, 2
    %v4061 = vrot.slane %v4035, 2
    %v4062 = vsel %vm3805, %v4060, %v4061
    %v4063 = vrot.slane %v4036, 2
    %v4064 = vsel %vm3805, %v4061, %v4063
    %v4065 = vrot.slane %v4037, 2
    %v4066 = vrot.slane %v4038, 2
    %v4067 = vsel %vm3805, %v4065, %v4066
    %v4068 = vrot.slane %v4039, 2
    %v4069 = vsel %vm3805, %v4066, %v4068
    %v4074 = vld [vmem:[#allocation16] sm:$0xff]
    %v4075 = vld [vmem:[#allocation16 + $0x8] sm:$0xff]
    %v4076 = vld [vmem:[#allocation16 + $0x10] sm:$0xff]
    %v4077 = vld [vmem:[#allocation16 + $0x18] sm:$0xff]
    %v4078 = vld [vmem:[#allocation16 + $0x20] sm:$0xff]
    %v4079 = vld [vmem:[#allocation16 + $0x28] sm:$0xff]
    %v4080 = vld [vmem:[#allocation16 + $0x30] sm:$0xff]
    %v4081 = vld [vmem:[#allocation16 + $0x38] sm:$0xff]
    %v4082 = vld [vmem:[#allocation16 + $0x40] sm:$0xff]
    %v4083 = vld [vmem:[#allocation16 + $0x48] sm:$0xff]
    %v4084 = vld [vmem:[#allocation16 + $0x50] sm:$0xff]
    %v4085 = vld [vmem:[#allocation16 + $0x58] sm:$0xff]
    %v4086 = vld [vmem:[#allocation16 + $0x60] sm:$0xff]
    %v4087 = vld [vmem:[#allocation16 + $0x68] sm:$0xff]
    %v4088 = vld [vmem:[#allocation16 + $0x70] sm:$0xff]
    %v4089 = vld [vmem:[#allocation16 + $0x78] sm:$0xff]
    %v4090 = vld [vmem:[#allocation16 + $0x80] sm:$0xff]
    %v4091 = vld [vmem:[#allocation16 + $0x88] sm:$0xff]
    %v4092 = vld [vmem:[#allocation16 + $0x90] sm:$0xff]
    %v4093 = vld [vmem:[#allocation16 + $0x98] sm:$0xff]
    %v4094 = vld [vmem:[#allocation16 + $0xa0] sm:$0xff]
    %v4095 = vld [vmem:[#allocation16 + $0xa8] sm:$0xff]
    %v4096 = vld [vmem:[#allocation16 + $0xb0] sm:$0xff]
    %v4097 = vld [vmem:[#allocation16 + $0xb8] sm:$0xff]
    %v4098 = vld [vmem:[#allocation16 + $0xc0] sm:$0xff]
    %v4099 = vld [vmem:[#allocation16 + $0xc8] sm:$0xff]
    %v4100 = vld [vmem:[#allocation16 + $0xd0] sm:$0xff]
    %v4101 = vld [vmem:[#allocation16 + $0xd8] sm:$0xff]
    %v4102 = vld [vmem:[#allocation16 + $0xe0] sm:$0xff]
    %v4103 = vld [vmem:[#allocation16 + $0xe8] sm:$0xff]
    %v4104 = vld [vmem:[#allocation16 + $0xf0] sm:$0xff]
    %v4105 = vld [vmem:[#allocation16 + $0xf8] sm:$0xff]
    %v4106 = vld [vmem:[#allocation16 + $0x100] sm:$0xff]
    %v4107 = vld [vmem:[#allocation16 + $0x108] sm:$0xff]
    %v4108 = vld [vmem:[#allocation16 + $0x110] sm:$0xff]
    %v4109 = vld [vmem:[#allocation16 + $0x118] sm:$0xff]
    %v4110 = vld [vmem:[#allocation16 + $0x120] sm:$0xff]
    %v4111 = vld [vmem:[#allocation16 + $0x128] sm:$0xff]
    %v4112 = vld [vmem:[#allocation16 + $0x130] sm:$0xff]
    %v4113 = vld [vmem:[#allocation16 + $0x138] sm:$0xff]
    %v4114 = vld [vmem:[#allocation16 + $0x140] sm:$0xff]
    %v4115 = vld [vmem:[#allocation16 + $0x148] sm:$0xff]
    %v4116 = vld [vmem:[#allocation16 + $0x150] sm:$0xff]
    %v4117 = vld [vmem:[#allocation16 + $0x158] sm:$0xff]
    %v4118 = vld [vmem:[#allocation16 + $0x160] sm:$0xff]
    %v4119 = vld [vmem:[#allocation16 + $0x168] sm:$0xff]
    %v4120 = vld [vmem:[#allocation16 + $0x170] sm:$0xff]
    %v4121 = vld [vmem:[#allocation16 + $0x178] sm:$0xff]
    %v4122 = vld [vmem:[#allocation18] sm:$0x1]
    %v4124 = vlaneseq
    %v4125 = vshrl.u32 %v4124, 7
    %v4126 = vsub.s32 0, %v4125
    %v4127 = vrot.slane %v4122, %v4126
    %4129 = vmatprep.subr.mxu0 0.0
    %4130 = vmatpush1.msra.mxu0 %v4089
    %4131 = vmatprep.subr.mxu0 0.0
    %4132 = vmatpush1.msra.mxu0 %v4088
    %4133 = vmatprep.subr.mxu0 0.0
    %4134 = vmatpush1.msra.mxu0 %v4087
    %4135 = vmatprep.subr.mxu0 0.0
    %4136 = vmatpush1.msra.mxu0 %v4086
    %4137 = vmatprep.subr.mxu0 0.0
    %4138 = vmatpush1.msra.mxu0 %v4085
    %4139 = vmatprep.subr.mxu0 0.0
    %4140 = vmatpush1.msra.mxu0 %v4084
    %4141 = vmatprep.subr.mxu0 0.0
    %4142 = vmatpush1.msra.mxu0 %v4083
    %4143 = vmatprep.subr.mxu0 0.0
    %4144 = vmatpush1.msra.mxu0 %v4082
    %4145 = vmatprep.subr.mxu0 0.0
    %4146 = vmatpush1.msra.mxu0 %v4081
    %4147 = vmatprep.subr.mxu0 0.0
    %4148 = vmatpush1.msra.mxu0 %v4080
    %4149 = vmatprep.subr.mxu0 0.0
    %4150 = vmatpush1.msra.mxu0 %v4079
    %4151 = vmatprep.subr.mxu0 0.0
    %4152 = vmatpush1.msra.mxu0 %v4078
    %4153 = vmatprep.subr.mxu0 0.0
    %4154 = vmatpush1.msra.mxu0 %v4077
    %4155 = vmatprep.subr.mxu0 0.0
    %4156 = vmatpush1.msra.mxu0 %v4076
    %4157 = vmatprep.subr.mxu0 0.0
    %4158 = vmatpush1.msra.mxu0 %v4075
    %4159 = vmatprep.subr.mxu0 0.0
    %4160 = vmatpush1.msra.mxu0 %v4074
    %4161 = vmatprep.subr.mxu0 0.0
    %4162 = vmatpush2.msra.mxu0 %v4105
    %4163 = vmatprep.subr.mxu0 0.0
    %4164 = vmatpush2.msra.mxu0 %v4104
    %4165 = vmatprep.subr.mxu0 0.0
    %4166 = vmatpush2.msra.mxu0 %v4103
    %4167 = vmatprep.subr.mxu0 0.0
    %4168 = vmatpush2.msra.mxu0 %v4102
    %4169 = vmatprep.subr.mxu0 0.0
    %4170 = vmatpush2.msra.mxu0 %v4101
    %4171 = vmatprep.subr.mxu0 0.0
    %4172 = vmatpush2.msra.mxu0 %v4100
    %4173 = vmatprep.subr.mxu0 0.0
    %4174 = vmatpush2.msra.mxu0 %v4099
    %4175 = vmatprep.subr.mxu0 0.0
    %4176 = vmatpush2.msra.mxu0 %v4098
    %4177 = vmatprep.subr.mxu0 0.0
    %4178 = vmatpush2.msra.mxu0 %v4097
    %4179 = vmatprep.subr.mxu0 0.0
    %4180 = vmatpush2.msra.mxu0 %v4096
    %4181 = vmatprep.subr.mxu0 0.0
    %4182 = vmatpush2.msra.mxu0 %v4095
    %4183 = vmatprep.subr.mxu0 0.0
    %4184 = vmatpush2.msra.mxu0 %v4094
    %4185 = vmatprep.subr.mxu0 0.0
    %4186 = vmatpush2.msra.mxu0 %v4093
    %4187 = vmatprep.subr.mxu0 0.0
    %4188 = vmatpush2.msra.mxu0 %v4092
    %4189 = vmatprep.subr.mxu0 0.0
    %4190 = vmatpush2.msra.mxu0 %v4091
    %4191 = vmatprep.subr.mxu0 0.0
    %4192 = vmatpush2.msra.mxu0 %v4090
    %4193 = vmatprep.mubr.f32.mxu0 %v4048
    %4194 = vmatmul.mubr.f32.gmra.mxu0 %v4034
    %v4195 = vpop.f32.mrf.mxu0
    %v4196 = vadd.f32 %v4127, %v4195
    %v4197 = vpop.f32.mrf.mxu0
    %4198 = vmatprep.mubr.f32.mxu0 %v4050
    %4199 = vmatmul.mubr.f32.gmra.mxu0 %v4035
    %v4200 = vpop.f32.mrf.mxu0
    %v4201 = vadd.f32 %v4127, %v4200
    %v4202 = vpop.f32.mrf.mxu0
    %4203 = vmatprep.mubr.f32.mxu0 %v4053
    %4204 = vmatmul.mubr.f32.gmra.mxu0 %v4037
    %v4205 = vpop.f32.mrf.mxu0
    %v4206 = vadd.f32 %v4127, %v4205
    %v4207 = vpop.f32.mrf.mxu0
    %4208 = vmatprep.mubr.f32.mxu0 %v4055
    %4209 = vmatmul.mubr.f32.gmra.mxu0 %v4038
    %v4210 = vpop.f32.mrf.mxu0
    %v4211 = vadd.f32 %v4127, %v4210
    %v4212 = vpop.f32.mrf.mxu0
    %4213 = vdwg.mxu0
    %4214 = vmatprep.subr.mxu0 0.0
    %4215 = vmatpush1.msra.mxu0 %v4121
    %4216 = vmatprep.subr.mxu0 0.0
    %4217 = vmatpush1.msra.mxu0 %v4120
    %4218 = vmatprep.subr.mxu0 0.0
    %4219 = vmatpush1.msra.mxu0 %v4119
    %4220 = vmatprep.subr.mxu0 0.0
    %4221 = vmatpush1.msra.mxu0 %v4118
    %4222 = vmatprep.subr.mxu0 0.0
    %4223 = vmatpush1.msra.mxu0 %v4117
    %4224 = vmatprep.subr.mxu0 0.0
    %4225 = vmatpush1.msra.mxu0 %v4116
    %4226 = vmatprep.subr.mxu0 0.0
    %4227 = vmatpush1.msra.mxu0 %v4115
    %4228 = vmatprep.subr.mxu0 0.0
    %4229 = vmatpush1.msra.mxu0 %v4114
    %4230 = vmatprep.subr.mxu0 0.0
    %4231 = vmatpush1.msra.mxu0 %v4113
    %4232 = vmatprep.subr.mxu0 0.0
    %4233 = vmatpush1.msra.mxu0 %v4112
    %4234 = vmatprep.subr.mxu0 0.0
    %4235 = vmatpush1.msra.mxu0 %v4111
    %4236 = vmatprep.subr.mxu0 0.0
    %4237 = vmatpush1.msra.mxu0 %v4110
    %4238 = vmatprep.subr.mxu0 0.0
    %4239 = vmatpush1.msra.mxu0 %v4109
    %4240 = vmatprep.subr.mxu0 0.0
    %4241 = vmatpush1.msra.mxu0 %v4108
    %4242 = vmatprep.subr.mxu0 0.0
    %4243 = vmatpush1.msra.mxu0 %v4107
    %4244 = vmatprep.subr.mxu0 0.0
    %4245 = vmatpush1.msra.mxu0 %v4106
    %4246 = vmatprep.subr.mxu0 0.0
    %4247 = vmatpush2.msra.mxu0 0.0
    %4248 = vmatprep.subr.mxu0 0.0
    %4249 = vmatpush2.msra.mxu0 0.0
    %4250 = vmatprep.subr.mxu0 0.0
    %4251 = vmatpush2.msra.mxu0 0.0
    %4252 = vmatprep.subr.mxu0 0.0
    %4253 = vmatpush2.msra.mxu0 0.0
    %4254 = vmatprep.subr.mxu0 0.0
    %4255 = vmatpush2.msra.mxu0 0.0
    %4256 = vmatprep.subr.mxu0 0.0
    %4257 = vmatpush2.msra.mxu0 0.0
    %4258 = vmatprep.subr.mxu0 0.0
    %4259 = vmatpush2.msra.mxu0 0.0
    %4260 = vmatprep.subr.mxu0 0.0
    %4261 = vmatpush2.msra.mxu0 0.0
    %4262 = vmatprep.subr.mxu0 0.0
    %4263 = vmatpush2.msra.mxu0 0.0
    %4264 = vmatprep.subr.mxu0 0.0
    %4265 = vmatpush2.msra.mxu0 0.0
    %4266 = vmatprep.subr.mxu0 0.0
    %4267 = vmatpush2.msra.mxu0 0.0
    %4268 = vmatprep.subr.mxu0 0.0
    %4269 = vmatpush2.msra.mxu0 0.0
    %4270 = vmatprep.subr.mxu0 0.0
    %4271 = vmatpush2.msra.mxu0 0.0
    %4272 = vmatprep.subr.mxu0 0.0
    %4273 = vmatpush2.msra.mxu0 0.0
    %4274 = vmatprep.subr.mxu0 0.0
    %4275 = vmatpush2.msra.mxu0 0.0
    %4276 = vmatprep.subr.mxu0 0.0
    %4277 = vmatpush2.msra.mxu0 0.0
    %4278 = vmatprep.mubr.f32.mxu0 0.0
    %4279 = vmatmul.mubr.f32.gmra.mxu0 %v4062
    %v4280 = vpop.f32.mrf.mxu0
    %v4281 = vadd.f32 %v4196, %v4280
    %v4282 = vpop.f32.mrf.mxu0
    %4283 = vmatprep.mubr.f32.mxu0 0.0
    %4284 = vmatmul.mubr.f32.gmra.mxu0 %v4064
    %v4285 = vpop.f32.mrf.mxu0
    %v4286 = vadd.f32 %v4201, %v4285
    %v4287 = vpop.f32.mrf.mxu0
    %4288 = vmatprep.mubr.f32.mxu0 0.0
    %4289 = vmatmul.mubr.f32.gmra.mxu0 %v4067
    %v4290 = vpop.f32.mrf.mxu0
    %v4291 = vadd.f32 %v4206, %v4290
    %v4292 = vpop.f32.mrf.mxu0
    %4293 = vmatprep.mubr.f32.mxu0 0.0
    %4294 = vmatmul.mubr.f32.gmra.mxu0 %v4069
    %v4295 = vpop.f32.mrf.mxu0
    %v4296 = vadd.f32 %v4211, %v4295
    %v4297 = vpop.f32.mrf.mxu0
    %4298 = vdwg.mxu0
    %v4299 = vld [vmem:[#allocation19] sm:$0xff]
    %v4300 = vld [vmem:[#allocation19 + $0x8] sm:$0xff]
    %v4301 = vld [vmem:[#allocation19 + $0x10] sm:$0xff]
    %v4302 = vld [vmem:[#allocation19 + $0x18] sm:$0xff]
    %v4303 = vld [vmem:[#allocation19 + $0x20] sm:$0xff]
    %v4304 = vld [vmem:[#allocation19 + $0x28] sm:$0xff]
    %v4305 = vld [vmem:[#allocation19 + $0x30] sm:$0xff]
    %v4306 = vld [vmem:[#allocation19 + $0x38] sm:$0xff]
    %v4307 = vld [vmem:[#allocation21] sm:$0x1]
    %v4309 = vlaneseq
    %v4310 = vshrl.u32 %v4309, 7
    %v4311 = vsub.s32 0, %v4310
    %v4312 = vrot.slane %v4307, %v4311
    %v4315 = vsel %vm3758, %v3682, 0
    %v4318 = vsel %vm3758, %v3683, 0
    %v4321 = vsel %vm3758, %v3684, 0
    %v4324 = vsel %vm3758, %v3685, 0
    %4326 = vmatprep.subr.mxu0 0.0
    %4327 = vmatpush1.msra.mxu0 0.0
    %4328 = vmatprep.subr.mxu0 0.0
    %4329 = vmatpush1.msra.mxu0 0.0
    %4330 = vmatprep.subr.mxu0 0.0
    %4331 = vmatpush1.msra.mxu0 0.0
    %4332 = vmatprep.subr.mxu0 0.0
    %4333 = vmatpush1.msra.mxu0 0.0
    %4334 = vmatprep.subr.mxu0 0.0
    %4335 = vmatpush1.msra.mxu0 0.0
    %4336 = vmatprep.subr.mxu0 0.0
    %4337 = vmatpush1.msra.mxu0 0.0
    %4338 = vmatprep.subr.mxu0 0.0
    %4339 = vmatpush1.msra.mxu0 0.0
    %4340 = vmatprep.subr.mxu0 0.0
    %4341 = vmatpush1.msra.mxu0 0.0
    %4342 = vmatprep.subr.mxu0 0.0
    %4343 = vmatpush1.msra.mxu0 %v4306
    %4344 = vmatprep.subr.mxu0 0.0
    %4345 = vmatpush1.msra.mxu0 %v4305
    %4346 = vmatprep.subr.mxu0 0.0
    %4347 = vmatpush1.msra.mxu0 %v4304
    %4348 = vmatprep.subr.mxu0 0.0
    %4349 = vmatpush1.msra.mxu0 %v4303
    %4350 = vmatprep.subr.mxu0 0.0
    %4351 = vmatpush1.msra.mxu0 %v4302
    %4352 = vmatprep.subr.mxu0 0.0
    %4353 = vmatpush1.msra.mxu0 %v4301
    %4354 = vmatprep.subr.mxu0 0.0
    %4355 = vmatpush1.msra.mxu0 %v4300
    %4356 = vmatprep.subr.mxu0 0.0
    %4357 = vmatpush1.msra.mxu0 %v4299
    %4358 = vmatprep.subr.mxu0 0.0
    %4359 = vmatpush2.msra.mxu0 0.0
    %4360 = vmatprep.subr.mxu0 0.0
    %4361 = vmatpush2.msra.mxu0 0.0
    %4362 = vmatprep.subr.mxu0 0.0
    %4363 = vmatpush2.msra.mxu0 0.0
    %4364 = vmatprep.subr.mxu0 0.0
    %4365 = vmatpush2.msra.mxu0 0.0
    %4366 = vmatprep.subr.mxu0 0.0
    %4367 = vmatpush2.msra.mxu0 0.0
    %4368 = vmatprep.subr.mxu0 0.0
    %4369 = vmatpush2.msra.mxu0 0.0
    %4370 = vmatprep.subr.mxu0 0.0
    %4371 = vmatpush2.msra.mxu0 0.0
    %4372 = vmatprep.subr.mxu0 0.0
    %4373 = vmatpush2.msra.mxu0 0.0
    %4374 = vmatprep.subr.mxu0 0.0
    %4375 = vmatpush2.msra.mxu0 0.0
    %4376 = vmatprep.subr.mxu0 0.0
    %4377 = vmatpush2.msra.mxu0 0.0
    %4378 = vmatprep.subr.mxu0 0.0
    %4379 = vmatpush2.msra.mxu0 0.0
    %4380 = vmatprep.subr.mxu0 0.0
    %4381 = vmatpush2.msra.mxu0 0.0
    %4382 = vmatprep.subr.mxu0 0.0
    %4383 = vmatpush2.msra.mxu0 0.0
    %4384 = vmatprep.subr.mxu0 0.0
    %4385 = vmatpush2.msra.mxu0 0.0
    %4386 = vmatprep.subr.mxu0 0.0
    %4387 = vmatpush2.msra.mxu0 0.0
    %4388 = vmatprep.subr.mxu0 0.0
    %4389 = vmatpush2.msra.mxu0 0.0
    %4390 = vmatprep.mubr.f32.mxu0 0.0
    %4391 = vmatmul.mubr.f32.gmra.mxu0 %v4315
    %v4392 = vpop.f32.mrf.mxu0
    %v4393 = vadd.f32 %v4312, %v4392
    %v4394 = vpop.f32.mrf.mxu0
    %4395 = vmatprep.mubr.f32.mxu0 0.0
    %4396 = vmatmul.mubr.f32.gmra.mxu0 %v4318
    %v4397 = vpop.f32.mrf.mxu0
    %v4398 = vadd.f32 %v4312, %v4397
    %v4399 = vpop.f32.mrf.mxu0
    %4400 = vmatprep.mubr.f32.mxu0 0.0
    %4401 = vmatmul.mubr.f32.gmra.mxu0 %v4321
    %v4402 = vpop.f32.mrf.mxu0
    %v4403 = vadd.f32 %v4312, %v4402
    %v4404 = vpop.f32.mrf.mxu0
    %4405 = vmatprep.mubr.f32.mxu0 0.0
    %4406 = vmatmul.mubr.f32.gmra.mxu0 %v4324
    %v4407 = vpop.f32.mrf.mxu0
    %v4408 = vadd.f32 %v4312, %v4407
    %v4409 = vpop.f32.mrf.mxu0
    %4410 = vdwg.mxu0
    %s4411 = sld [smem:[#allocation4]]
    %v4412 = vstv %s4411
    %v4413 = vmul.f32 %v4412, %v4281
    %v4414 = vmul.f32 %v4412, %v4286
    %v4415 = vmul.f32 %v4412, %v4291
    %v4416 = vmul.f32 %v4412, %v4296
    %v4417 = vadd.f32 %v4393, %v4413
    %v4418 = vadd.f32 %v4398, %v4414
    %v4419 = vadd.f32 %v4403, %v4415
    %v4420 = vadd.f32 %v4408, %v4416
    %4421 = vst [vmem:[%s14] sm:$0xff] %v4417
    %4422 = vst [vmem:[%s14 + $0x8] sm:$0xff] %v4418
    %4423 = vst [vmem:[%s14 + $0x10] sm:$0xff] %v4419
    %4424 = vst [vmem:[%s14 + $0x18] sm:$0xff] %v4420
    // Predicated region
    $region102: #{g_block_forward.1} parent=1 // pred_check
      _
    $region103: #{g_block_forward.1} parent=1 // pred_check_branch
      %4426 = sbr.rel (0) target = $region105
    $region104: #{g_block_forward.1} parent=1 // pred_region
      _
    $region105: #{g_block_forward.1} parent=1 // pred_fallthru
      _
    // Predicated region
    $region106: #{g_block_forward.1} parent=1 // pred_check
      _
    $region107: #{g_block_forward.1} parent=1 // pred_check_branch
      %4428 = sbr.rel (0) target = $region109
    $region108: #{g_block_forward.1} parent=1 // pred_region
      _
    $region109: #{g_block_forward.1} parent=1 // pred_fallthru
      _
    %4429 = vsyncpa [#allocation6], 1
    %4430 = vsyncpa [#allocation8], 1
    %4431 = vsyncpa [#allocation11], 1
    %4432 = vsyncpa [#allocation14], 1
    %4433 = vsyncpa [#allocation17], 1
    %4434 = vsyncpa [#allocation20], 1

</llo_original>
